<compile_context>
chip_gen: v7x
topology: tpu7x:2x2x1
jax: 0.10.0
libtpu: 0.0.40
codegen_flags: <defaults>
</compile_context>

<pallas_src>
import functools

import jax
import jax.numpy as jnp
from jax.experimental import pallas as pl
from jax.experimental.pallas import tpu as pltpu

IN_F = 5
HID = 128
OUT_F = 2


def stock_network_kernel(x_ref,
                         w1_ref, b1_ref,
                         w2_ref, b2_ref,
                         w3_ref, b3_ref,
                         w4_ref, b4_ref,
                         o_ref):
    x = x_ref[...]                                          # [TB, 5]  f32

    # ---- hidden1 + ReLU: K=5 -> unrolled VPU FMAs (skip a padded MXU pass) --
    w1 = w1_ref[...]                                        # [5, 128] f32
    h = x[:, 0:1] * w1[0:1, :]
    for f in range(1, IN_F):
        h = h + x[:, f:f + 1] * w1[f:f + 1, :]
    h = jnp.maximum(h + b1_ref[...], 0.0)                   # [TB, 128] f32

    # ---- hidden2 + ReLU: bf16 MXU, f32 accumulate ---------------------------
    h = jnp.dot(h.astype(jnp.bfloat16), w2_ref[...],
                preferred_element_type=jnp.float32)
    h = jnp.maximum(h + b2_ref[...], 0.0)                   # [TB, 128] f32

    # ---- hidden3 + ReLU -----------------------------------------------------
    h = jnp.dot(h.astype(jnp.bfloat16), w3_ref[...],
                preferred_element_type=jnp.float32)
    h = jnp.maximum(h + b3_ref[...], 0.0)                   # [TB, 128] f32

    # ---- output + Sigmoid ---------------------------------------------------
    z = jnp.dot(h.astype(jnp.bfloat16), w4_ref[...],
                preferred_element_type=jnp.float32)
    z = z + b4_ref[...]                                      # [TB, 2] f32
    o_ref[...] = 1.0 / (1.0 + jnp.exp(-z))


@functools.partial(jax.jit, static_argnames=("tile_b",))
def stock_network_forward(x, params, *, tile_b=512):
    """x: [B, 5] float32. params: dict of w1..w4 ([in,out]) and b1..b4 ([1,out])."""
    B = x.shape[0]
    num_tiles = pl.cdiv(B, tile_b)
    b_pad = num_tiles * tile_b
    if b_pad != B:
        x = jnp.pad(x, ((0, b_pad - B), (0, 0)))

    # Layer-1 weights stay f32 (VPU path); MXU-bound weights go bf16.
    w1 = params["w1"].astype(jnp.float32)
    w2 = params["w2"].astype(jnp.bfloat16)
    w3 = params["w3"].astype(jnp.bfloat16)
    w4 = params["w4"].astype(jnp.bfloat16)
    b1 = params["b1"].astype(jnp.float32)
    b2 = params["b2"].astype(jnp.float32)
    b3 = params["b3"].astype(jnp.float32)
    b4 = params["b4"].astype(jnp.float32)

    resident = lambda shape: pl.BlockSpec(shape, lambda i: (0, 0))

    out = pl.pallas_call(
        stock_network_kernel,
        out_shape=jax.ShapeDtypeStruct((b_pad, OUT_F), jnp.float32),
        grid=(num_tiles,),
        in_specs=[
            pl.BlockSpec((tile_b, IN_F), lambda i: (i, 0)),   # x   (pipelined)
            resident((IN_F, HID)),                            # w1  (fetched once)
            resident((1, HID)),                               # b1
            resident((HID, HID)),                             # w2
            resident((1, HID)),                               # b2
            resident((HID, HID)),                             # w3
            resident((1, HID)),                               # b3
            resident((HID, OUT_F)),                           # w4
            resident((1, OUT_F)),                             # b4
        ],
        out_specs=pl.BlockSpec((tile_b, OUT_F), lambda i: (i, 0)),
        compiler_params=pltpu.CompilerParams(
            dimension_semantics=("parallel",)),
    )(x, w1, b1, w2, b2, w3, b3, w4, b4)
    return out[:B]


def init_params(key):
    """Deterministic init mimicking nn.Linear default (U(-1/sqrt(fan_in), +))."""
    dims = [(IN_F, HID), (HID, HID), (HID, HID), (HID, OUT_F)]
    params = {}
    keys = jax.random.split(key, 2 * len(dims))
    for i, (fan_in, fan_out) in enumerate(dims):
        bound = 1.0 / jnp.sqrt(jnp.float32(fan_in))
        params[f"w{i + 1}"] = jax.random.uniform(
            keys[2 * i], (fan_in, fan_out),
            minval=-bound, maxval=bound, dtype=jnp.float32)
        params[f"b{i + 1}"] = jax.random.uniform(
            keys[2 * i + 1], (1, fan_out),
            minval=-bound, maxval=bound, dtype=jnp.float32)
    return params


def reference_forward(x, params):
    h = jnp.maximum(x @ params["w1"] + params["b1"], 0.0)
    h = jnp.maximum(h @ params["w2"] + params["b2"], 0.0)
    h = jnp.maximum(h @ params["w3"] + params["b3"], 0.0)
    return jax.nn.sigmoid(h @ params["w4"] + params["b4"])


if __name__ == "__main__":
    key = jax.random.PRNGKey(0)
    k_params, k_x = jax.random.split(key)
    params = init_params(k_params)

    # B not a multiple of TILE_B -> exercises both padding and multi-step grid.
    B = 1000
    x = jax.random.normal(k_x, (B, IN_F), dtype=jnp.float32)

    out = stock_network_forward(x, params, tile_b=512)
    out = jax.block_until_ready(out)

    ref = reference_forward(x, params)
    assert out.shape == (B, OUT_F)
    # bf16 MXU inputs => relax tolerance vs. the f32 reference.
    assert jnp.allclose(out, ref, atol=2e-2, rtol=2e-2), (
        float(jnp.max(jnp.abs(out - ref))))

    print("KERNEL_OK")
</pallas_src>

<mosaic_0001>
module attributes {stable_mosaic.version = 11 : i64} {
  func.func @stock_network_kernel(%arg0: i32, %arg1: memref<512x5xf32, #tpu.memory_space<vmem>>, %arg2: memref<5x128xf32, #tpu.memory_space<vmem>>, %arg3: memref<1x128xf32, #tpu.memory_space<vmem>>, %arg4: memref<128x128xbf16, #tpu.memory_space<vmem>>, %arg5: memref<1x128xf32, #tpu.memory_space<vmem>>, %arg6: memref<128x128xbf16, #tpu.memory_space<vmem>>, %arg7: memref<1x128xf32, #tpu.memory_space<vmem>>, %arg8: memref<128x2xbf16, #tpu.memory_space<vmem>>, %arg9: memref<1x2xf32, #tpu.memory_space<vmem>>, %arg10: memref<512x2xf32, #tpu.memory_space<vmem>>) attributes {dimension_semantics = [#tpu.dimension_semantics<parallel>], iteration_bounds = array<i64: 2>, scalar_prefetch = 0 : i64, scratch_operands = 0 : i64, tpu.core_type = #tpu.core_type<tc>, window_params = [{transform_indices = @transform_0, window_bounds = array<i64: 512, 5>}, {pipeline_mode = #tpu.pipeline_mode<synchronous>, transform_indices = @transform_1, window_bounds = array<i64: 5, 128>}, {pipeline_mode = #tpu.pipeline_mode<synchronous>, transform_indices = @transform_2, window_bounds = array<i64: 1, 128>}, {pipeline_mode = #tpu.pipeline_mode<synchronous>, transform_indices = @transform_3, window_bounds = array<i64: 128, 128>}, {pipeline_mode = #tpu.pipeline_mode<synchronous>, transform_indices = @transform_4, window_bounds = array<i64: 1, 128>}, {pipeline_mode = #tpu.pipeline_mode<synchronous>, transform_indices = @transform_5, window_bounds = array<i64: 128, 128>}, {pipeline_mode = #tpu.pipeline_mode<synchronous>, transform_indices = @transform_6, window_bounds = array<i64: 1, 128>}, {pipeline_mode = #tpu.pipeline_mode<synchronous>, transform_indices = @transform_7, window_bounds = array<i64: 128, 2>}, {pipeline_mode = #tpu.pipeline_mode<synchronous>, transform_indices = @transform_8, window_bounds = array<i64: 1, 2>}, {transform_indices = @transform_9, window_bounds = array<i64: 512, 2>}]} {
    %c0 = arith.constant 0 : index
    %c0_0 = arith.constant 0 : index
    %0 = vector.load %arg1[%c0, %c0_0] : memref<512x5xf32, #tpu.memory_space<vmem>>, vector<512x5xf32>
    %c0_1 = arith.constant 0 : index
    %c0_2 = arith.constant 0 : index
    %1 = vector.load %arg2[%c0_1, %c0_2] : memref<5x128xf32, #tpu.memory_space<vmem>>, vector<5x128xf32>
    %2 = vector.extract_strided_slice %0 {offsets = [0, 0], sizes = [512, 1], strides = [1, 1]} : vector<512x5xf32> to vector<512x1xf32>
    %3 = vector.extract_strided_slice %1 {offsets = [0, 0], sizes = [1, 128], strides = [1, 1]} : vector<5x128xf32> to vector<1x128xf32>
    %4 = vector.broadcast %2 : vector<512x1xf32> to vector<512x128xf32>
    %5 = vector.broadcast %3 : vector<1x128xf32> to vector<512x128xf32>
    %6 = arith.mulf %4, %5 : vector<512x128xf32>
    %7 = vector.extract_strided_slice %0 {offsets = [0, 1], sizes = [512, 1], strides = [1, 1]} : vector<512x5xf32> to vector<512x1xf32>
    %8 = vector.extract_strided_slice %1 {offsets = [1, 0], sizes = [1, 128], strides = [1, 1]} : vector<5x128xf32> to vector<1x128xf32>
    %9 = vector.broadcast %7 : vector<512x1xf32> to vector<512x128xf32>
    %10 = vector.broadcast %8 : vector<1x128xf32> to vector<512x128xf32>
    %11 = arith.mulf %9, %10 : vector<512x128xf32>
    %12 = arith.addf %6, %11 : vector<512x128xf32>
    %13 = vector.extract_strided_slice %0 {offsets = [0, 2], sizes = [512, 1], strides = [1, 1]} : vector<512x5xf32> to vector<512x1xf32>
    %14 = vector.extract_strided_slice %1 {offsets = [2, 0], sizes = [1, 128], strides = [1, 1]} : vector<5x128xf32> to vector<1x128xf32>
    %15 = vector.broadcast %13 : vector<512x1xf32> to vector<512x128xf32>
    %16 = vector.broadcast %14 : vector<1x128xf32> to vector<512x128xf32>
    %17 = arith.mulf %15, %16 : vector<512x128xf32>
    %18 = arith.addf %12, %17 : vector<512x128xf32>
    %19 = vector.extract_strided_slice %0 {offsets = [0, 3], sizes = [512, 1], strides = [1, 1]} : vector<512x5xf32> to vector<512x1xf32>
    %20 = vector.extract_strided_slice %1 {offsets = [3, 0], sizes = [1, 128], strides = [1, 1]} : vector<5x128xf32> to vector<1x128xf32>
    %21 = vector.broadcast %19 : vector<512x1xf32> to vector<512x128xf32>
    %22 = vector.broadcast %20 : vector<1x128xf32> to vector<512x128xf32>
    %23 = arith.mulf %21, %22 : vector<512x128xf32>
    %24 = arith.addf %18, %23 : vector<512x128xf32>
    %25 = vector.extract_strided_slice %0 {offsets = [0, 4], sizes = [512, 1], strides = [1, 1]} : vector<512x5xf32> to vector<512x1xf32>
    %26 = vector.extract_strided_slice %1 {offsets = [4, 0], sizes = [1, 128], strides = [1, 1]} : vector<5x128xf32> to vector<1x128xf32>
    %27 = vector.broadcast %25 : vector<512x1xf32> to vector<512x128xf32>
    %28 = vector.broadcast %26 : vector<1x128xf32> to vector<512x128xf32>
    %29 = arith.mulf %27, %28 : vector<512x128xf32>
    %30 = arith.addf %24, %29 : vector<512x128xf32>
    %c0_3 = arith.constant 0 : index
    %c0_4 = arith.constant 0 : index
    %31 = vector.load %arg3[%c0_3, %c0_4] : memref<1x128xf32, #tpu.memory_space<vmem>>, vector<1x128xf32>
    %32 = vector.broadcast %31 : vector<1x128xf32> to vector<512x128xf32>
    %33 = arith.addf %30, %32 : vector<512x128xf32>
    %cst = arith.constant 0.000000e+00 : f32
    %34 = vector.broadcast %cst : f32 to vector<512x128xf32>
    %35 = arith.maximumf %33, %34 : vector<512x128xf32>
    %36 = arith.truncf %35 : vector<512x128xf32> to vector<512x128xbf16>
    %c0_5 = arith.constant 0 : index
    %c0_6 = arith.constant 0 : index
    %37 = vector.load %arg4[%c0_5, %c0_6] : memref<128x128xbf16, #tpu.memory_space<vmem>>, vector<128x128xbf16>
    %cst_7 = arith.constant dense<0.000000e+00> : vector<512x128xf32>
    %38 = tpu.matmul %36, %37, %cst_7 {dimension_numbers = #tpu.dot_dimension_numbers<[1], [0], [0], [1], [0, 0, 1, 1], [], []>} : vector<512x128xbf16>, vector<128x128xbf16>, vector<512x128xf32> -> vector<512x128xf32>
    %c0_8 = arith.constant 0 : index
    %c0_9 = arith.constant 0 : index
    %39 = vector.load %arg5[%c0_8, %c0_9] : memref<1x128xf32, #tpu.memory_space<vmem>>, vector<1x128xf32>
    %40 = vector.broadcast %39 : vector<1x128xf32> to vector<512x128xf32>
    %41 = arith.addf %38, %40 : vector<512x128xf32>
    %cst_10 = arith.constant 0.000000e+00 : f32
    %42 = vector.broadcast %cst_10 : f32 to vector<512x128xf32>
    %43 = arith.maximumf %41, %42 : vector<512x128xf32>
    %44 = arith.truncf %43 : vector<512x128xf32> to vector<512x128xbf16>
    %c0_11 = arith.constant 0 : index
    %c0_12 = arith.constant 0 : index
    %45 = vector.load %arg6[%c0_11, %c0_12] : memref<128x128xbf16, #tpu.memory_space<vmem>>, vector<128x128xbf16>
    %cst_13 = arith.constant dense<0.000000e+00> : vector<512x128xf32>
    %46 = tpu.matmul %44, %45, %cst_13 {dimension_numbers = #tpu.dot_dimension_numbers<[1], [0], [0], [1], [0, 0, 1, 1], [], []>} : vector<512x128xbf16>, vector<128x128xbf16>, vector<512x128xf32> -> vector<512x128xf32>
    %c0_14 = arith.constant 0 : index
    %c0_15 = arith.constant 0 : index
    %47 = vector.load %arg7[%c0_14, %c0_15] : memref<1x128xf32, #tpu.memory_space<vmem>>, vector<1x128xf32>
    %48 = vector.broadcast %47 : vector<1x128xf32> to vector<512x128xf32>
    %49 = arith.addf %46, %48 : vector<512x128xf32>
    %cst_16 = arith.constant 0.000000e+00 : f32
    %50 = vector.broadcast %cst_16 : f32 to vector<512x128xf32>
    %51 = arith.maximumf %49, %50 : vector<512x128xf32>
    %52 = arith.truncf %51 : vector<512x128xf32> to vector<512x128xbf16>
    %c0_17 = arith.constant 0 : index
    %c0_18 = arith.constant 0 : index
    %53 = vector.load %arg8[%c0_17, %c0_18] : memref<128x2xbf16, #tpu.memory_space<vmem>>, vector<128x2xbf16>
    %cst_19 = arith.constant dense<0.000000e+00> : vector<512x2xf32>
    %54 = tpu.matmul %52, %53, %cst_19 {dimension_numbers = #tpu.dot_dimension_numbers<[1], [0], [0], [1], [0, 0, 1, 1], [], []>} : vector<512x128xbf16>, vector<128x2xbf16>, vector<512x2xf32> -> vector<512x2xf32>
    %c0_20 = arith.constant 0 : index
    %c0_21 = arith.constant 0 : index
    %55 = vector.load %arg9[%c0_20, %c0_21] : memref<1x2xf32, #tpu.memory_space<vmem>>, vector<1x2xf32>
    %56 = vector.broadcast %55 : vector<1x2xf32> to vector<512x2xf32>
    %57 = arith.addf %54, %56 : vector<512x2xf32>
    %cst_22 = arith.constant 0.000000e+00 : f32
    %58 = vector.broadcast %cst_22 : f32 to vector<512x2xf32>
    %59 = arith.subf %58, %57 : vector<512x2xf32>
    %60 = math.exp %59 : vector<512x2xf32>
    %cst_23 = arith.constant 1.000000e+00 : f32
    %61 = vector.broadcast %cst_23 : f32 to vector<512x2xf32>
    %62 = arith.addf %61, %60 : vector<512x2xf32>
    %cst_24 = arith.constant 1.000000e+00 : f32
    %63 = vector.broadcast %cst_24 : f32 to vector<512x2xf32>
    %64 = arith.divf %63, %62 : vector<512x2xf32>
    %c0_25 = arith.constant 0 : index
    %c0_26 = arith.constant 0 : index
    %65 = vector.load %arg10[%c0_25, %c0_26] : memref<512x2xf32, #tpu.memory_space<vmem>>, vector<512x2xf32>
    tpu.vector_store %arg10[%c0_25, %c0_26], %64 {strides = array<i32>} : memref<512x2xf32, #tpu.memory_space<vmem>>, vector<512x2xf32>,
    return
  }
  func.func @transform_0(%arg0: i32) -> (i32, i32) {
    %c0_i32 = arith.constant 0 : i32
    %c0_i32_0 = arith.constant 0 : i32
    return %arg0, %c0_i32 : i32, i32
  }
  func.func @transform_1(%arg0: i32) -> (i32, i32) {
    %c0_i32 = arith.constant 0 : i32
    %c0_i32_0 = arith.constant 0 : i32
    %c0_i32_1 = arith.constant 0 : i32
    return %c0_i32, %c0_i32_0 : i32, i32
  }
  func.func @transform_2(%arg0: i32) -> (i32, i32) {
    %c0_i32 = arith.constant 0 : i32
    %c0_i32_0 = arith.constant 0 : i32
    %c0_i32_1 = arith.constant 0 : i32
    return %c0_i32, %c0_i32_0 : i32, i32
  }
  func.func @transform_3(%arg0: i32) -> (i32, i32) {
    %c0_i32 = arith.constant 0 : i32
    %c0_i32_0 = arith.constant 0 : i32
    %c0_i32_1 = arith.constant 0 : i32
    return %c0_i32, %c0_i32_0 : i32, i32
  }
  func.func @transform_4(%arg0: i32) -> (i32, i32) {
    %c0_i32 = arith.constant 0 : i32
    %c0_i32_0 = arith.constant 0 : i32
    %c0_i32_1 = arith.constant 0 : i32
    return %c0_i32, %c0_i32_0 : i32, i32
  }
  func.func @transform_5(%arg0: i32) -> (i32, i32) {
    %c0_i32 = arith.constant 0 : i32
    %c0_i32_0 = arith.constant 0 : i32
    %c0_i32_1 = arith.constant 0 : i32
    return %c0_i32, %c0_i32_0 : i32, i32
  }
  func.func @transform_6(%arg0: i32) -> (i32, i32) {
    %c0_i32 = arith.constant 0 : i32
    %c0_i32_0 = arith.constant 0 : i32
    %c0_i32_1 = arith.constant 0 : i32
    return %c0_i32, %c0_i32_0 : i32, i32
  }
  func.func @transform_7(%arg0: i32) -> (i32, i32) {
    %c0_i32 = arith.constant 0 : i32
    %c0_i32_0 = arith.constant 0 : i32
    %c0_i32_1 = arith.constant 0 : i32
    return %c0_i32, %c0_i32_0 : i32, i32
  }
  func.func @transform_8(%arg0: i32) -> (i32, i32) {
    %c0_i32 = arith.constant 0 : i32
    %c0_i32_0 = arith.constant 0 : i32
    %c0_i32_1 = arith.constant 0 : i32
    return %c0_i32, %c0_i32_0 : i32, i32
  }
  func.func @transform_9(%arg0: i32) -> (i32, i32) {
    %c0_i32 = arith.constant 0 : i32
    %c0_i32_0 = arith.constant 0 : i32
    return %arg0, %c0_i32 : i32, i32
  }
}

</mosaic_0001>

<llo_original>
// kernel: stock_network_forward.1
$region0: #{stock_network_forward.1}
  #allocation0 [shape = 'u32[]', space=smem, size = 0x4, offset = 0x4, fixed_abs, tag = 'smem constant byte address 0x4 - core index']
  #allocation1 [shape = 'u32[144,128]{1,0:T(1,128)}', space=vmem, size = 0x12000, scoped, tag = 'internal scratch']
  %s0 = inlined_call_operand.vmem [shape: f32[1024,5], index: 0, kind: input, shape index: {}]
  %s1 = inlined_call_operand.vmem [shape: f32[5,128], index: 1, kind: input, shape index: {}]
  %s2 = inlined_call_operand.vmem [shape: f32[1,128], index: 2, kind: input, shape index: {}]
  %s3 = inlined_call_operand.vmem [shape: bf16[128,128], index: 3, kind: input, shape index: {}]
  %s4 = inlined_call_operand.vmem [shape: f32[1,128], index: 4, kind: input, shape index: {}]
  %s5 = inlined_call_operand.vmem [shape: bf16[128,128], index: 5, kind: input, shape index: {}]
  %s6 = inlined_call_operand.vmem [shape: f32[1,128], index: 6, kind: input, shape index: {}]
  %s7 = inlined_call_operand.vmem [shape: bf16[128,2], index: 7, kind: input, shape index: {}]
  %s8 = inlined_call_operand.vmem [shape: f32[1,2], index: 8, kind: input, shape index: {}]
  %s9 = inlined_call_operand.vmem [shape: f32[1024,2], index: 9, kind: output, shape index: {}]
  %s10 = sld [smem:[#allocation0]]
  $region69: #{stock_network_forward.1} parent=0
    _
  %s12 = ssub.s32 1, %s10
  %s13 = scalar_select 0, %s12, %s10
  loop: start=0, step=1, limit=4
  $region2: #{stock_network_forward.1} parent=0 // loop_pre_header
    _
  $region3: #{stock_network_forward.1} parent=0 // loop_header
    %s15 = sphi 0, %s19
    %p16 = scmp.ge.s32.totalorder %s15, 4
    %s25 = sphi 0, %s27
    %s28 = sphi 0, %s25
    %s29 = sphi 0, %s28
    %s45 = sphi 0, %s29
    %s49 = sphi 0, %s49
    %s51 = sphi 0, %s49
    %s52 = sphi 0, %s51
    %s66 = sphi 0, %s52
    %s70 = sphi 0, %s70
    %s72 = sphi 0, %s70
    %s73 = sphi 0, %s72
    %s87 = sphi 0, %s73
    %s91 = sphi 0, %s91
    %s93 = sphi 0, %s91
    %s94 = sphi 0, %s93
    %s108 = sphi 0, %s94
    %s112 = sphi 0, %s112
    %s114 = sphi 0, %s112
    %s115 = sphi 0, %s114
    %s129 = sphi 0, %s115
    %s133 = sphi 0, %s133
    %s135 = sphi 0, %s133
    %s136 = sphi 0, %s135
    %s150 = sphi 0, %s136
    %s154 = sphi 0, %s154
    %s156 = sphi 0, %s154
    %s157 = sphi 0, %s156
    %s171 = sphi 0, %s157
    %s175 = sphi 0, %s175
    %s177 = sphi 0, %s175
    %s178 = sphi 0, %s177
    %s192 = sphi 0, %s178
    %s196 = sphi 0, %s196
    %s198 = sphi 0, %s196
    %s199 = sphi 0, %s198
    %s213 = sphi 0, %s199
    %s219 = sphi 0, %s221
    %s222 = sphi 0, %s219
    %s223 = sphi 0, %s222
    %s239 = sphi 0, %s223
  $region4: #{stock_network_forward.1} parent=0 // loop_header_branch
    %18 = sbr.rel (%p16) target = $region8
  $region5: #{stock_network_forward.1} parent=0 // loop_body
    %s20 = ssub.s32 %s15, 1
    %s21 = ssub.s32 %s15, 2
    %s22 = sadd.s32 %s15, 1
    %s23 = ssub.s32 %s15, %s22
    %p24 = scmp.eq.s32.totalorder %s23, 0
    %s26 = sadd.s32 %s25, 1
    %s27 = scalar_select %p24, %s25, %s26
    %p30 = pneg %p24
    %p31 = scmp.eq.s32.totalorder %s15, 1
    %p32 = por %p30, %p31
    %p33 = scmp.ne.s32.totalorder %s25, %s28
    %p34 = scmp.eq.s32.totalorder %s15, 0
    %p35 = por %p33, %p34
    %p36 = scmp.ne.s32.totalorder %s25, %s28
    %p37 = scmp.eq.s32.totalorder %s20, 1
    %p38 = por %p36, %p37
    %p39 = scmp.ne.s32.totalorder %s28, %s29
    %p40 = scmp.eq.s32.totalorder %s20, 0
    %p41 = por %p39, %p40
    %p42 = scmp.ne.s32.totalorder %s28, %s29
    %p43 = scmp.eq.s32.totalorder %s21, 1
    %p44 = por %p42, %p43
    %p46 = scmp.ne.s32.totalorder %s29, %s45
    %p47 = scmp.eq.s32.totalorder %s21, 0
    %p48 = por %p46, %p47
    %s50 = sadd.s32 %s49, 1
    %p53 = scmp.eq.s32.totalorder %s15, 1
    %p54 = scmp.ne.s32.totalorder %s49, %s51
    %p55 = scmp.eq.s32.totalorder %s15, 0
    %p56 = por %p54, %p55
    %p57 = scmp.ne.s32.totalorder %s49, %s51
    %p58 = scmp.eq.s32.totalorder %s20, 1
    %p59 = por %p57, %p58
    %p60 = scmp.ne.s32.totalorder %s51, %s52
    %p61 = scmp.eq.s32.totalorder %s20, 0
    %p62 = por %p60, %p61
    %p63 = scmp.ne.s32.totalorder %s51, %s52
    %p64 = scmp.eq.s32.totalorder %s21, 1
    %p65 = por %p63, %p64
    %p67 = scmp.ne.s32.totalorder %s52, %s66
    %p68 = scmp.eq.s32.totalorder %s21, 0
    %p69 = por %p67, %p68
    %s71 = sadd.s32 %s70, 1
    %p74 = scmp.eq.s32.totalorder %s15, 1
    %p75 = scmp.ne.s32.totalorder %s70, %s72
    %p76 = scmp.eq.s32.totalorder %s15, 0
    %p77 = por %p75, %p76
    %p78 = scmp.ne.s32.totalorder %s70, %s72
    %p79 = scmp.eq.s32.totalorder %s20, 1
    %p80 = por %p78, %p79
    %p81 = scmp.ne.s32.totalorder %s72, %s73
    %p82 = scmp.eq.s32.totalorder %s20, 0
    %p83 = por %p81, %p82
    %p84 = scmp.ne.s32.totalorder %s72, %s73
    %p85 = scmp.eq.s32.totalorder %s21, 1
    %p86 = por %p84, %p85
    %p88 = scmp.ne.s32.totalorder %s73, %s87
    %p89 = scmp.eq.s32.totalorder %s21, 0
    %p90 = por %p88, %p89
    %s92 = sadd.s32 %s91, 1
    %p95 = scmp.eq.s32.totalorder %s15, 1
    %p96 = scmp.ne.s32.totalorder %s91, %s93
    %p97 = scmp.eq.s32.totalorder %s15, 0
    %p98 = por %p96, %p97
    %p99 = scmp.ne.s32.totalorder %s91, %s93
    %p100 = scmp.eq.s32.totalorder %s20, 1
    %p101 = por %p99, %p100
    %p102 = scmp.ne.s32.totalorder %s93, %s94
    %p103 = scmp.eq.s32.totalorder %s20, 0
    %p104 = por %p102, %p103
    %p105 = scmp.ne.s32.totalorder %s93, %s94
    %p106 = scmp.eq.s32.totalorder %s21, 1
    %p107 = por %p105, %p106
    %p109 = scmp.ne.s32.totalorder %s94, %s108
    %p110 = scmp.eq.s32.totalorder %s21, 0
    %p111 = por %p109, %p110
    %s113 = sadd.s32 %s112, 1
    %p116 = scmp.eq.s32.totalorder %s15, 1
    %p117 = scmp.ne.s32.totalorder %s112, %s114
    %p118 = scmp.eq.s32.totalorder %s15, 0
    %p119 = por %p117, %p118
    %p120 = scmp.ne.s32.totalorder %s112, %s114
    %p121 = scmp.eq.s32.totalorder %s20, 1
    %p122 = por %p120, %p121
    %p123 = scmp.ne.s32.totalorder %s114, %s115
    %p124 = scmp.eq.s32.totalorder %s20, 0
    %p125 = por %p123, %p124
    %p126 = scmp.ne.s32.totalorder %s114, %s115
    %p127 = scmp.eq.s32.totalorder %s21, 1
    %p128 = por %p126, %p127
    %p130 = scmp.ne.s32.totalorder %s115, %s129
    %p131 = scmp.eq.s32.totalorder %s21, 0
    %p132 = por %p130, %p131
    %s134 = sadd.s32 %s133, 1
    %p137 = scmp.eq.s32.totalorder %s15, 1
    %p138 = scmp.ne.s32.totalorder %s133, %s135
    %p139 = scmp.eq.s32.totalorder %s15, 0
    %p140 = por %p138, %p139
    %p141 = scmp.ne.s32.totalorder %s133, %s135
    %p142 = scmp.eq.s32.totalorder %s20, 1
    %p143 = por %p141, %p142
    %p144 = scmp.ne.s32.totalorder %s135, %s136
    %p145 = scmp.eq.s32.totalorder %s20, 0
    %p146 = por %p144, %p145
    %p147 = scmp.ne.s32.totalorder %s135, %s136
    %p148 = scmp.eq.s32.totalorder %s21, 1
    %p149 = por %p147, %p148
    %p151 = scmp.ne.s32.totalorder %s136, %s150
    %p152 = scmp.eq.s32.totalorder %s21, 0
    %p153 = por %p151, %p152
    %s155 = sadd.s32 %s154, 1
    %p158 = scmp.eq.s32.totalorder %s15, 1
    %p159 = scmp.ne.s32.totalorder %s154, %s156
    %p160 = scmp.eq.s32.totalorder %s15, 0
    %p161 = por %p159, %p160
    %p162 = scmp.ne.s32.totalorder %s154, %s156
    %p163 = scmp.eq.s32.totalorder %s20, 1
    %p164 = por %p162, %p163
    %p165 = scmp.ne.s32.totalorder %s156, %s157
    %p166 = scmp.eq.s32.totalorder %s20, 0
    %p167 = por %p165, %p166
    %p168 = scmp.ne.s32.totalorder %s156, %s157
    %p169 = scmp.eq.s32.totalorder %s21, 1
    %p170 = por %p168, %p169
    %p172 = scmp.ne.s32.totalorder %s157, %s171
    %p173 = scmp.eq.s32.totalorder %s21, 0
    %p174 = por %p172, %p173
    %s176 = sadd.s32 %s175, 1
    %p179 = scmp.eq.s32.totalorder %s15, 1
    %p180 = scmp.ne.s32.totalorder %s175, %s177
    %p181 = scmp.eq.s32.totalorder %s15, 0
    %p182 = por %p180, %p181
    %p183 = scmp.ne.s32.totalorder %s175, %s177
    %p184 = scmp.eq.s32.totalorder %s20, 1
    %p185 = por %p183, %p184
    %p186 = scmp.ne.s32.totalorder %s177, %s178
    %p187 = scmp.eq.s32.totalorder %s20, 0
    %p188 = por %p186, %p187
    %p189 = scmp.ne.s32.totalorder %s177, %s178
    %p190 = scmp.eq.s32.totalorder %s21, 1
    %p191 = por %p189, %p190
    %p193 = scmp.ne.s32.totalorder %s178, %s192
    %p194 = scmp.eq.s32.totalorder %s21, 0
    %p195 = por %p193, %p194
    %s197 = sadd.s32 %s196, 1
    %p200 = scmp.eq.s32.totalorder %s15, 1
    %p201 = scmp.ne.s32.totalorder %s196, %s198
    %p202 = scmp.eq.s32.totalorder %s15, 0
    %p203 = por %p201, %p202
    %p204 = scmp.ne.s32.totalorder %s196, %s198
    %p205 = scmp.eq.s32.totalorder %s20, 1
    %p206 = por %p204, %p205
    %p207 = scmp.ne.s32.totalorder %s198, %s199
    %p208 = scmp.eq.s32.totalorder %s20, 0
    %p209 = por %p207, %p208
    %p210 = scmp.ne.s32.totalorder %s198, %s199
    %p211 = scmp.eq.s32.totalorder %s21, 1
    %p212 = por %p210, %p211
    %p214 = scmp.ne.s32.totalorder %s199, %s213
    %p215 = scmp.eq.s32.totalorder %s21, 0
    %p216 = por %p214, %p215
    %s217 = ssub.s32 %s15, %s22
    %p218 = scmp.eq.s32.totalorder %s217, 0
    %s220 = sadd.s32 %s219, 1
    %s221 = scalar_select %p218, %s219, %s220
    %p224 = pneg %p218
    %p225 = scmp.eq.s32.totalorder %s15, 1
    %p226 = por %p224, %p225
    %p227 = scmp.ne.s32.totalorder %s219, %s222
    %p228 = scmp.eq.s32.totalorder %s15, 0
    %p229 = por %p227, %p228
    %p230 = scmp.ne.s32.totalorder %s219, %s222
    %p231 = scmp.eq.s32.totalorder %s20, 1
    %p232 = por %p230, %p231
    %p233 = scmp.ne.s32.totalorder %s222, %s223
    %p234 = scmp.eq.s32.totalorder %s20, 0
    %p235 = por %p233, %p234
    %p236 = scmp.ne.s32.totalorder %s222, %s223
    %p237 = scmp.eq.s32.totalorder %s21, 1
    %p238 = por %p236, %p237
    %p240 = scmp.ne.s32.totalorder %s223, %s239
    %p241 = scmp.eq.s32.totalorder %s21, 0
    %p242 = por %p240, %p241
    %p243 = scmp.le.s32.totalorder 1, %s15
    %p244 = scmp.lt.s32.totalorder %s15, 3
    %p245 = pnand %p243, %p244
    %p246 = pneg %p245
    // Predicated region
    $region9: #{stock_network_forward.1} parent=5 // pred_check
      _
    $region10: #{stock_network_forward.1} parent=5 // pred_check_branch
      %248 = sbr.rel (%p245) target = $region12
    $region11: #{stock_network_forward.1} parent=5 // pred_region
      %s249 = ssub.s32 %s15, 1
      // Predicated region
      $region13: #{stock_network_forward.1} parent=11 // pred_check
        %p250 = pneg %p62
      $region14: #{stock_network_forward.1} parent=11 // pred_check_branch
        %252 = sbr.rel (%p250) target = $region16
      $region15: #{stock_network_forward.1} parent=11 // pred_region
        _
      $region16: #{stock_network_forward.1} parent=11 // pred_fallthru
        _
      // Predicated region
      $region17: #{stock_network_forward.1} parent=11 // pred_check
        %p253 = pneg %p83
      $region18: #{stock_network_forward.1} parent=11 // pred_check_branch
        %255 = sbr.rel (%p253) target = $region20
      $region19: #{stock_network_forward.1} parent=11 // pred_region
        _
      $region20: #{stock_network_forward.1} parent=11 // pred_fallthru
        _
      // Predicated region
      $region21: #{stock_network_forward.1} parent=11 // pred_check
        %p256 = pneg %p104
      $region22: #{stock_network_forward.1} parent=11 // pred_check_branch
        %258 = sbr.rel (%p256) target = $region24
      $region23: #{stock_network_forward.1} parent=11 // pred_region
        _
      $region24: #{stock_network_forward.1} parent=11 // pred_fallthru
        _
      // Predicated region
      $region25: #{stock_network_forward.1} parent=11 // pred_check
        %p259 = pneg %p125
      $region26: #{stock_network_forward.1} parent=11 // pred_check_branch
        %261 = sbr.rel (%p259) target = $region28
      $region27: #{stock_network_forward.1} parent=11 // pred_region
        _
      $region28: #{stock_network_forward.1} parent=11 // pred_fallthru
        _
      // Predicated region
      $region29: #{stock_network_forward.1} parent=11 // pred_check
        %p262 = pneg %p146
      $region30: #{stock_network_forward.1} parent=11 // pred_check_branch
        %264 = sbr.rel (%p262) target = $region32
      $region31: #{stock_network_forward.1} parent=11 // pred_region
        _
      $region32: #{stock_network_forward.1} parent=11 // pred_fallthru
        _
      // Predicated region
      $region33: #{stock_network_forward.1} parent=11 // pred_check
        %p265 = pneg %p167
      $region34: #{stock_network_forward.1} parent=11 // pred_check_branch
        %267 = sbr.rel (%p265) target = $region36
      $region35: #{stock_network_forward.1} parent=11 // pred_region
        _
      $region36: #{stock_network_forward.1} parent=11 // pred_fallthru
        _
      // Predicated region
      $region37: #{stock_network_forward.1} parent=11 // pred_check
        %p268 = pneg %p188
      $region38: #{stock_network_forward.1} parent=11 // pred_check_branch
        %270 = sbr.rel (%p268) target = $region40
      $region39: #{stock_network_forward.1} parent=11 // pred_region
        _
      $region40: #{stock_network_forward.1} parent=11 // pred_fallthru
        _
      // Predicated region
      $region41: #{stock_network_forward.1} parent=11 // pred_check
        %p271 = pneg %p209
      $region42: #{stock_network_forward.1} parent=11 // pred_check_branch
        %273 = sbr.rel (%p271) target = $region44
      $region43: #{stock_network_forward.1} parent=11 // pred_region
        _
      $region44: #{stock_network_forward.1} parent=11 // pred_fallthru
        _
    $region12: #{stock_network_forward.1} parent=5 // pred_fallthru
      _
    %p274 = scmp.lt.s32.totalorder %s15, 2
    // Predicated region
    $region45: #{stock_network_forward.1} parent=5 // pred_check
      %p275 = pneg %p274
    $region46: #{stock_network_forward.1} parent=5 // pred_check_branch
      %277 = sbr.rel (%p275) target = $region48
    $region47: #{stock_network_forward.1} parent=5 // pred_region
      // Predicated region
      $region49: #{stock_network_forward.1} parent=47 // pred_check
        %p278 = pneg %p35
      $region50: #{stock_network_forward.1} parent=47 // pred_check_branch
        %280 = sbr.rel (%p278) target = $region52
      $region51: #{stock_network_forward.1} parent=47 // pred_region
        %s281 = smul.u32 64, %s15
        %p282 = scmp.lt.s32.totalorder %s281, 127
        %s283 = scalar_select %p282, %s281, 127
        %s284 = smul.addr %s283, 8
        %s285 = scalar_lea.vmem %s0, %s284
        %s286 = smul.u32 64, %s15
      $region52: #{stock_network_forward.1} parent=47 // pred_fallthru
        _
    $region48: #{stock_network_forward.1} parent=5 // pred_fallthru
      _
    %p287 = scmp.le.s32.totalorder 1, %s15
    %p288 = scmp.lt.s32.totalorder %s15, 3
    %p289 = pnand %p287, %p288
    %p290 = pneg %p289
    // Predicated region
    $region53: #{stock_network_forward.1} parent=5 // pred_check
      _
    $region54: #{stock_network_forward.1} parent=5 // pred_check_branch
      %292 = sbr.rel (%p289) target = $region56
    $region55: #{stock_network_forward.1} parent=5 // pred_region
      %s293 = ssub.s32 %s15, 1
      %s294 = smul.u32 64, %s20
      %p295 = scmp.lt.s32.totalorder %s294, 127
      %s296 = scalar_select %p295, %s294, 127
      %s297 = smul.addr %s296, 8
      %s298 = scalar_lea.vmem %s0, %s297
      %p299 = pneg %p41
      %p300 = pneg %p38
      %p301 = pneg %p62
      %p302 = pneg %p59
      %p303 = pneg %p83
      %p304 = pneg %p80
      %p305 = pneg %p104
      %p306 = pneg %p101
      %p307 = pneg %p125
      %p308 = pneg %p122
      %p309 = pneg %p146
      %p310 = pneg %p143
      %p311 = pneg %p167
      %p312 = pneg %p164
      %p313 = pneg %p188
      %p314 = pneg %p185
      %p315 = pneg %p209
      %p316 = pneg %p206
      %p317 = pneg %p235
      %p318 = pneg %p232
      %s319 = smul.u32 64, %s20
      %p320 = scmp.lt.s32.totalorder %s319, 127
      %s321 = scalar_select %p320, %s319, 127
      %s322 = smul.addr %s321, 8
      %s323 = scalar_lea.vmem %s9, %s322
      %s324 = smul.u32 64, %s20
      %p325 = scmp.lt.s32.totalorder %s324, 127
      %s326 = scalar_select %p325, %s324, 127
      %s327 = smul.addr %s326, 8
      %s328 = scalar_lea.vmem %s0, %s327
      %s329 = smul.u32 64, %s20
      %s330 = smul.u32 64, %s20
      %p331 = scmp.lt.s32.totalorder %s330, 127
      %s332 = scalar_select %p331, %s330, 127
      %s333 = smul.addr %s332, 8
      %s334 = scalar_lea.vmem %s9, %s333
      %s335 = smul.u32 64, %s20
      %v337 = vld [vmem:[%s328] sm:$0xff]
      %v338 = vld [vmem:[%s328 + $0x8] sm:$0xff]
      %v339 = vld [vmem:[%s328 + $0x10] sm:$0xff]
      %v340 = vld [vmem:[%s328 + $0x18] sm:$0xff]
      %v341 = vld [vmem:[%s328 + $0x20] sm:$0xff]
      %v342 = vld [vmem:[%s328 + $0x28] sm:$0xff]
      %v343 = vld [vmem:[%s328 + $0x30] sm:$0xff]
      %v344 = vld [vmem:[%s328 + $0x38] sm:$0xff]
      %v345 = vld [vmem:[%s328 + $0x40] sm:$0xff]
      %v346 = vld [vmem:[%s328 + $0x48] sm:$0xff]
      %v347 = vld [vmem:[%s328 + $0x50] sm:$0xff]
      %v348 = vld [vmem:[%s328 + $0x58] sm:$0xff]
      %v349 = vld [vmem:[%s328 + $0x60] sm:$0xff]
      %v350 = vld [vmem:[%s328 + $0x68] sm:$0xff]
      %v351 = vld [vmem:[%s328 + $0x70] sm:$0xff]
      %v352 = vld [vmem:[%s328 + $0x78] sm:$0xff]
      %v353 = vld [vmem:[%s328 + $0x80] sm:$0xff]
      %v354 = vld [vmem:[%s328 + $0x88] sm:$0xff]
      %v355 = vld [vmem:[%s328 + $0x90] sm:$0xff]
      %v356 = vld [vmem:[%s328 + $0x98] sm:$0xff]
      %v357 = vld [vmem:[%s328 + $0xa0] sm:$0xff]
      %v358 = vld [vmem:[%s328 + $0xa8] sm:$0xff]
      %v359 = vld [vmem:[%s328 + $0xb0] sm:$0xff]
      %v360 = vld [vmem:[%s328 + $0xb8] sm:$0xff]
      %v361 = vld [vmem:[%s328 + $0xc0] sm:$0xff]
      %v362 = vld [vmem:[%s328 + $0xc8] sm:$0xff]
      %v363 = vld [vmem:[%s328 + $0xd0] sm:$0xff]
      %v364 = vld [vmem:[%s328 + $0xd8] sm:$0xff]
      %v365 = vld [vmem:[%s328 + $0xe0] sm:$0xff]
      %v366 = vld [vmem:[%s328 + $0xe8] sm:$0xff]
      %v367 = vld [vmem:[%s328 + $0xf0] sm:$0xff]
      %v368 = vld [vmem:[%s328 + $0xf8] sm:$0xff]
      %v369 = vld [vmem:[%s328 + $0x100] sm:$0xff]
      %v370 = vld [vmem:[%s328 + $0x108] sm:$0xff]
      %v371 = vld [vmem:[%s328 + $0x110] sm:$0xff]
      %v372 = vld [vmem:[%s328 + $0x118] sm:$0xff]
      %v373 = vld [vmem:[%s328 + $0x120] sm:$0xff]
      %v374 = vld [vmem:[%s328 + $0x128] sm:$0xff]
      %v375 = vld [vmem:[%s328 + $0x130] sm:$0xff]
      %v376 = vld [vmem:[%s328 + $0x138] sm:$0xff]
      %v377 = vld [vmem:[%s328 + $0x140] sm:$0xff]
      %v378 = vld [vmem:[%s328 + $0x148] sm:$0xff]
      %v379 = vld [vmem:[%s328 + $0x150] sm:$0xff]
      %v380 = vld [vmem:[%s328 + $0x158] sm:$0xff]
      %v381 = vld [vmem:[%s328 + $0x160] sm:$0xff]
      %v382 = vld [vmem:[%s328 + $0x168] sm:$0xff]
      %v383 = vld [vmem:[%s328 + $0x170] sm:$0xff]
      %v384 = vld [vmem:[%s328 + $0x178] sm:$0xff]
      %v385 = vld [vmem:[%s328 + $0x180] sm:$0xff]
      %v386 = vld [vmem:[%s328 + $0x188] sm:$0xff]
      %v387 = vld [vmem:[%s328 + $0x190] sm:$0xff]
      %v388 = vld [vmem:[%s328 + $0x198] sm:$0xff]
      %v389 = vld [vmem:[%s328 + $0x1a0] sm:$0xff]
      %v390 = vld [vmem:[%s328 + $0x1a8] sm:$0xff]
      %v391 = vld [vmem:[%s328 + $0x1b0] sm:$0xff]
      %v392 = vld [vmem:[%s328 + $0x1b8] sm:$0xff]
      %v393 = vld [vmem:[%s328 + $0x1c0] sm:$0xff]
      %v394 = vld [vmem:[%s328 + $0x1c8] sm:$0xff]
      %v395 = vld [vmem:[%s328 + $0x1d0] sm:$0xff]
      %v396 = vld [vmem:[%s328 + $0x1d8] sm:$0xff]
      %v397 = vld [vmem:[%s328 + $0x1e0] sm:$0xff]
      %v398 = vld [vmem:[%s328 + $0x1e8] sm:$0xff]
      %v399 = vld [vmem:[%s328 + $0x1f0] sm:$0xff]
      %v400 = vld [vmem:[%s328 + $0x1f8] sm:$0xff]
      %v401 = vld [vmem:[%s1] sm:$0x1f]
      %403 = vset.pattern.permute.xlu0 0
      %404 = vperm.xlu0 %403, %v337
      %v405 = vpop.permute.xlu0 %404
      %408 = vset.pattern.permute.xlu0 0
      %409 = vperm.xlu0 %408, %v338
      %v410 = vpop.permute.xlu0 %409
      %413 = vset.pattern.permute.xlu0 0
      %414 = vperm.xlu0 %413, %v339
      %v415 = vpop.permute.xlu0 %414
      %418 = vset.pattern.permute.xlu0 0
      %419 = vperm.xlu0 %418, %v340
      %v420 = vpop.permute.xlu0 %419
      %423 = vset.pattern.permute.xlu0 0
      %424 = vperm.xlu0 %423, %v341
      %v425 = vpop.permute.xlu0 %424
      %428 = vset.pattern.permute.xlu0 0
      %429 = vperm.xlu0 %428, %v342
      %v430 = vpop.permute.xlu0 %429
      %433 = vset.pattern.permute.xlu0 0
      %434 = vperm.xlu0 %433, %v343
      %v435 = vpop.permute.xlu0 %434
      %438 = vset.pattern.permute.xlu0 0
      %439 = vperm.xlu0 %438, %v344
      %v440 = vpop.permute.xlu0 %439
      %443 = vset.pattern.permute.xlu0 0
      %444 = vperm.xlu0 %443, %v345
      %v445 = vpop.permute.xlu0 %444
      %448 = vset.pattern.permute.xlu0 0
      %449 = vperm.xlu0 %448, %v346
      %v450 = vpop.permute.xlu0 %449
      %453 = vset.pattern.permute.xlu0 0
      %454 = vperm.xlu0 %453, %v347
      %v455 = vpop.permute.xlu0 %454
      %458 = vset.pattern.permute.xlu0 0
      %459 = vperm.xlu0 %458, %v348
      %v460 = vpop.permute.xlu0 %459
      %463 = vset.pattern.permute.xlu0 0
      %464 = vperm.xlu0 %463, %v349
      %v465 = vpop.permute.xlu0 %464
      %468 = vset.pattern.permute.xlu0 0
      %469 = vperm.xlu0 %468, %v350
      %v470 = vpop.permute.xlu0 %469
      %473 = vset.pattern.permute.xlu0 0
      %474 = vperm.xlu0 %473, %v351
      %v475 = vpop.permute.xlu0 %474
      %478 = vset.pattern.permute.xlu0 0
      %479 = vperm.xlu0 %478, %v352
      %v480 = vpop.permute.xlu0 %479
      %483 = vset.pattern.permute.xlu0 0
      %484 = vperm.xlu0 %483, %v353
      %v485 = vpop.permute.xlu0 %484
      %488 = vset.pattern.permute.xlu0 0
      %489 = vperm.xlu0 %488, %v354
      %v490 = vpop.permute.xlu0 %489
      %493 = vset.pattern.permute.xlu0 0
      %494 = vperm.xlu0 %493, %v355
      %v495 = vpop.permute.xlu0 %494
      %498 = vset.pattern.permute.xlu0 0
      %499 = vperm.xlu0 %498, %v356
      %v500 = vpop.permute.xlu0 %499
      %503 = vset.pattern.permute.xlu0 0
      %504 = vperm.xlu0 %503, %v357
      %v505 = vpop.permute.xlu0 %504
      %508 = vset.pattern.permute.xlu0 0
      %509 = vperm.xlu0 %508, %v358
      %v510 = vpop.permute.xlu0 %509
      %513 = vset.pattern.permute.xlu0 0
      %514 = vperm.xlu0 %513, %v359
      %v515 = vpop.permute.xlu0 %514
      %518 = vset.pattern.permute.xlu0 0
      %519 = vperm.xlu0 %518, %v360
      %v520 = vpop.permute.xlu0 %519
      %523 = vset.pattern.permute.xlu0 0
      %524 = vperm.xlu0 %523, %v361
      %v525 = vpop.permute.xlu0 %524
      %528 = vset.pattern.permute.xlu0 0
      %529 = vperm.xlu0 %528, %v362
      %v530 = vpop.permute.xlu0 %529
      %533 = vset.pattern.permute.xlu0 0
      %534 = vperm.xlu0 %533, %v363
      %v535 = vpop.permute.xlu0 %534
      %538 = vset.pattern.permute.xlu0 0
      %539 = vperm.xlu0 %538, %v364
      %v540 = vpop.permute.xlu0 %539
      %543 = vset.pattern.permute.xlu0 0
      %544 = vperm.xlu0 %543, %v365
      %v545 = vpop.permute.xlu0 %544
      %548 = vset.pattern.permute.xlu0 0
      %549 = vperm.xlu0 %548, %v366
      %v550 = vpop.permute.xlu0 %549
      %553 = vset.pattern.permute.xlu0 0
      %554 = vperm.xlu0 %553, %v367
      %v555 = vpop.permute.xlu0 %554
      %558 = vset.pattern.permute.xlu0 0
      %559 = vperm.xlu0 %558, %v368
      %v560 = vpop.permute.xlu0 %559
      %563 = vset.pattern.permute.xlu0 0
      %564 = vperm.xlu0 %563, %v369
      %v565 = vpop.permute.xlu0 %564
      %568 = vset.pattern.permute.xlu0 0
      %569 = vperm.xlu0 %568, %v370
      %v570 = vpop.permute.xlu0 %569
      %573 = vset.pattern.permute.xlu0 0
      %574 = vperm.xlu0 %573, %v371
      %v575 = vpop.permute.xlu0 %574
      %578 = vset.pattern.permute.xlu0 0
      %579 = vperm.xlu0 %578, %v372
      %v580 = vpop.permute.xlu0 %579
      %583 = vset.pattern.permute.xlu0 0
      %584 = vperm.xlu0 %583, %v373
      %v585 = vpop.permute.xlu0 %584
      %588 = vset.pattern.permute.xlu0 0
      %589 = vperm.xlu0 %588, %v374
      %v590 = vpop.permute.xlu0 %589
      %593 = vset.pattern.permute.xlu0 0
      %594 = vperm.xlu0 %593, %v375
      %v595 = vpop.permute.xlu0 %594
      %598 = vset.pattern.permute.xlu0 0
      %599 = vperm.xlu0 %598, %v376
      %v600 = vpop.permute.xlu0 %599
      %603 = vset.pattern.permute.xlu0 0
      %604 = vperm.xlu0 %603, %v377
      %v605 = vpop.permute.xlu0 %604
      %608 = vset.pattern.permute.xlu0 0
      %609 = vperm.xlu0 %608, %v378
      %v610 = vpop.permute.xlu0 %609
      %613 = vset.pattern.permute.xlu0 0
      %614 = vperm.xlu0 %613, %v379
      %v615 = vpop.permute.xlu0 %614
      %618 = vset.pattern.permute.xlu0 0
      %619 = vperm.xlu0 %618, %v380
      %v620 = vpop.permute.xlu0 %619
      %623 = vset.pattern.permute.xlu0 0
      %624 = vperm.xlu0 %623, %v381
      %v625 = vpop.permute.xlu0 %624
      %628 = vset.pattern.permute.xlu0 0
      %629 = vperm.xlu0 %628, %v382
      %v630 = vpop.permute.xlu0 %629
      %633 = vset.pattern.permute.xlu0 0
      %634 = vperm.xlu0 %633, %v383
      %v635 = vpop.permute.xlu0 %634
      %638 = vset.pattern.permute.xlu0 0
      %639 = vperm.xlu0 %638, %v384
      %v640 = vpop.permute.xlu0 %639
      %643 = vset.pattern.permute.xlu0 0
      %644 = vperm.xlu0 %643, %v385
      %v645 = vpop.permute.xlu0 %644
      %648 = vset.pattern.permute.xlu0 0
      %649 = vperm.xlu0 %648, %v386
      %v650 = vpop.permute.xlu0 %649
      %653 = vset.pattern.permute.xlu0 0
      %654 = vperm.xlu0 %653, %v387
      %v655 = vpop.permute.xlu0 %654
      %658 = vset.pattern.permute.xlu0 0
      %659 = vperm.xlu0 %658, %v388
      %v660 = vpop.permute.xlu0 %659
      %663 = vset.pattern.permute.xlu0 0
      %664 = vperm.xlu0 %663, %v389
      %v665 = vpop.permute.xlu0 %664
      %668 = vset.pattern.permute.xlu0 0
      %669 = vperm.xlu0 %668, %v390
      %v670 = vpop.permute.xlu0 %669
      %673 = vset.pattern.permute.xlu0 0
      %674 = vperm.xlu0 %673, %v391
      %v675 = vpop.permute.xlu0 %674
      %678 = vset.pattern.permute.xlu0 0
      %679 = vperm.xlu0 %678, %v392
      %v680 = vpop.permute.xlu0 %679
      %683 = vset.pattern.permute.xlu0 0
      %684 = vperm.xlu0 %683, %v393
      %v685 = vpop.permute.xlu0 %684
      %688 = vset.pattern.permute.xlu0 0
      %689 = vperm.xlu0 %688, %v394
      %v690 = vpop.permute.xlu0 %689
      %693 = vset.pattern.permute.xlu0 0
      %694 = vperm.xlu0 %693, %v395
      %v695 = vpop.permute.xlu0 %694
      %698 = vset.pattern.permute.xlu0 0
      %699 = vperm.xlu0 %698, %v396
      %v700 = vpop.permute.xlu0 %699
      %703 = vset.pattern.permute.xlu0 0
      %704 = vperm.xlu0 %703, %v397
      %v705 = vpop.permute.xlu0 %704
      %708 = vset.pattern.permute.xlu0 0
      %709 = vperm.xlu0 %708, %v398
      %v710 = vpop.permute.xlu0 %709
      %713 = vset.pattern.permute.xlu0 0
      %714 = vperm.xlu0 %713, %v399
      %v715 = vpop.permute.xlu0 %714
      %718 = vset.pattern.permute.xlu0 0
      %719 = vperm.xlu0 %718, %v400
      %v720 = vpop.permute.xlu0 %719
      %v722 = vlaneseq
      %v723 = vshrl.u32 %v722, 7
      %v724 = vsub.s32 0, %v723
      %v725 = vrot.slane %v401, %v724
      %v726 = vmul.f32 %v405, %v725
      %v727 = vmul.f32 %v410, %v725
      %v728 = vmul.f32 %v415, %v725
      %v729 = vmul.f32 %v420, %v725
      %v730 = vmul.f32 %v425, %v725
      %v731 = vmul.f32 %v430, %v725
      %v732 = vmul.f32 %v435, %v725
      %v733 = vmul.f32 %v440, %v725
      %v734 = vmul.f32 %v445, %v725
      %v735 = vmul.f32 %v450, %v725
      %v736 = vmul.f32 %v455, %v725
      %v737 = vmul.f32 %v460, %v725
      %v738 = vmul.f32 %v465, %v725
      %v739 = vmul.f32 %v470, %v725
      %v740 = vmul.f32 %v475, %v725
      %v741 = vmul.f32 %v480, %v725
      %v742 = vmul.f32 %v485, %v725
      %v743 = vmul.f32 %v490, %v725
      %v744 = vmul.f32 %v495, %v725
      %v745 = vmul.f32 %v500, %v725
      %v746 = vmul.f32 %v505, %v725
      %v747 = vmul.f32 %v510, %v725
      %v748 = vmul.f32 %v515, %v725
      %v749 = vmul.f32 %v520, %v725
      %v750 = vmul.f32 %v525, %v725
      %v751 = vmul.f32 %v530, %v725
      %v752 = vmul.f32 %v535, %v725
      %v753 = vmul.f32 %v540, %v725
      %v754 = vmul.f32 %v545, %v725
      %v755 = vmul.f32 %v550, %v725
      %v756 = vmul.f32 %v555, %v725
      %v757 = vmul.f32 %v560, %v725
      %v758 = vmul.f32 %v565, %v725
      %v759 = vmul.f32 %v570, %v725
      %v760 = vmul.f32 %v575, %v725
      %v761 = vmul.f32 %v580, %v725
      %v762 = vmul.f32 %v585, %v725
      %v763 = vmul.f32 %v590, %v725
      %v764 = vmul.f32 %v595, %v725
      %v765 = vmul.f32 %v600, %v725
      %v766 = vmul.f32 %v605, %v725
      %v767 = vmul.f32 %v610, %v725
      %v768 = vmul.f32 %v615, %v725
      %v769 = vmul.f32 %v620, %v725
      %v770 = vmul.f32 %v625, %v725
      %v771 = vmul.f32 %v630, %v725
      %v772 = vmul.f32 %v635, %v725
      %v773 = vmul.f32 %v640, %v725
      %v774 = vmul.f32 %v645, %v725
      %v775 = vmul.f32 %v650, %v725
      %v776 = vmul.f32 %v655, %v725
      %v777 = vmul.f32 %v660, %v725
      %v778 = vmul.f32 %v665, %v725
      %v779 = vmul.f32 %v670, %v725
      %v780 = vmul.f32 %v675, %v725
      %v781 = vmul.f32 %v680, %v725
      %v782 = vmul.f32 %v685, %v725
      %v783 = vmul.f32 %v690, %v725
      %v784 = vmul.f32 %v695, %v725
      %v785 = vmul.f32 %v700, %v725
      %v786 = vmul.f32 %v705, %v725
      %v787 = vmul.f32 %v710, %v725
      %v788 = vmul.f32 %v715, %v725
      %v789 = vmul.f32 %v720, %v725
      %790 = vset.pattern.permute.xlu0 1
      %791 = vperm.xlu0 %790, %v337
      %v792 = vpop.permute.xlu0 %791
      %794 = vset.pattern.permute.xlu0 1
      %795 = vperm.xlu0 %794, %v338
      %v796 = vpop.permute.xlu0 %795
      %798 = vset.pattern.permute.xlu0 1
      %799 = vperm.xlu0 %798, %v339
      %v800 = vpop.permute.xlu0 %799
      %802 = vset.pattern.permute.xlu0 1
      %803 = vperm.xlu0 %802, %v340
      %v804 = vpop.permute.xlu0 %803
      %806 = vset.pattern.permute.xlu0 1
      %807 = vperm.xlu0 %806, %v341
      %v808 = vpop.permute.xlu0 %807
      %810 = vset.pattern.permute.xlu0 1
      %811 = vperm.xlu0 %810, %v342
      %v812 = vpop.permute.xlu0 %811
      %814 = vset.pattern.permute.xlu0 1
      %815 = vperm.xlu0 %814, %v343
      %v816 = vpop.permute.xlu0 %815
      %818 = vset.pattern.permute.xlu0 1
      %819 = vperm.xlu0 %818, %v344
      %v820 = vpop.permute.xlu0 %819
      %822 = vset.pattern.permute.xlu0 1
      %823 = vperm.xlu0 %822, %v345
      %v824 = vpop.permute.xlu0 %823
      %826 = vset.pattern.permute.xlu0 1
      %827 = vperm.xlu0 %826, %v346
      %v828 = vpop.permute.xlu0 %827
      %830 = vset.pattern.permute.xlu0 1
      %831 = vperm.xlu0 %830, %v347
      %v832 = vpop.permute.xlu0 %831
      %834 = vset.pattern.permute.xlu0 1
      %835 = vperm.xlu0 %834, %v348
      %v836 = vpop.permute.xlu0 %835
      %838 = vset.pattern.permute.xlu0 1
      %839 = vperm.xlu0 %838, %v349
      %v840 = vpop.permute.xlu0 %839
      %842 = vset.pattern.permute.xlu0 1
      %843 = vperm.xlu0 %842, %v350
      %v844 = vpop.permute.xlu0 %843
      %846 = vset.pattern.permute.xlu0 1
      %847 = vperm.xlu0 %846, %v351
      %v848 = vpop.permute.xlu0 %847
      %850 = vset.pattern.permute.xlu0 1
      %851 = vperm.xlu0 %850, %v352
      %v852 = vpop.permute.xlu0 %851
      %854 = vset.pattern.permute.xlu0 1
      %855 = vperm.xlu0 %854, %v353
      %v856 = vpop.permute.xlu0 %855
      %858 = vset.pattern.permute.xlu0 1
      %859 = vperm.xlu0 %858, %v354
      %v860 = vpop.permute.xlu0 %859
      %862 = vset.pattern.permute.xlu0 1
      %863 = vperm.xlu0 %862, %v355
      %v864 = vpop.permute.xlu0 %863
      %866 = vset.pattern.permute.xlu0 1
      %867 = vperm.xlu0 %866, %v356
      %v868 = vpop.permute.xlu0 %867
      %870 = vset.pattern.permute.xlu0 1
      %871 = vperm.xlu0 %870, %v357
      %v872 = vpop.permute.xlu0 %871
      %874 = vset.pattern.permute.xlu0 1
      %875 = vperm.xlu0 %874, %v358
      %v876 = vpop.permute.xlu0 %875
      %878 = vset.pattern.permute.xlu0 1
      %879 = vperm.xlu0 %878, %v359
      %v880 = vpop.permute.xlu0 %879
      %882 = vset.pattern.permute.xlu0 1
      %883 = vperm.xlu0 %882, %v360
      %v884 = vpop.permute.xlu0 %883
      %886 = vset.pattern.permute.xlu0 1
      %887 = vperm.xlu0 %886, %v361
      %v888 = vpop.permute.xlu0 %887
      %890 = vset.pattern.permute.xlu0 1
      %891 = vperm.xlu0 %890, %v362
      %v892 = vpop.permute.xlu0 %891
      %894 = vset.pattern.permute.xlu0 1
      %895 = vperm.xlu0 %894, %v363
      %v896 = vpop.permute.xlu0 %895
      %898 = vset.pattern.permute.xlu0 1
      %899 = vperm.xlu0 %898, %v364
      %v900 = vpop.permute.xlu0 %899
      %902 = vset.pattern.permute.xlu0 1
      %903 = vperm.xlu0 %902, %v365
      %v904 = vpop.permute.xlu0 %903
      %906 = vset.pattern.permute.xlu0 1
      %907 = vperm.xlu0 %906, %v366
      %v908 = vpop.permute.xlu0 %907
      %910 = vset.pattern.permute.xlu0 1
      %911 = vperm.xlu0 %910, %v367
      %v912 = vpop.permute.xlu0 %911
      %914 = vset.pattern.permute.xlu0 1
      %915 = vperm.xlu0 %914, %v368
      %v916 = vpop.permute.xlu0 %915
      %918 = vset.pattern.permute.xlu0 1
      %919 = vperm.xlu0 %918, %v369
      %v920 = vpop.permute.xlu0 %919
      %922 = vset.pattern.permute.xlu0 1
      %923 = vperm.xlu0 %922, %v370
      %v924 = vpop.permute.xlu0 %923
      %926 = vset.pattern.permute.xlu0 1
      %927 = vperm.xlu0 %926, %v371
      %v928 = vpop.permute.xlu0 %927
      %930 = vset.pattern.permute.xlu0 1
      %931 = vperm.xlu0 %930, %v372
      %v932 = vpop.permute.xlu0 %931
      %934 = vset.pattern.permute.xlu0 1
      %935 = vperm.xlu0 %934, %v373
      %v936 = vpop.permute.xlu0 %935
      %938 = vset.pattern.permute.xlu0 1
      %939 = vperm.xlu0 %938, %v374
      %v940 = vpop.permute.xlu0 %939
      %942 = vset.pattern.permute.xlu0 1
      %943 = vperm.xlu0 %942, %v375
      %v944 = vpop.permute.xlu0 %943
      %946 = vset.pattern.permute.xlu0 1
      %947 = vperm.xlu0 %946, %v376
      %v948 = vpop.permute.xlu0 %947
      %950 = vset.pattern.permute.xlu0 1
      %951 = vperm.xlu0 %950, %v377
      %v952 = vpop.permute.xlu0 %951
      %954 = vset.pattern.permute.xlu0 1
      %955 = vperm.xlu0 %954, %v378
      %v956 = vpop.permute.xlu0 %955
      %958 = vset.pattern.permute.xlu0 1
      %959 = vperm.xlu0 %958, %v379
      %v960 = vpop.permute.xlu0 %959
      %962 = vset.pattern.permute.xlu0 1
      %963 = vperm.xlu0 %962, %v380
      %v964 = vpop.permute.xlu0 %963
      %966 = vset.pattern.permute.xlu0 1
      %967 = vperm.xlu0 %966, %v381
      %v968 = vpop.permute.xlu0 %967
      %970 = vset.pattern.permute.xlu0 1
      %971 = vperm.xlu0 %970, %v382
      %v972 = vpop.permute.xlu0 %971
      %974 = vset.pattern.permute.xlu0 1
      %975 = vperm.xlu0 %974, %v383
      %v976 = vpop.permute.xlu0 %975
      %978 = vset.pattern.permute.xlu0 1
      %979 = vperm.xlu0 %978, %v384
      %v980 = vpop.permute.xlu0 %979
      %982 = vset.pattern.permute.xlu0 1
      %983 = vperm.xlu0 %982, %v385
      %v984 = vpop.permute.xlu0 %983
      %986 = vset.pattern.permute.xlu0 1
      %987 = vperm.xlu0 %986, %v386
      %v988 = vpop.permute.xlu0 %987
      %990 = vset.pattern.permute.xlu0 1
      %991 = vperm.xlu0 %990, %v387
      %v992 = vpop.permute.xlu0 %991
      %994 = vset.pattern.permute.xlu0 1
      %995 = vperm.xlu0 %994, %v388
      %v996 = vpop.permute.xlu0 %995
      %998 = vset.pattern.permute.xlu0 1
      %999 = vperm.xlu0 %998, %v389
      %v1000 = vpop.permute.xlu0 %999
      %1002 = vset.pattern.permute.xlu0 1
      %1003 = vperm.xlu0 %1002, %v390
      %v1004 = vpop.permute.xlu0 %1003
      %1006 = vset.pattern.permute.xlu0 1
      %1007 = vperm.xlu0 %1006, %v391
      %v1008 = vpop.permute.xlu0 %1007
      %1010 = vset.pattern.permute.xlu0 1
      %1011 = vperm.xlu0 %1010, %v392
      %v1012 = vpop.permute.xlu0 %1011
      %1014 = vset.pattern.permute.xlu0 1
      %1015 = vperm.xlu0 %1014, %v393
      %v1016 = vpop.permute.xlu0 %1015
      %1018 = vset.pattern.permute.xlu0 1
      %1019 = vperm.xlu0 %1018, %v394
      %v1020 = vpop.permute.xlu0 %1019
      %1022 = vset.pattern.permute.xlu0 1
      %1023 = vperm.xlu0 %1022, %v395
      %v1024 = vpop.permute.xlu0 %1023
      %1026 = vset.pattern.permute.xlu0 1
      %1027 = vperm.xlu0 %1026, %v396
      %v1028 = vpop.permute.xlu0 %1027
      %1030 = vset.pattern.permute.xlu0 1
      %1031 = vperm.xlu0 %1030, %v397
      %v1032 = vpop.permute.xlu0 %1031
      %1034 = vset.pattern.permute.xlu0 1
      %1035 = vperm.xlu0 %1034, %v398
      %v1036 = vpop.permute.xlu0 %1035
      %1038 = vset.pattern.permute.xlu0 1
      %1039 = vperm.xlu0 %1038, %v399
      %v1040 = vpop.permute.xlu0 %1039
      %1042 = vset.pattern.permute.xlu0 1
      %1043 = vperm.xlu0 %1042, %v400
      %v1044 = vpop.permute.xlu0 %1043
      %v1046 = vlaneseq
      %v1047 = vshrl.u32 %v1046, 7
      %v1048 = vsub.s32 1, %v1047
      %v1049 = vrot.slane %v401, %v1048
      %v1050 = vmul.f32 %v792, %v1049
      %v1051 = vmul.f32 %v796, %v1049
      %v1052 = vmul.f32 %v800, %v1049
      %v1053 = vmul.f32 %v804, %v1049
      %v1054 = vmul.f32 %v808, %v1049
      %v1055 = vmul.f32 %v812, %v1049
      %v1056 = vmul.f32 %v816, %v1049
      %v1057 = vmul.f32 %v820, %v1049
      %v1058 = vmul.f32 %v824, %v1049
      %v1059 = vmul.f32 %v828, %v1049
      %v1060 = vmul.f32 %v832, %v1049
      %v1061 = vmul.f32 %v836, %v1049
      %v1062 = vmul.f32 %v840, %v1049
      %v1063 = vmul.f32 %v844, %v1049
      %v1064 = vmul.f32 %v848, %v1049
      %v1065 = vmul.f32 %v852, %v1049
      %v1066 = vmul.f32 %v856, %v1049
      %v1067 = vmul.f32 %v860, %v1049
      %v1068 = vmul.f32 %v864, %v1049
      %v1069 = vmul.f32 %v868, %v1049
      %v1070 = vmul.f32 %v872, %v1049
      %v1071 = vmul.f32 %v876, %v1049
      %v1072 = vmul.f32 %v880, %v1049
      %v1073 = vmul.f32 %v884, %v1049
      %v1074 = vmul.f32 %v888, %v1049
      %v1075 = vmul.f32 %v892, %v1049
      %v1076 = vmul.f32 %v896, %v1049
      %v1077 = vmul.f32 %v900, %v1049
      %v1078 = vmul.f32 %v904, %v1049
      %v1079 = vmul.f32 %v908, %v1049
      %v1080 = vmul.f32 %v912, %v1049
      %v1081 = vmul.f32 %v916, %v1049
      %v1082 = vmul.f32 %v920, %v1049
      %v1083 = vmul.f32 %v924, %v1049
      %v1084 = vmul.f32 %v928, %v1049
      %v1085 = vmul.f32 %v932, %v1049
      %v1086 = vmul.f32 %v936, %v1049
      %v1087 = vmul.f32 %v940, %v1049
      %v1088 = vmul.f32 %v944, %v1049
      %v1089 = vmul.f32 %v948, %v1049
      %v1090 = vmul.f32 %v952, %v1049
      %v1091 = vmul.f32 %v956, %v1049
      %v1092 = vmul.f32 %v960, %v1049
      %v1093 = vmul.f32 %v964, %v1049
      %v1094 = vmul.f32 %v968, %v1049
      %v1095 = vmul.f32 %v972, %v1049
      %v1096 = vmul.f32 %v976, %v1049
      %v1097 = vmul.f32 %v980, %v1049
      %v1098 = vmul.f32 %v984, %v1049
      %v1099 = vmul.f32 %v988, %v1049
      %v1100 = vmul.f32 %v992, %v1049
      %v1101 = vmul.f32 %v996, %v1049
      %v1102 = vmul.f32 %v1000, %v1049
      %v1103 = vmul.f32 %v1004, %v1049
      %v1104 = vmul.f32 %v1008, %v1049
      %v1105 = vmul.f32 %v1012, %v1049
      %v1106 = vmul.f32 %v1016, %v1049
      %v1107 = vmul.f32 %v1020, %v1049
      %v1108 = vmul.f32 %v1024, %v1049
      %v1109 = vmul.f32 %v1028, %v1049
      %v1110 = vmul.f32 %v1032, %v1049
      %v1111 = vmul.f32 %v1036, %v1049
      %v1112 = vmul.f32 %v1040, %v1049
      %v1113 = vmul.f32 %v1044, %v1049
      %v1114 = vadd.f32 %v726, %v1050
      %v1115 = vadd.f32 %v727, %v1051
      %v1116 = vadd.f32 %v728, %v1052
      %v1117 = vadd.f32 %v729, %v1053
      %v1118 = vadd.f32 %v730, %v1054
      %v1119 = vadd.f32 %v731, %v1055
      %v1120 = vadd.f32 %v732, %v1056
      %v1121 = vadd.f32 %v733, %v1057
      %v1122 = vadd.f32 %v734, %v1058
      %v1123 = vadd.f32 %v735, %v1059
      %v1124 = vadd.f32 %v736, %v1060
      %v1125 = vadd.f32 %v737, %v1061
      %v1126 = vadd.f32 %v738, %v1062
      %v1127 = vadd.f32 %v739, %v1063
      %v1128 = vadd.f32 %v740, %v1064
      %v1129 = vadd.f32 %v741, %v1065
      %v1130 = vadd.f32 %v742, %v1066
      %v1131 = vadd.f32 %v743, %v1067
      %v1132 = vadd.f32 %v744, %v1068
      %v1133 = vadd.f32 %v745, %v1069
      %v1134 = vadd.f32 %v746, %v1070
      %v1135 = vadd.f32 %v747, %v1071
      %v1136 = vadd.f32 %v748, %v1072
      %v1137 = vadd.f32 %v749, %v1073
      %v1138 = vadd.f32 %v750, %v1074
      %v1139 = vadd.f32 %v751, %v1075
      %v1140 = vadd.f32 %v752, %v1076
      %v1141 = vadd.f32 %v753, %v1077
      %v1142 = vadd.f32 %v754, %v1078
      %v1143 = vadd.f32 %v755, %v1079
      %v1144 = vadd.f32 %v756, %v1080
      %v1145 = vadd.f32 %v757, %v1081
      %v1146 = vadd.f32 %v758, %v1082
      %v1147 = vadd.f32 %v759, %v1083
      %v1148 = vadd.f32 %v760, %v1084
      %v1149 = vadd.f32 %v761, %v1085
      %v1150 = vadd.f32 %v762, %v1086
      %v1151 = vadd.f32 %v763, %v1087
      %v1152 = vadd.f32 %v764, %v1088
      %v1153 = vadd.f32 %v765, %v1089
      %v1154 = vadd.f32 %v766, %v1090
      %v1155 = vadd.f32 %v767, %v1091
      %v1156 = vadd.f32 %v768, %v1092
      %v1157 = vadd.f32 %v769, %v1093
      %v1158 = vadd.f32 %v770, %v1094
      %v1159 = vadd.f32 %v771, %v1095
      %v1160 = vadd.f32 %v772, %v1096
      %v1161 = vadd.f32 %v773, %v1097
      %v1162 = vadd.f32 %v774, %v1098
      %v1163 = vadd.f32 %v775, %v1099
      %v1164 = vadd.f32 %v776, %v1100
      %v1165 = vadd.f32 %v777, %v1101
      %v1166 = vadd.f32 %v778, %v1102
      %v1167 = vadd.f32 %v779, %v1103
      %v1168 = vadd.f32 %v780, %v1104
      %v1169 = vadd.f32 %v781, %v1105
      %v1170 = vadd.f32 %v782, %v1106
      %v1171 = vadd.f32 %v783, %v1107
      %v1172 = vadd.f32 %v784, %v1108
      %v1173 = vadd.f32 %v785, %v1109
      %v1174 = vadd.f32 %v786, %v1110
      %v1175 = vadd.f32 %v787, %v1111
      %v1176 = vadd.f32 %v788, %v1112
      %v1177 = vadd.f32 %v789, %v1113
      %1178 = vset.pattern.permute.xlu0 2
      %1179 = vperm.xlu0 %1178, %v337
      %v1180 = vpop.permute.xlu0 %1179
      %1182 = vset.pattern.permute.xlu0 2
      %1183 = vperm.xlu0 %1182, %v338
      %v1184 = vpop.permute.xlu0 %1183
      %1186 = vset.pattern.permute.xlu0 2
      %1187 = vperm.xlu0 %1186, %v339
      %v1188 = vpop.permute.xlu0 %1187
      %1190 = vset.pattern.permute.xlu0 2
      %1191 = vperm.xlu0 %1190, %v340
      %v1192 = vpop.permute.xlu0 %1191
      %1194 = vset.pattern.permute.xlu0 2
      %1195 = vperm.xlu0 %1194, %v341
      %v1196 = vpop.permute.xlu0 %1195
      %1198 = vset.pattern.permute.xlu0 2
      %1199 = vperm.xlu0 %1198, %v342
      %v1200 = vpop.permute.xlu0 %1199
      %1202 = vset.pattern.permute.xlu0 2
      %1203 = vperm.xlu0 %1202, %v343
      %v1204 = vpop.permute.xlu0 %1203
      %1206 = vset.pattern.permute.xlu0 2
      %1207 = vperm.xlu0 %1206, %v344
      %v1208 = vpop.permute.xlu0 %1207
      %1210 = vset.pattern.permute.xlu0 2
      %1211 = vperm.xlu0 %1210, %v345
      %v1212 = vpop.permute.xlu0 %1211
      %1214 = vset.pattern.permute.xlu0 2
      %1215 = vperm.xlu0 %1214, %v346
      %v1216 = vpop.permute.xlu0 %1215
      %1218 = vset.pattern.permute.xlu0 2
      %1219 = vperm.xlu0 %1218, %v347
      %v1220 = vpop.permute.xlu0 %1219
      %1222 = vset.pattern.permute.xlu0 2
      %1223 = vperm.xlu0 %1222, %v348
      %v1224 = vpop.permute.xlu0 %1223
      %1226 = vset.pattern.permute.xlu0 2
      %1227 = vperm.xlu0 %1226, %v349
      %v1228 = vpop.permute.xlu0 %1227
      %1230 = vset.pattern.permute.xlu0 2
      %1231 = vperm.xlu0 %1230, %v350
      %v1232 = vpop.permute.xlu0 %1231
      %1234 = vset.pattern.permute.xlu0 2
      %1235 = vperm.xlu0 %1234, %v351
      %v1236 = vpop.permute.xlu0 %1235
      %1238 = vset.pattern.permute.xlu0 2
      %1239 = vperm.xlu0 %1238, %v352
      %v1240 = vpop.permute.xlu0 %1239
      %1242 = vset.pattern.permute.xlu0 2
      %1243 = vperm.xlu0 %1242, %v353
      %v1244 = vpop.permute.xlu0 %1243
      %1246 = vset.pattern.permute.xlu0 2
      %1247 = vperm.xlu0 %1246, %v354
      %v1248 = vpop.permute.xlu0 %1247
      %1250 = vset.pattern.permute.xlu0 2
      %1251 = vperm.xlu0 %1250, %v355
      %v1252 = vpop.permute.xlu0 %1251
      %1254 = vset.pattern.permute.xlu0 2
      %1255 = vperm.xlu0 %1254, %v356
      %v1256 = vpop.permute.xlu0 %1255
      %1258 = vset.pattern.permute.xlu0 2
      %1259 = vperm.xlu0 %1258, %v357
      %v1260 = vpop.permute.xlu0 %1259
      %1262 = vset.pattern.permute.xlu0 2
      %1263 = vperm.xlu0 %1262, %v358
      %v1264 = vpop.permute.xlu0 %1263
      %1266 = vset.pattern.permute.xlu0 2
      %1267 = vperm.xlu0 %1266, %v359
      %v1268 = vpop.permute.xlu0 %1267
      %1270 = vset.pattern.permute.xlu0 2
      %1271 = vperm.xlu0 %1270, %v360
      %v1272 = vpop.permute.xlu0 %1271
      %1274 = vset.pattern.permute.xlu0 2
      %1275 = vperm.xlu0 %1274, %v361
      %v1276 = vpop.permute.xlu0 %1275
      %1278 = vset.pattern.permute.xlu0 2
      %1279 = vperm.xlu0 %1278, %v362
      %v1280 = vpop.permute.xlu0 %1279
      %1282 = vset.pattern.permute.xlu0 2
      %1283 = vperm.xlu0 %1282, %v363
      %v1284 = vpop.permute.xlu0 %1283
      %1286 = vset.pattern.permute.xlu0 2
      %1287 = vperm.xlu0 %1286, %v364
      %v1288 = vpop.permute.xlu0 %1287
      %1290 = vset.pattern.permute.xlu0 2
      %1291 = vperm.xlu0 %1290, %v365
      %v1292 = vpop.permute.xlu0 %1291
      %1294 = vset.pattern.permute.xlu0 2
      %1295 = vperm.xlu0 %1294, %v366
      %v1296 = vpop.permute.xlu0 %1295
      %1298 = vset.pattern.permute.xlu0 2
      %1299 = vperm.xlu0 %1298, %v367
      %v1300 = vpop.permute.xlu0 %1299
      %1302 = vset.pattern.permute.xlu0 2
      %1303 = vperm.xlu0 %1302, %v368
      %v1304 = vpop.permute.xlu0 %1303
      %1306 = vset.pattern.permute.xlu0 2
      %1307 = vperm.xlu0 %1306, %v369
      %v1308 = vpop.permute.xlu0 %1307
      %1310 = vset.pattern.permute.xlu0 2
      %1311 = vperm.xlu0 %1310, %v370
      %v1312 = vpop.permute.xlu0 %1311
      %1314 = vset.pattern.permute.xlu0 2
      %1315 = vperm.xlu0 %1314, %v371
      %v1316 = vpop.permute.xlu0 %1315
      %1318 = vset.pattern.permute.xlu0 2
      %1319 = vperm.xlu0 %1318, %v372
      %v1320 = vpop.permute.xlu0 %1319
      %1322 = vset.pattern.permute.xlu0 2
      %1323 = vperm.xlu0 %1322, %v373
      %v1324 = vpop.permute.xlu0 %1323
      %1326 = vset.pattern.permute.xlu0 2
      %1327 = vperm.xlu0 %1326, %v374
      %v1328 = vpop.permute.xlu0 %1327
      %1330 = vset.pattern.permute.xlu0 2
      %1331 = vperm.xlu0 %1330, %v375
      %v1332 = vpop.permute.xlu0 %1331
      %1334 = vset.pattern.permute.xlu0 2
      %1335 = vperm.xlu0 %1334, %v376
      %v1336 = vpop.permute.xlu0 %1335
      %1338 = vset.pattern.permute.xlu0 2
      %1339 = vperm.xlu0 %1338, %v377
      %v1340 = vpop.permute.xlu0 %1339
      %1342 = vset.pattern.permute.xlu0 2
      %1343 = vperm.xlu0 %1342, %v378
      %v1344 = vpop.permute.xlu0 %1343
      %1346 = vset.pattern.permute.xlu0 2
      %1347 = vperm.xlu0 %1346, %v379
      %v1348 = vpop.permute.xlu0 %1347
      %1350 = vset.pattern.permute.xlu0 2
      %1351 = vperm.xlu0 %1350, %v380
      %v1352 = vpop.permute.xlu0 %1351
      %1354 = vset.pattern.permute.xlu0 2
      %1355 = vperm.xlu0 %1354, %v381
      %v1356 = vpop.permute.xlu0 %1355
      %1358 = vset.pattern.permute.xlu0 2
      %1359 = vperm.xlu0 %1358, %v382
      %v1360 = vpop.permute.xlu0 %1359
      %1362 = vset.pattern.permute.xlu0 2
      %1363 = vperm.xlu0 %1362, %v383
      %v1364 = vpop.permute.xlu0 %1363
      %1366 = vset.pattern.permute.xlu0 2
      %1367 = vperm.xlu0 %1366, %v384
      %v1368 = vpop.permute.xlu0 %1367
      %1370 = vset.pattern.permute.xlu0 2
      %1371 = vperm.xlu0 %1370, %v385
      %v1372 = vpop.permute.xlu0 %1371
      %1374 = vset.pattern.permute.xlu0 2
      %1375 = vperm.xlu0 %1374, %v386
      %v1376 = vpop.permute.xlu0 %1375
      %1378 = vset.pattern.permute.xlu0 2
      %1379 = vperm.xlu0 %1378, %v387
      %v1380 = vpop.permute.xlu0 %1379
      %1382 = vset.pattern.permute.xlu0 2
      %1383 = vperm.xlu0 %1382, %v388
      %v1384 = vpop.permute.xlu0 %1383
      %1386 = vset.pattern.permute.xlu0 2
      %1387 = vperm.xlu0 %1386, %v389
      %v1388 = vpop.permute.xlu0 %1387
      %1390 = vset.pattern.permute.xlu0 2
      %1391 = vperm.xlu0 %1390, %v390
      %v1392 = vpop.permute.xlu0 %1391
      %1394 = vset.pattern.permute.xlu0 2
      %1395 = vperm.xlu0 %1394, %v391
      %v1396 = vpop.permute.xlu0 %1395
      %1398 = vset.pattern.permute.xlu0 2
      %1399 = vperm.xlu0 %1398, %v392
      %v1400 = vpop.permute.xlu0 %1399
      %1402 = vset.pattern.permute.xlu0 2
      %1403 = vperm.xlu0 %1402, %v393
      %v1404 = vpop.permute.xlu0 %1403
      %1406 = vset.pattern.permute.xlu0 2
      %1407 = vperm.xlu0 %1406, %v394
      %v1408 = vpop.permute.xlu0 %1407
      %1410 = vset.pattern.permute.xlu0 2
      %1411 = vperm.xlu0 %1410, %v395
      %v1412 = vpop.permute.xlu0 %1411
      %1414 = vset.pattern.permute.xlu0 2
      %1415 = vperm.xlu0 %1414, %v396
      %v1416 = vpop.permute.xlu0 %1415
      %1418 = vset.pattern.permute.xlu0 2
      %1419 = vperm.xlu0 %1418, %v397
      %v1420 = vpop.permute.xlu0 %1419
      %1422 = vset.pattern.permute.xlu0 2
      %1423 = vperm.xlu0 %1422, %v398
      %v1424 = vpop.permute.xlu0 %1423
      %1426 = vset.pattern.permute.xlu0 2
      %1427 = vperm.xlu0 %1426, %v399
      %v1428 = vpop.permute.xlu0 %1427
      %1430 = vset.pattern.permute.xlu0 2
      %1431 = vperm.xlu0 %1430, %v400
      %v1432 = vpop.permute.xlu0 %1431
      %v1434 = vlaneseq
      %v1435 = vshrl.u32 %v1434, 7
      %v1436 = vsub.s32 2, %v1435
      %v1437 = vrot.slane %v401, %v1436
      %v1438 = vmul.f32 %v1180, %v1437
      %v1439 = vmul.f32 %v1184, %v1437
      %v1440 = vmul.f32 %v1188, %v1437
      %v1441 = vmul.f32 %v1192, %v1437
      %v1442 = vmul.f32 %v1196, %v1437
      %v1443 = vmul.f32 %v1200, %v1437
      %v1444 = vmul.f32 %v1204, %v1437
      %v1445 = vmul.f32 %v1208, %v1437
      %v1446 = vmul.f32 %v1212, %v1437
      %v1447 = vmul.f32 %v1216, %v1437
      %v1448 = vmul.f32 %v1220, %v1437
      %v1449 = vmul.f32 %v1224, %v1437
      %v1450 = vmul.f32 %v1228, %v1437
      %v1451 = vmul.f32 %v1232, %v1437
      %v1452 = vmul.f32 %v1236, %v1437
      %v1453 = vmul.f32 %v1240, %v1437
      %v1454 = vmul.f32 %v1244, %v1437
      %v1455 = vmul.f32 %v1248, %v1437
      %v1456 = vmul.f32 %v1252, %v1437
      %v1457 = vmul.f32 %v1256, %v1437
      %v1458 = vmul.f32 %v1260, %v1437
      %v1459 = vmul.f32 %v1264, %v1437
      %v1460 = vmul.f32 %v1268, %v1437
      %v1461 = vmul.f32 %v1272, %v1437
      %v1462 = vmul.f32 %v1276, %v1437
      %v1463 = vmul.f32 %v1280, %v1437
      %v1464 = vmul.f32 %v1284, %v1437
      %v1465 = vmul.f32 %v1288, %v1437
      %v1466 = vmul.f32 %v1292, %v1437
      %v1467 = vmul.f32 %v1296, %v1437
      %v1468 = vmul.f32 %v1300, %v1437
      %v1469 = vmul.f32 %v1304, %v1437
      %v1470 = vmul.f32 %v1308, %v1437
      %v1471 = vmul.f32 %v1312, %v1437
      %v1472 = vmul.f32 %v1316, %v1437
      %v1473 = vmul.f32 %v1320, %v1437
      %v1474 = vmul.f32 %v1324, %v1437
      %v1475 = vmul.f32 %v1328, %v1437
      %v1476 = vmul.f32 %v1332, %v1437
      %v1477 = vmul.f32 %v1336, %v1437
      %v1478 = vmul.f32 %v1340, %v1437
      %v1479 = vmul.f32 %v1344, %v1437
      %v1480 = vmul.f32 %v1348, %v1437
      %v1481 = vmul.f32 %v1352, %v1437
      %v1482 = vmul.f32 %v1356, %v1437
      %v1483 = vmul.f32 %v1360, %v1437
      %v1484 = vmul.f32 %v1364, %v1437
      %v1485 = vmul.f32 %v1368, %v1437
      %v1486 = vmul.f32 %v1372, %v1437
      %v1487 = vmul.f32 %v1376, %v1437
      %v1488 = vmul.f32 %v1380, %v1437
      %v1489 = vmul.f32 %v1384, %v1437
      %v1490 = vmul.f32 %v1388, %v1437
      %v1491 = vmul.f32 %v1392, %v1437
      %v1492 = vmul.f32 %v1396, %v1437
      %v1493 = vmul.f32 %v1400, %v1437
      %v1494 = vmul.f32 %v1404, %v1437
      %v1495 = vmul.f32 %v1408, %v1437
      %v1496 = vmul.f32 %v1412, %v1437
      %v1497 = vmul.f32 %v1416, %v1437
      %v1498 = vmul.f32 %v1420, %v1437
      %v1499 = vmul.f32 %v1424, %v1437
      %v1500 = vmul.f32 %v1428, %v1437
      %v1501 = vmul.f32 %v1432, %v1437
      %v1502 = vadd.f32 %v1114, %v1438
      %v1503 = vadd.f32 %v1115, %v1439
      %v1504 = vadd.f32 %v1116, %v1440
      %v1505 = vadd.f32 %v1117, %v1441
      %v1506 = vadd.f32 %v1118, %v1442
      %v1507 = vadd.f32 %v1119, %v1443
      %v1508 = vadd.f32 %v1120, %v1444
      %v1509 = vadd.f32 %v1121, %v1445
      %v1510 = vadd.f32 %v1122, %v1446
      %v1511 = vadd.f32 %v1123, %v1447
      %v1512 = vadd.f32 %v1124, %v1448
      %v1513 = vadd.f32 %v1125, %v1449
      %v1514 = vadd.f32 %v1126, %v1450
      %v1515 = vadd.f32 %v1127, %v1451
      %v1516 = vadd.f32 %v1128, %v1452
      %v1517 = vadd.f32 %v1129, %v1453
      %v1518 = vadd.f32 %v1130, %v1454
      %v1519 = vadd.f32 %v1131, %v1455
      %v1520 = vadd.f32 %v1132, %v1456
      %v1521 = vadd.f32 %v1133, %v1457
      %v1522 = vadd.f32 %v1134, %v1458
      %v1523 = vadd.f32 %v1135, %v1459
      %v1524 = vadd.f32 %v1136, %v1460
      %v1525 = vadd.f32 %v1137, %v1461
      %v1526 = vadd.f32 %v1138, %v1462
      %v1527 = vadd.f32 %v1139, %v1463
      %v1528 = vadd.f32 %v1140, %v1464
      %v1529 = vadd.f32 %v1141, %v1465
      %v1530 = vadd.f32 %v1142, %v1466
      %v1531 = vadd.f32 %v1143, %v1467
      %v1532 = vadd.f32 %v1144, %v1468
      %v1533 = vadd.f32 %v1145, %v1469
      %v1534 = vadd.f32 %v1146, %v1470
      %v1535 = vadd.f32 %v1147, %v1471
      %v1536 = vadd.f32 %v1148, %v1472
      %v1537 = vadd.f32 %v1149, %v1473
      %v1538 = vadd.f32 %v1150, %v1474
      %v1539 = vadd.f32 %v1151, %v1475
      %v1540 = vadd.f32 %v1152, %v1476
      %v1541 = vadd.f32 %v1153, %v1477
      %v1542 = vadd.f32 %v1154, %v1478
      %v1543 = vadd.f32 %v1155, %v1479
      %v1544 = vadd.f32 %v1156, %v1480
      %v1545 = vadd.f32 %v1157, %v1481
      %v1546 = vadd.f32 %v1158, %v1482
      %v1547 = vadd.f32 %v1159, %v1483
      %v1548 = vadd.f32 %v1160, %v1484
      %v1549 = vadd.f32 %v1161, %v1485
      %v1550 = vadd.f32 %v1162, %v1486
      %v1551 = vadd.f32 %v1163, %v1487
      %v1552 = vadd.f32 %v1164, %v1488
      %v1553 = vadd.f32 %v1165, %v1489
      %v1554 = vadd.f32 %v1166, %v1490
      %v1555 = vadd.f32 %v1167, %v1491
      %v1556 = vadd.f32 %v1168, %v1492
      %v1557 = vadd.f32 %v1169, %v1493
      %v1558 = vadd.f32 %v1170, %v1494
      %v1559 = vadd.f32 %v1171, %v1495
      %v1560 = vadd.f32 %v1172, %v1496
      %v1561 = vadd.f32 %v1173, %v1497
      %v1562 = vadd.f32 %v1174, %v1498
      %v1563 = vadd.f32 %v1175, %v1499
      %v1564 = vadd.f32 %v1176, %v1500
      %v1565 = vadd.f32 %v1177, %v1501
      %1566 = vset.pattern.permute.xlu0 3
      %1567 = vperm.xlu0 %1566, %v337
      %v1568 = vpop.permute.xlu0 %1567
      %1570 = vset.pattern.permute.xlu0 3
      %1571 = vperm.xlu0 %1570, %v338
      %v1572 = vpop.permute.xlu0 %1571
      %1574 = vset.pattern.permute.xlu0 3
      %1575 = vperm.xlu0 %1574, %v339
      %v1576 = vpop.permute.xlu0 %1575
      %1578 = vset.pattern.permute.xlu0 3
      %1579 = vperm.xlu0 %1578, %v340
      %v1580 = vpop.permute.xlu0 %1579
      %1582 = vset.pattern.permute.xlu0 3
      %1583 = vperm.xlu0 %1582, %v341
      %v1584 = vpop.permute.xlu0 %1583
      %1586 = vset.pattern.permute.xlu0 3
      %1587 = vperm.xlu0 %1586, %v342
      %v1588 = vpop.permute.xlu0 %1587
      %1590 = vset.pattern.permute.xlu0 3
      %1591 = vperm.xlu0 %1590, %v343
      %v1592 = vpop.permute.xlu0 %1591
      %1594 = vset.pattern.permute.xlu0 3
      %1595 = vperm.xlu0 %1594, %v344
      %v1596 = vpop.permute.xlu0 %1595
      %1598 = vset.pattern.permute.xlu0 3
      %1599 = vperm.xlu0 %1598, %v345
      %v1600 = vpop.permute.xlu0 %1599
      %1602 = vset.pattern.permute.xlu0 3
      %1603 = vperm.xlu0 %1602, %v346
      %v1604 = vpop.permute.xlu0 %1603
      %1606 = vset.pattern.permute.xlu0 3
      %1607 = vperm.xlu0 %1606, %v347
      %v1608 = vpop.permute.xlu0 %1607
      %1610 = vset.pattern.permute.xlu0 3
      %1611 = vperm.xlu0 %1610, %v348
      %v1612 = vpop.permute.xlu0 %1611
      %1614 = vset.pattern.permute.xlu0 3
      %1615 = vperm.xlu0 %1614, %v349
      %v1616 = vpop.permute.xlu0 %1615
      %1618 = vset.pattern.permute.xlu0 3
      %1619 = vperm.xlu0 %1618, %v350
      %v1620 = vpop.permute.xlu0 %1619
      %1622 = vset.pattern.permute.xlu0 3
      %1623 = vperm.xlu0 %1622, %v351
      %v1624 = vpop.permute.xlu0 %1623
      %1626 = vset.pattern.permute.xlu0 3
      %1627 = vperm.xlu0 %1626, %v352
      %v1628 = vpop.permute.xlu0 %1627
      %1630 = vset.pattern.permute.xlu0 3
      %1631 = vperm.xlu0 %1630, %v353
      %v1632 = vpop.permute.xlu0 %1631
      %1634 = vset.pattern.permute.xlu0 3
      %1635 = vperm.xlu0 %1634, %v354
      %v1636 = vpop.permute.xlu0 %1635
      %1638 = vset.pattern.permute.xlu0 3
      %1639 = vperm.xlu0 %1638, %v355
      %v1640 = vpop.permute.xlu0 %1639
      %1642 = vset.pattern.permute.xlu0 3
      %1643 = vperm.xlu0 %1642, %v356
      %v1644 = vpop.permute.xlu0 %1643
      %1646 = vset.pattern.permute.xlu0 3
      %1647 = vperm.xlu0 %1646, %v357
      %v1648 = vpop.permute.xlu0 %1647
      %1650 = vset.pattern.permute.xlu0 3
      %1651 = vperm.xlu0 %1650, %v358
      %v1652 = vpop.permute.xlu0 %1651
      %1654 = vset.pattern.permute.xlu0 3
      %1655 = vperm.xlu0 %1654, %v359
      %v1656 = vpop.permute.xlu0 %1655
      %1658 = vset.pattern.permute.xlu0 3
      %1659 = vperm.xlu0 %1658, %v360
      %v1660 = vpop.permute.xlu0 %1659
      %1662 = vset.pattern.permute.xlu0 3
      %1663 = vperm.xlu0 %1662, %v361
      %v1664 = vpop.permute.xlu0 %1663
      %1666 = vset.pattern.permute.xlu0 3
      %1667 = vperm.xlu0 %1666, %v362
      %v1668 = vpop.permute.xlu0 %1667
      %1670 = vset.pattern.permute.xlu0 3
      %1671 = vperm.xlu0 %1670, %v363
      %v1672 = vpop.permute.xlu0 %1671
      %1674 = vset.pattern.permute.xlu0 3
      %1675 = vperm.xlu0 %1674, %v364
      %v1676 = vpop.permute.xlu0 %1675
      %1678 = vset.pattern.permute.xlu0 3
      %1679 = vperm.xlu0 %1678, %v365
      %v1680 = vpop.permute.xlu0 %1679
      %1682 = vset.pattern.permute.xlu0 3
      %1683 = vperm.xlu0 %1682, %v366
      %v1684 = vpop.permute.xlu0 %1683
      %1686 = vset.pattern.permute.xlu0 3
      %1687 = vperm.xlu0 %1686, %v367
      %v1688 = vpop.permute.xlu0 %1687
      %1690 = vset.pattern.permute.xlu0 3
      %1691 = vperm.xlu0 %1690, %v368
      %v1692 = vpop.permute.xlu0 %1691
      %1694 = vset.pattern.permute.xlu0 3
      %1695 = vperm.xlu0 %1694, %v369
      %v1696 = vpop.permute.xlu0 %1695
      %1698 = vset.pattern.permute.xlu0 3
      %1699 = vperm.xlu0 %1698, %v370
      %v1700 = vpop.permute.xlu0 %1699
      %1702 = vset.pattern.permute.xlu0 3
      %1703 = vperm.xlu0 %1702, %v371
      %v1704 = vpop.permute.xlu0 %1703
      %1706 = vset.pattern.permute.xlu0 3
      %1707 = vperm.xlu0 %1706, %v372
      %v1708 = vpop.permute.xlu0 %1707
      %1710 = vset.pattern.permute.xlu0 3
      %1711 = vperm.xlu0 %1710, %v373
      %v1712 = vpop.permute.xlu0 %1711
      %1714 = vset.pattern.permute.xlu0 3
      %1715 = vperm.xlu0 %1714, %v374
      %v1716 = vpop.permute.xlu0 %1715
      %1718 = vset.pattern.permute.xlu0 3
      %1719 = vperm.xlu0 %1718, %v375
      %v1720 = vpop.permute.xlu0 %1719
      %1722 = vset.pattern.permute.xlu0 3
      %1723 = vperm.xlu0 %1722, %v376
      %v1724 = vpop.permute.xlu0 %1723
      %1726 = vset.pattern.permute.xlu0 3
      %1727 = vperm.xlu0 %1726, %v377
      %v1728 = vpop.permute.xlu0 %1727
      %1730 = vset.pattern.permute.xlu0 3
      %1731 = vperm.xlu0 %1730, %v378
      %v1732 = vpop.permute.xlu0 %1731
      %1734 = vset.pattern.permute.xlu0 3
      %1735 = vperm.xlu0 %1734, %v379
      %v1736 = vpop.permute.xlu0 %1735
      %1738 = vset.pattern.permute.xlu0 3
      %1739 = vperm.xlu0 %1738, %v380
      %v1740 = vpop.permute.xlu0 %1739
      %1742 = vset.pattern.permute.xlu0 3
      %1743 = vperm.xlu0 %1742, %v381
      %v1744 = vpop.permute.xlu0 %1743
      %1746 = vset.pattern.permute.xlu0 3
      %1747 = vperm.xlu0 %1746, %v382
      %v1748 = vpop.permute.xlu0 %1747
      %1750 = vset.pattern.permute.xlu0 3
      %1751 = vperm.xlu0 %1750, %v383
      %v1752 = vpop.permute.xlu0 %1751
      %1754 = vset.pattern.permute.xlu0 3
      %1755 = vperm.xlu0 %1754, %v384
      %v1756 = vpop.permute.xlu0 %1755
      %1758 = vset.pattern.permute.xlu0 3
      %1759 = vperm.xlu0 %1758, %v385
      %v1760 = vpop.permute.xlu0 %1759
      %1762 = vset.pattern.permute.xlu0 3
      %1763 = vperm.xlu0 %1762, %v386
      %v1764 = vpop.permute.xlu0 %1763
      %1766 = vset.pattern.permute.xlu0 3
      %1767 = vperm.xlu0 %1766, %v387
      %v1768 = vpop.permute.xlu0 %1767
      %1770 = vset.pattern.permute.xlu0 3
      %1771 = vperm.xlu0 %1770, %v388
      %v1772 = vpop.permute.xlu0 %1771
      %1774 = vset.pattern.permute.xlu0 3
      %1775 = vperm.xlu0 %1774, %v389
      %v1776 = vpop.permute.xlu0 %1775
      %1778 = vset.pattern.permute.xlu0 3
      %1779 = vperm.xlu0 %1778, %v390
      %v1780 = vpop.permute.xlu0 %1779
      %1782 = vset.pattern.permute.xlu0 3
      %1783 = vperm.xlu0 %1782, %v391
      %v1784 = vpop.permute.xlu0 %1783
      %1786 = vset.pattern.permute.xlu0 3
      %1787 = vperm.xlu0 %1786, %v392
      %v1788 = vpop.permute.xlu0 %1787
      %1790 = vset.pattern.permute.xlu0 3
      %1791 = vperm.xlu0 %1790, %v393
      %v1792 = vpop.permute.xlu0 %1791
      %1794 = vset.pattern.permute.xlu0 3
      %1795 = vperm.xlu0 %1794, %v394
      %v1796 = vpop.permute.xlu0 %1795
      %1798 = vset.pattern.permute.xlu0 3
      %1799 = vperm.xlu0 %1798, %v395
      %v1800 = vpop.permute.xlu0 %1799
      %1802 = vset.pattern.permute.xlu0 3
      %1803 = vperm.xlu0 %1802, %v396
      %v1804 = vpop.permute.xlu0 %1803
      %1806 = vset.pattern.permute.xlu0 3
      %1807 = vperm.xlu0 %1806, %v397
      %v1808 = vpop.permute.xlu0 %1807
      %1810 = vset.pattern.permute.xlu0 3
      %1811 = vperm.xlu0 %1810, %v398
      %v1812 = vpop.permute.xlu0 %1811
      %1814 = vset.pattern.permute.xlu0 3
      %1815 = vperm.xlu0 %1814, %v399
      %v1816 = vpop.permute.xlu0 %1815
      %1818 = vset.pattern.permute.xlu0 3
      %1819 = vperm.xlu0 %1818, %v400
      %v1820 = vpop.permute.xlu0 %1819
      %v1822 = vlaneseq
      %v1823 = vshrl.u32 %v1822, 7
      %v1824 = vsub.s32 3, %v1823
      %v1825 = vrot.slane %v401, %v1824
      %v1826 = vmul.f32 %v1568, %v1825
      %v1827 = vmul.f32 %v1572, %v1825
      %v1828 = vmul.f32 %v1576, %v1825
      %v1829 = vmul.f32 %v1580, %v1825
      %v1830 = vmul.f32 %v1584, %v1825
      %v1831 = vmul.f32 %v1588, %v1825
      %v1832 = vmul.f32 %v1592, %v1825
      %v1833 = vmul.f32 %v1596, %v1825
      %v1834 = vmul.f32 %v1600, %v1825
      %v1835 = vmul.f32 %v1604, %v1825
      %v1836 = vmul.f32 %v1608, %v1825
      %v1837 = vmul.f32 %v1612, %v1825
      %v1838 = vmul.f32 %v1616, %v1825
      %v1839 = vmul.f32 %v1620, %v1825
      %v1840 = vmul.f32 %v1624, %v1825
      %v1841 = vmul.f32 %v1628, %v1825
      %v1842 = vmul.f32 %v1632, %v1825
      %v1843 = vmul.f32 %v1636, %v1825
      %v1844 = vmul.f32 %v1640, %v1825
      %v1845 = vmul.f32 %v1644, %v1825
      %v1846 = vmul.f32 %v1648, %v1825
      %v1847 = vmul.f32 %v1652, %v1825
      %v1848 = vmul.f32 %v1656, %v1825
      %v1849 = vmul.f32 %v1660, %v1825
      %v1850 = vmul.f32 %v1664, %v1825
      %v1851 = vmul.f32 %v1668, %v1825
      %v1852 = vmul.f32 %v1672, %v1825
      %v1853 = vmul.f32 %v1676, %v1825
      %v1854 = vmul.f32 %v1680, %v1825
      %v1855 = vmul.f32 %v1684, %v1825
      %v1856 = vmul.f32 %v1688, %v1825
      %v1857 = vmul.f32 %v1692, %v1825
      %v1858 = vmul.f32 %v1696, %v1825
      %v1859 = vmul.f32 %v1700, %v1825
      %v1860 = vmul.f32 %v1704, %v1825
      %v1861 = vmul.f32 %v1708, %v1825
      %v1862 = vmul.f32 %v1712, %v1825
      %v1863 = vmul.f32 %v1716, %v1825
      %v1864 = vmul.f32 %v1720, %v1825
      %v1865 = vmul.f32 %v1724, %v1825
      %v1866 = vmul.f32 %v1728, %v1825
      %v1867 = vmul.f32 %v1732, %v1825
      %v1868 = vmul.f32 %v1736, %v1825
      %v1869 = vmul.f32 %v1740, %v1825
      %v1870 = vmul.f32 %v1744, %v1825
      %v1871 = vmul.f32 %v1748, %v1825
      %v1872 = vmul.f32 %v1752, %v1825
      %v1873 = vmul.f32 %v1756, %v1825
      %v1874 = vmul.f32 %v1760, %v1825
      %v1875 = vmul.f32 %v1764, %v1825
      %v1876 = vmul.f32 %v1768, %v1825
      %v1877 = vmul.f32 %v1772, %v1825
      %v1878 = vmul.f32 %v1776, %v1825
      %v1879 = vmul.f32 %v1780, %v1825
      %v1880 = vmul.f32 %v1784, %v1825
      %v1881 = vmul.f32 %v1788, %v1825
      %v1882 = vmul.f32 %v1792, %v1825
      %v1883 = vmul.f32 %v1796, %v1825
      %v1884 = vmul.f32 %v1800, %v1825
      %v1885 = vmul.f32 %v1804, %v1825
      %v1886 = vmul.f32 %v1808, %v1825
      %v1887 = vmul.f32 %v1812, %v1825
      %v1888 = vmul.f32 %v1816, %v1825
      %v1889 = vmul.f32 %v1820, %v1825
      %v1890 = vadd.f32 %v1502, %v1826
      %v1891 = vadd.f32 %v1503, %v1827
      %v1892 = vadd.f32 %v1504, %v1828
      %v1893 = vadd.f32 %v1505, %v1829
      %v1894 = vadd.f32 %v1506, %v1830
      %v1895 = vadd.f32 %v1507, %v1831
      %v1896 = vadd.f32 %v1508, %v1832
      %v1897 = vadd.f32 %v1509, %v1833
      %v1898 = vadd.f32 %v1510, %v1834
      %v1899 = vadd.f32 %v1511, %v1835
      %v1900 = vadd.f32 %v1512, %v1836
      %v1901 = vadd.f32 %v1513, %v1837
      %v1902 = vadd.f32 %v1514, %v1838
      %v1903 = vadd.f32 %v1515, %v1839
      %v1904 = vadd.f32 %v1516, %v1840
      %v1905 = vadd.f32 %v1517, %v1841
      %v1906 = vadd.f32 %v1518, %v1842
      %v1907 = vadd.f32 %v1519, %v1843
      %v1908 = vadd.f32 %v1520, %v1844
      %v1909 = vadd.f32 %v1521, %v1845
      %v1910 = vadd.f32 %v1522, %v1846
      %v1911 = vadd.f32 %v1523, %v1847
      %v1912 = vadd.f32 %v1524, %v1848
      %v1913 = vadd.f32 %v1525, %v1849
      %v1914 = vadd.f32 %v1526, %v1850
      %v1915 = vadd.f32 %v1527, %v1851
      %v1916 = vadd.f32 %v1528, %v1852
      %v1917 = vadd.f32 %v1529, %v1853
      %v1918 = vadd.f32 %v1530, %v1854
      %v1919 = vadd.f32 %v1531, %v1855
      %v1920 = vadd.f32 %v1532, %v1856
      %v1921 = vadd.f32 %v1533, %v1857
      %v1922 = vadd.f32 %v1534, %v1858
      %v1923 = vadd.f32 %v1535, %v1859
      %v1924 = vadd.f32 %v1536, %v1860
      %v1925 = vadd.f32 %v1537, %v1861
      %v1926 = vadd.f32 %v1538, %v1862
      %v1927 = vadd.f32 %v1539, %v1863
      %v1928 = vadd.f32 %v1540, %v1864
      %v1929 = vadd.f32 %v1541, %v1865
      %v1930 = vadd.f32 %v1542, %v1866
      %v1931 = vadd.f32 %v1543, %v1867
      %v1932 = vadd.f32 %v1544, %v1868
      %v1933 = vadd.f32 %v1545, %v1869
      %v1934 = vadd.f32 %v1546, %v1870
      %v1935 = vadd.f32 %v1547, %v1871
      %v1936 = vadd.f32 %v1548, %v1872
      %v1937 = vadd.f32 %v1549, %v1873
      %v1938 = vadd.f32 %v1550, %v1874
      %v1939 = vadd.f32 %v1551, %v1875
      %v1940 = vadd.f32 %v1552, %v1876
      %v1941 = vadd.f32 %v1553, %v1877
      %v1942 = vadd.f32 %v1554, %v1878
      %v1943 = vadd.f32 %v1555, %v1879
      %v1944 = vadd.f32 %v1556, %v1880
      %v1945 = vadd.f32 %v1557, %v1881
      %v1946 = vadd.f32 %v1558, %v1882
      %v1947 = vadd.f32 %v1559, %v1883
      %v1948 = vadd.f32 %v1560, %v1884
      %v1949 = vadd.f32 %v1561, %v1885
      %v1950 = vadd.f32 %v1562, %v1886
      %v1951 = vadd.f32 %v1563, %v1887
      %v1952 = vadd.f32 %v1564, %v1888
      %v1953 = vadd.f32 %v1565, %v1889
      %1954 = vset.pattern.permute.xlu0 4
      %1955 = vperm.xlu0 %1954, %v337
      %v1956 = vpop.permute.xlu0 %1955
      %1958 = vset.pattern.permute.xlu0 4
      %1959 = vperm.xlu0 %1958, %v338
      %v1960 = vpop.permute.xlu0 %1959
      %1962 = vset.pattern.permute.xlu0 4
      %1963 = vperm.xlu0 %1962, %v339
      %v1964 = vpop.permute.xlu0 %1963
      %1966 = vset.pattern.permute.xlu0 4
      %1967 = vperm.xlu0 %1966, %v340
      %v1968 = vpop.permute.xlu0 %1967
      %1970 = vset.pattern.permute.xlu0 4
      %1971 = vperm.xlu0 %1970, %v341
      %v1972 = vpop.permute.xlu0 %1971
      %1974 = vset.pattern.permute.xlu0 4
      %1975 = vperm.xlu0 %1974, %v342
      %v1976 = vpop.permute.xlu0 %1975
      %1978 = vset.pattern.permute.xlu0 4
      %1979 = vperm.xlu0 %1978, %v343
      %v1980 = vpop.permute.xlu0 %1979
      %1982 = vset.pattern.permute.xlu0 4
      %1983 = vperm.xlu0 %1982, %v344
      %v1984 = vpop.permute.xlu0 %1983
      %1986 = vset.pattern.permute.xlu0 4
      %1987 = vperm.xlu0 %1986, %v345
      %v1988 = vpop.permute.xlu0 %1987
      %1990 = vset.pattern.permute.xlu0 4
      %1991 = vperm.xlu0 %1990, %v346
      %v1992 = vpop.permute.xlu0 %1991
      %1994 = vset.pattern.permute.xlu0 4
      %1995 = vperm.xlu0 %1994, %v347
      %v1996 = vpop.permute.xlu0 %1995
      %1998 = vset.pattern.permute.xlu0 4
      %1999 = vperm.xlu0 %1998, %v348
      %v2000 = vpop.permute.xlu0 %1999
      %2002 = vset.pattern.permute.xlu0 4
      %2003 = vperm.xlu0 %2002, %v349
      %v2004 = vpop.permute.xlu0 %2003
      %2006 = vset.pattern.permute.xlu0 4
      %2007 = vperm.xlu0 %2006, %v350
      %v2008 = vpop.permute.xlu0 %2007
      %2010 = vset.pattern.permute.xlu0 4
      %2011 = vperm.xlu0 %2010, %v351
      %v2012 = vpop.permute.xlu0 %2011
      %2014 = vset.pattern.permute.xlu0 4
      %2015 = vperm.xlu0 %2014, %v352
      %v2016 = vpop.permute.xlu0 %2015
      %2018 = vset.pattern.permute.xlu0 4
      %2019 = vperm.xlu0 %2018, %v353
      %v2020 = vpop.permute.xlu0 %2019
      %2022 = vset.pattern.permute.xlu0 4
      %2023 = vperm.xlu0 %2022, %v354
      %v2024 = vpop.permute.xlu0 %2023
      %2026 = vset.pattern.permute.xlu0 4
      %2027 = vperm.xlu0 %2026, %v355
      %v2028 = vpop.permute.xlu0 %2027
      %2030 = vset.pattern.permute.xlu0 4
      %2031 = vperm.xlu0 %2030, %v356
      %v2032 = vpop.permute.xlu0 %2031
      %2034 = vset.pattern.permute.xlu0 4
      %2035 = vperm.xlu0 %2034, %v357
      %v2036 = vpop.permute.xlu0 %2035
      %2038 = vset.pattern.permute.xlu0 4
      %2039 = vperm.xlu0 %2038, %v358
      %v2040 = vpop.permute.xlu0 %2039
      %2042 = vset.pattern.permute.xlu0 4
      %2043 = vperm.xlu0 %2042, %v359
      %v2044 = vpop.permute.xlu0 %2043
      %2046 = vset.pattern.permute.xlu0 4
      %2047 = vperm.xlu0 %2046, %v360
      %v2048 = vpop.permute.xlu0 %2047
      %2050 = vset.pattern.permute.xlu0 4
      %2051 = vperm.xlu0 %2050, %v361
      %v2052 = vpop.permute.xlu0 %2051
      %2054 = vset.pattern.permute.xlu0 4
      %2055 = vperm.xlu0 %2054, %v362
      %v2056 = vpop.permute.xlu0 %2055
      %2058 = vset.pattern.permute.xlu0 4
      %2059 = vperm.xlu0 %2058, %v363
      %v2060 = vpop.permute.xlu0 %2059
      %2062 = vset.pattern.permute.xlu0 4
      %2063 = vperm.xlu0 %2062, %v364
      %v2064 = vpop.permute.xlu0 %2063
      %2066 = vset.pattern.permute.xlu0 4
      %2067 = vperm.xlu0 %2066, %v365
      %v2068 = vpop.permute.xlu0 %2067
      %2070 = vset.pattern.permute.xlu0 4
      %2071 = vperm.xlu0 %2070, %v366
      %v2072 = vpop.permute.xlu0 %2071
      %2074 = vset.pattern.permute.xlu0 4
      %2075 = vperm.xlu0 %2074, %v367
      %v2076 = vpop.permute.xlu0 %2075
      %2078 = vset.pattern.permute.xlu0 4
      %2079 = vperm.xlu0 %2078, %v368
      %v2080 = vpop.permute.xlu0 %2079
      %2082 = vset.pattern.permute.xlu0 4
      %2083 = vperm.xlu0 %2082, %v369
      %v2084 = vpop.permute.xlu0 %2083
      %2086 = vset.pattern.permute.xlu0 4
      %2087 = vperm.xlu0 %2086, %v370
      %v2088 = vpop.permute.xlu0 %2087
      %2090 = vset.pattern.permute.xlu0 4
      %2091 = vperm.xlu0 %2090, %v371
      %v2092 = vpop.permute.xlu0 %2091
      %2094 = vset.pattern.permute.xlu0 4
      %2095 = vperm.xlu0 %2094, %v372
      %v2096 = vpop.permute.xlu0 %2095
      %2098 = vset.pattern.permute.xlu0 4
      %2099 = vperm.xlu0 %2098, %v373
      %v2100 = vpop.permute.xlu0 %2099
      %2102 = vset.pattern.permute.xlu0 4
      %2103 = vperm.xlu0 %2102, %v374
      %v2104 = vpop.permute.xlu0 %2103
      %2106 = vset.pattern.permute.xlu0 4
      %2107 = vperm.xlu0 %2106, %v375
      %v2108 = vpop.permute.xlu0 %2107
      %2110 = vset.pattern.permute.xlu0 4
      %2111 = vperm.xlu0 %2110, %v376
      %v2112 = vpop.permute.xlu0 %2111
      %2114 = vset.pattern.permute.xlu0 4
      %2115 = vperm.xlu0 %2114, %v377
      %v2116 = vpop.permute.xlu0 %2115
      %2118 = vset.pattern.permute.xlu0 4
      %2119 = vperm.xlu0 %2118, %v378
      %v2120 = vpop.permute.xlu0 %2119
      %2122 = vset.pattern.permute.xlu0 4
      %2123 = vperm.xlu0 %2122, %v379
      %v2124 = vpop.permute.xlu0 %2123
      %2126 = vset.pattern.permute.xlu0 4
      %2127 = vperm.xlu0 %2126, %v380
      %v2128 = vpop.permute.xlu0 %2127
      %2130 = vset.pattern.permute.xlu0 4
      %2131 = vperm.xlu0 %2130, %v381
      %v2132 = vpop.permute.xlu0 %2131
      %2134 = vset.pattern.permute.xlu0 4
      %2135 = vperm.xlu0 %2134, %v382
      %v2136 = vpop.permute.xlu0 %2135
      %2138 = vset.pattern.permute.xlu0 4
      %2139 = vperm.xlu0 %2138, %v383
      %v2140 = vpop.permute.xlu0 %2139
      %2142 = vset.pattern.permute.xlu0 4
      %2143 = vperm.xlu0 %2142, %v384
      %v2144 = vpop.permute.xlu0 %2143
      %2146 = vset.pattern.permute.xlu0 4
      %2147 = vperm.xlu0 %2146, %v385
      %v2148 = vpop.permute.xlu0 %2147
      %2150 = vset.pattern.permute.xlu0 4
      %2151 = vperm.xlu0 %2150, %v386
      %v2152 = vpop.permute.xlu0 %2151
      %2154 = vset.pattern.permute.xlu0 4
      %2155 = vperm.xlu0 %2154, %v387
      %v2156 = vpop.permute.xlu0 %2155
      %2158 = vset.pattern.permute.xlu0 4
      %2159 = vperm.xlu0 %2158, %v388
      %v2160 = vpop.permute.xlu0 %2159
      %2162 = vset.pattern.permute.xlu0 4
      %2163 = vperm.xlu0 %2162, %v389
      %v2164 = vpop.permute.xlu0 %2163
      %2166 = vset.pattern.permute.xlu0 4
      %2167 = vperm.xlu0 %2166, %v390
      %v2168 = vpop.permute.xlu0 %2167
      %2170 = vset.pattern.permute.xlu0 4
      %2171 = vperm.xlu0 %2170, %v391
      %v2172 = vpop.permute.xlu0 %2171
      %2174 = vset.pattern.permute.xlu0 4
      %2175 = vperm.xlu0 %2174, %v392
      %v2176 = vpop.permute.xlu0 %2175
      %2178 = vset.pattern.permute.xlu0 4
      %2179 = vperm.xlu0 %2178, %v393
      %v2180 = vpop.permute.xlu0 %2179
      %2182 = vset.pattern.permute.xlu0 4
      %2183 = vperm.xlu0 %2182, %v394
      %v2184 = vpop.permute.xlu0 %2183
      %2186 = vset.pattern.permute.xlu0 4
      %2187 = vperm.xlu0 %2186, %v395
      %v2188 = vpop.permute.xlu0 %2187
      %2190 = vset.pattern.permute.xlu0 4
      %2191 = vperm.xlu0 %2190, %v396
      %v2192 = vpop.permute.xlu0 %2191
      %2194 = vset.pattern.permute.xlu0 4
      %2195 = vperm.xlu0 %2194, %v397
      %v2196 = vpop.permute.xlu0 %2195
      %2198 = vset.pattern.permute.xlu0 4
      %2199 = vperm.xlu0 %2198, %v398
      %v2200 = vpop.permute.xlu0 %2199
      %2202 = vset.pattern.permute.xlu0 4
      %2203 = vperm.xlu0 %2202, %v399
      %v2204 = vpop.permute.xlu0 %2203
      %2206 = vset.pattern.permute.xlu0 4
      %2207 = vperm.xlu0 %2206, %v400
      %v2208 = vpop.permute.xlu0 %2207
      %v2210 = vlaneseq
      %v2211 = vshrl.u32 %v2210, 7
      %v2212 = vsub.s32 4, %v2211
      %v2213 = vrot.slane %v401, %v2212
      %v2214 = vmul.f32 %v1956, %v2213
      %v2215 = vmul.f32 %v1960, %v2213
      %v2216 = vmul.f32 %v1964, %v2213
      %v2217 = vmul.f32 %v1968, %v2213
      %v2218 = vmul.f32 %v1972, %v2213
      %v2219 = vmul.f32 %v1976, %v2213
      %v2220 = vmul.f32 %v1980, %v2213
      %v2221 = vmul.f32 %v1984, %v2213
      %v2222 = vmul.f32 %v1988, %v2213
      %v2223 = vmul.f32 %v1992, %v2213
      %v2224 = vmul.f32 %v1996, %v2213
      %v2225 = vmul.f32 %v2000, %v2213
      %v2226 = vmul.f32 %v2004, %v2213
      %v2227 = vmul.f32 %v2008, %v2213
      %v2228 = vmul.f32 %v2012, %v2213
      %v2229 = vmul.f32 %v2016, %v2213
      %v2230 = vmul.f32 %v2020, %v2213
      %v2231 = vmul.f32 %v2024, %v2213
      %v2232 = vmul.f32 %v2028, %v2213
      %v2233 = vmul.f32 %v2032, %v2213
      %v2234 = vmul.f32 %v2036, %v2213
      %v2235 = vmul.f32 %v2040, %v2213
      %v2236 = vmul.f32 %v2044, %v2213
      %v2237 = vmul.f32 %v2048, %v2213
      %v2238 = vmul.f32 %v2052, %v2213
      %v2239 = vmul.f32 %v2056, %v2213
      %v2240 = vmul.f32 %v2060, %v2213
      %v2241 = vmul.f32 %v2064, %v2213
      %v2242 = vmul.f32 %v2068, %v2213
      %v2243 = vmul.f32 %v2072, %v2213
      %v2244 = vmul.f32 %v2076, %v2213
      %v2245 = vmul.f32 %v2080, %v2213
      %v2246 = vmul.f32 %v2084, %v2213
      %v2247 = vmul.f32 %v2088, %v2213
      %v2248 = vmul.f32 %v2092, %v2213
      %v2249 = vmul.f32 %v2096, %v2213
      %v2250 = vmul.f32 %v2100, %v2213
      %v2251 = vmul.f32 %v2104, %v2213
      %v2252 = vmul.f32 %v2108, %v2213
      %v2253 = vmul.f32 %v2112, %v2213
      %v2254 = vmul.f32 %v2116, %v2213
      %v2255 = vmul.f32 %v2120, %v2213
      %v2256 = vmul.f32 %v2124, %v2213
      %v2257 = vmul.f32 %v2128, %v2213
      %v2258 = vmul.f32 %v2132, %v2213
      %v2259 = vmul.f32 %v2136, %v2213
      %v2260 = vmul.f32 %v2140, %v2213
      %v2261 = vmul.f32 %v2144, %v2213
      %v2262 = vmul.f32 %v2148, %v2213
      %v2263 = vmul.f32 %v2152, %v2213
      %v2264 = vmul.f32 %v2156, %v2213
      %v2265 = vmul.f32 %v2160, %v2213
      %v2266 = vmul.f32 %v2164, %v2213
      %v2267 = vmul.f32 %v2168, %v2213
      %v2268 = vmul.f32 %v2172, %v2213
      %v2269 = vmul.f32 %v2176, %v2213
      %v2270 = vmul.f32 %v2180, %v2213
      %v2271 = vmul.f32 %v2184, %v2213
      %v2272 = vmul.f32 %v2188, %v2213
      %v2273 = vmul.f32 %v2192, %v2213
      %v2274 = vmul.f32 %v2196, %v2213
      %v2275 = vmul.f32 %v2200, %v2213
      %v2276 = vmul.f32 %v2204, %v2213
      %v2277 = vmul.f32 %v2208, %v2213
      %v2278 = vadd.f32 %v1890, %v2214
      %v2279 = vadd.f32 %v1891, %v2215
      %v2280 = vadd.f32 %v1892, %v2216
      %v2281 = vadd.f32 %v1893, %v2217
      %v2282 = vadd.f32 %v1894, %v2218
      %v2283 = vadd.f32 %v1895, %v2219
      %v2284 = vadd.f32 %v1896, %v2220
      %v2285 = vadd.f32 %v1897, %v2221
      %v2286 = vadd.f32 %v1898, %v2222
      %v2287 = vadd.f32 %v1899, %v2223
      %v2288 = vadd.f32 %v1900, %v2224
      %v2289 = vadd.f32 %v1901, %v2225
      %v2290 = vadd.f32 %v1902, %v2226
      %v2291 = vadd.f32 %v1903, %v2227
      %v2292 = vadd.f32 %v1904, %v2228
      %v2293 = vadd.f32 %v1905, %v2229
      %v2294 = vadd.f32 %v1906, %v2230
      %v2295 = vadd.f32 %v1907, %v2231
      %v2296 = vadd.f32 %v1908, %v2232
      %v2297 = vadd.f32 %v1909, %v2233
      %v2298 = vadd.f32 %v1910, %v2234
      %v2299 = vadd.f32 %v1911, %v2235
      %v2300 = vadd.f32 %v1912, %v2236
      %v2301 = vadd.f32 %v1913, %v2237
      %v2302 = vadd.f32 %v1914, %v2238
      %v2303 = vadd.f32 %v1915, %v2239
      %v2304 = vadd.f32 %v1916, %v2240
      %v2305 = vadd.f32 %v1917, %v2241
      %v2306 = vadd.f32 %v1918, %v2242
      %v2307 = vadd.f32 %v1919, %v2243
      %v2308 = vadd.f32 %v1920, %v2244
      %v2309 = vadd.f32 %v1921, %v2245
      %v2310 = vadd.f32 %v1922, %v2246
      %v2311 = vadd.f32 %v1923, %v2247
      %v2312 = vadd.f32 %v1924, %v2248
      %v2313 = vadd.f32 %v1925, %v2249
      %v2314 = vadd.f32 %v1926, %v2250
      %v2315 = vadd.f32 %v1927, %v2251
      %v2316 = vadd.f32 %v1928, %v2252
      %v2317 = vadd.f32 %v1929, %v2253
      %v2318 = vadd.f32 %v1930, %v2254
      %v2319 = vadd.f32 %v1931, %v2255
      %v2320 = vadd.f32 %v1932, %v2256
      %v2321 = vadd.f32 %v1933, %v2257
      %v2322 = vadd.f32 %v1934, %v2258
      %v2323 = vadd.f32 %v1935, %v2259
      %v2324 = vadd.f32 %v1936, %v2260
      %v2325 = vadd.f32 %v1937, %v2261
      %v2326 = vadd.f32 %v1938, %v2262
      %v2327 = vadd.f32 %v1939, %v2263
      %v2328 = vadd.f32 %v1940, %v2264
      %v2329 = vadd.f32 %v1941, %v2265
      %v2330 = vadd.f32 %v1942, %v2266
      %v2331 = vadd.f32 %v1943, %v2267
      %v2332 = vadd.f32 %v1944, %v2268
      %v2333 = vadd.f32 %v1945, %v2269
      %v2334 = vadd.f32 %v1946, %v2270
      %v2335 = vadd.f32 %v1947, %v2271
      %v2336 = vadd.f32 %v1948, %v2272
      %v2337 = vadd.f32 %v1949, %v2273
      %v2338 = vadd.f32 %v1950, %v2274
      %v2339 = vadd.f32 %v1951, %v2275
      %v2340 = vadd.f32 %v1952, %v2276
      %v2341 = vadd.f32 %v1953, %v2277
      %v2342 = vld [vmem:[%s2] sm:$0x1]
      %v2344 = vlaneseq
      %v2345 = vshrl.u32 %v2344, 7
      %v2346 = vsub.s32 0, %v2345
      %v2347 = vrot.slane %v2342, %v2346
      %v2349 = vadd.f32 %v2278, %v2347
      %v2350 = vadd.f32 %v2279, %v2347
      %v2351 = vadd.f32 %v2280, %v2347
      %v2352 = vadd.f32 %v2281, %v2347
      %v2353 = vadd.f32 %v2282, %v2347
      %v2354 = vadd.f32 %v2283, %v2347
      %v2355 = vadd.f32 %v2284, %v2347
      %v2356 = vadd.f32 %v2285, %v2347
      %v2357 = vadd.f32 %v2286, %v2347
      %v2358 = vadd.f32 %v2287, %v2347
      %v2359 = vadd.f32 %v2288, %v2347
      %v2360 = vadd.f32 %v2289, %v2347
      %v2361 = vadd.f32 %v2290, %v2347
      %v2362 = vadd.f32 %v2291, %v2347
      %v2363 = vadd.f32 %v2292, %v2347
      %v2364 = vadd.f32 %v2293, %v2347
      %v2365 = vadd.f32 %v2294, %v2347
      %v2366 = vadd.f32 %v2295, %v2347
      %v2367 = vadd.f32 %v2296, %v2347
      %v2368 = vadd.f32 %v2297, %v2347
      %v2369 = vadd.f32 %v2298, %v2347
      %v2370 = vadd.f32 %v2299, %v2347
      %v2371 = vadd.f32 %v2300, %v2347
      %v2372 = vadd.f32 %v2301, %v2347
      %v2373 = vadd.f32 %v2302, %v2347
      %v2374 = vadd.f32 %v2303, %v2347
      %v2375 = vadd.f32 %v2304, %v2347
      %v2376 = vadd.f32 %v2305, %v2347
      %v2377 = vadd.f32 %v2306, %v2347
      %v2378 = vadd.f32 %v2307, %v2347
      %v2379 = vadd.f32 %v2308, %v2347
      %v2380 = vadd.f32 %v2309, %v2347
      %v2381 = vadd.f32 %v2310, %v2347
      %v2382 = vadd.f32 %v2311, %v2347
      %v2383 = vadd.f32 %v2312, %v2347
      %v2384 = vadd.f32 %v2313, %v2347
      %v2385 = vadd.f32 %v2314, %v2347
      %v2386 = vadd.f32 %v2315, %v2347
      %v2387 = vadd.f32 %v2316, %v2347
      %v2388 = vadd.f32 %v2317, %v2347
      %v2389 = vadd.f32 %v2318, %v2347
      %v2390 = vadd.f32 %v2319, %v2347
      %v2391 = vadd.f32 %v2320, %v2347
      %v2392 = vadd.f32 %v2321, %v2347
      %v2393 = vadd.f32 %v2322, %v2347
      %v2394 = vadd.f32 %v2323, %v2347
      %v2395 = vadd.f32 %v2324, %v2347
      %v2396 = vadd.f32 %v2325, %v2347
      %v2397 = vadd.f32 %v2326, %v2347
      %v2398 = vadd.f32 %v2327, %v2347
      %v2399 = vadd.f32 %v2328, %v2347
      %v2400 = vadd.f32 %v2329, %v2347
      %v2401 = vadd.f32 %v2330, %v2347
      %v2402 = vadd.f32 %v2331, %v2347
      %v2403 = vadd.f32 %v2332, %v2347
      %v2404 = vadd.f32 %v2333, %v2347
      %v2405 = vadd.f32 %v2334, %v2347
      %v2406 = vadd.f32 %v2335, %v2347
      %v2407 = vadd.f32 %v2336, %v2347
      %v2408 = vadd.f32 %v2337, %v2347
      %v2409 = vadd.f32 %v2338, %v2347
      %v2410 = vadd.f32 %v2339, %v2347
      %v2411 = vadd.f32 %v2340, %v2347
      %v2412 = vadd.f32 %v2341, %v2347
      %v2413 = vmax.f32 %v2349, 0.0
      %v2414 = vmax.f32 %v2350, 0.0
      %v2415 = vmax.f32 %v2351, 0.0
      %v2416 = vmax.f32 %v2352, 0.0
      %v2417 = vmax.f32 %v2353, 0.0
      %v2418 = vmax.f32 %v2354, 0.0
      %v2419 = vmax.f32 %v2355, 0.0
      %v2420 = vmax.f32 %v2356, 0.0
      %v2421 = vmax.f32 %v2357, 0.0
      %v2422 = vmax.f32 %v2358, 0.0
      %v2423 = vmax.f32 %v2359, 0.0
      %v2424 = vmax.f32 %v2360, 0.0
      %v2425 = vmax.f32 %v2361, 0.0
      %v2426 = vmax.f32 %v2362, 0.0
      %v2427 = vmax.f32 %v2363, 0.0
      %v2428 = vmax.f32 %v2364, 0.0
      %v2429 = vmax.f32 %v2365, 0.0
      %v2430 = vmax.f32 %v2366, 0.0
      %v2431 = vmax.f32 %v2367, 0.0
      %v2432 = vmax.f32 %v2368, 0.0
      %v2433 = vmax.f32 %v2369, 0.0
      %v2434 = vmax.f32 %v2370, 0.0
      %v2435 = vmax.f32 %v2371, 0.0
      %v2436 = vmax.f32 %v2372, 0.0
      %v2437 = vmax.f32 %v2373, 0.0
      %v2438 = vmax.f32 %v2374, 0.0
      %v2439 = vmax.f32 %v2375, 0.0
      %v2440 = vmax.f32 %v2376, 0.0
      %v2441 = vmax.f32 %v2377, 0.0
      %v2442 = vmax.f32 %v2378, 0.0
      %v2443 = vmax.f32 %v2379, 0.0
      %v2444 = vmax.f32 %v2380, 0.0
      %v2445 = vmax.f32 %v2381, 0.0
      %v2446 = vmax.f32 %v2382, 0.0
      %v2447 = vmax.f32 %v2383, 0.0
      %v2448 = vmax.f32 %v2384, 0.0
      %v2449 = vmax.f32 %v2385, 0.0
      %v2450 = vmax.f32 %v2386, 0.0
      %v2451 = vmax.f32 %v2387, 0.0
      %v2452 = vmax.f32 %v2388, 0.0
      %v2453 = vmax.f32 %v2389, 0.0
      %v2454 = vmax.f32 %v2390, 0.0
      %v2455 = vmax.f32 %v2391, 0.0
      %v2456 = vmax.f32 %v2392, 0.0
      %v2457 = vmax.f32 %v2393, 0.0
      %v2458 = vmax.f32 %v2394, 0.0
      %v2459 = vmax.f32 %v2395, 0.0
      %v2460 = vmax.f32 %v2396, 0.0
      %v2461 = vmax.f32 %v2397, 0.0
      %v2462 = vmax.f32 %v2398, 0.0
      %v2463 = vmax.f32 %v2399, 0.0
      %v2464 = vmax.f32 %v2400, 0.0
      %v2465 = vmax.f32 %v2401, 0.0
      %v2466 = vmax.f32 %v2402, 0.0
      %v2467 = vmax.f32 %v2403, 0.0
      %v2468 = vmax.f32 %v2404, 0.0
      %v2469 = vmax.f32 %v2405, 0.0
      %v2470 = vmax.f32 %v2406, 0.0
      %v2471 = vmax.f32 %v2407, 0.0
      %v2472 = vmax.f32 %v2408, 0.0
      %v2473 = vmax.f32 %v2409, 0.0
      %v2474 = vmax.f32 %v2410, 0.0
      %v2475 = vmax.f32 %v2411, 0.0
      %v2476 = vmax.f32 %v2412, 0.0
      %v2477 = vpack.c.bf16 %v2414, %v2413
      %v2478 = vpack.c.bf16 %v2416, %v2415
      %v2479 = vpack.c.bf16 %v2418, %v2417
      %v2480 = vpack.c.bf16 %v2420, %v2419
      %v2481 = vpack.c.bf16 %v2422, %v2421
      %v2482 = vpack.c.bf16 %v2424, %v2423
      %v2483 = vpack.c.bf16 %v2426, %v2425
      %v2484 = vpack.c.bf16 %v2428, %v2427
      %v2485 = vpack.c.bf16 %v2430, %v2429
      %v2486 = vpack.c.bf16 %v2432, %v2431
      %v2487 = vpack.c.bf16 %v2434, %v2433
      %v2488 = vpack.c.bf16 %v2436, %v2435
      %v2489 = vpack.c.bf16 %v2438, %v2437
      %v2490 = vpack.c.bf16 %v2440, %v2439
      %v2491 = vpack.c.bf16 %v2442, %v2441
      %v2492 = vpack.c.bf16 %v2444, %v2443
      %v2493 = vpack.c.bf16 %v2446, %v2445
      %v2494 = vpack.c.bf16 %v2448, %v2447
      %v2495 = vpack.c.bf16 %v2450, %v2449
      %v2496 = vpack.c.bf16 %v2452, %v2451
      %v2497 = vpack.c.bf16 %v2454, %v2453
      %v2498 = vpack.c.bf16 %v2456, %v2455
      %v2499 = vpack.c.bf16 %v2458, %v2457
      %v2500 = vpack.c.bf16 %v2460, %v2459
      %v2501 = vpack.c.bf16 %v2462, %v2461
      %v2502 = vpack.c.bf16 %v2464, %v2463
      %v2503 = vpack.c.bf16 %v2466, %v2465
      %v2504 = vpack.c.bf16 %v2468, %v2467
      %v2505 = vpack.c.bf16 %v2470, %v2469
      %v2506 = vpack.c.bf16 %v2472, %v2471
      %v2507 = vpack.c.bf16 %v2474, %v2473
      %v2508 = vpack.c.bf16 %v2476, %v2475
      %v2509 = vld [vmem:[%s3] sm:$0xf]
      %v2510 = vld [vmem:[%s3 + $0x4] sm:$0xf]
      %v2511 = vld [vmem:[%s3 + $0x8] sm:$0xf]
      %v2512 = vld [vmem:[%s3 + $0xc] sm:$0xf]
      %v2513 = vld [vmem:[%s3 + $0x10] sm:$0xf]
      %v2514 = vld [vmem:[%s3 + $0x14] sm:$0xf]
      %v2515 = vld [vmem:[%s3 + $0x18] sm:$0xf]
      %v2516 = vld [vmem:[%s3 + $0x1c] sm:$0xf]
      %v2517 = vld [vmem:[%s3 + $0x20] sm:$0xf]
      %v2518 = vld [vmem:[%s3 + $0x24] sm:$0xf]
      %v2519 = vld [vmem:[%s3 + $0x28] sm:$0xf]
      %v2520 = vld [vmem:[%s3 + $0x2c] sm:$0xf]
      %v2521 = vld [vmem:[%s3 + $0x30] sm:$0xf]
      %v2522 = vld [vmem:[%s3 + $0x34] sm:$0xf]
      %v2523 = vld [vmem:[%s3 + $0x38] sm:$0xf]
      %v2524 = vld [vmem:[%s3 + $0x3c] sm:$0xf]
      %v2525 = vld [vmem:[%s4] sm:$0x1]
      %v2527 = vlaneseq
      %v2528 = vshrl.u32 %v2527, 7
      %v2529 = vsub.s32 0, %v2528
      %v2530 = vrot.slane %v2525, %v2529
      %v2548 = vunpack.c.l.b16 %v2509
      %v2549 = vunpack.c.l.b16 %v2510
      %v2550 = vunpack.c.l.b16 %v2511
      %v2551 = vunpack.c.l.b16 %v2512
      %v2552 = vunpack.c.l.b16 %v2513
      %v2553 = vunpack.c.l.b16 %v2514
      %v2554 = vunpack.c.l.b16 %v2515
      %v2555 = vunpack.c.l.b16 %v2516
      %v2556 = vunpack.c.l.b16 %v2517
      %v2557 = vunpack.c.l.b16 %v2518
      %v2558 = vunpack.c.l.b16 %v2519
      %v2559 = vunpack.c.l.b16 %v2520
      %v2560 = vunpack.c.l.b16 %v2521
      %v2561 = vunpack.c.l.b16 %v2522
      %v2562 = vunpack.c.l.b16 %v2523
      %v2563 = vunpack.c.l.b16 %v2524
      %v2564 = vpack.c.b16 %v2549, %v2548
      %v2565 = vpack.c.b16 %v2551, %v2550
      %v2566 = vpack.c.b16 %v2553, %v2552
      %v2567 = vpack.c.b16 %v2555, %v2554
      %v2568 = vpack.c.b16 %v2557, %v2556
      %v2569 = vpack.c.b16 %v2559, %v2558
      %v2570 = vpack.c.b16 %v2561, %v2560
      %v2571 = vpack.c.b16 %v2563, %v2562
      %2580 = vmatprep.subr.bf16.mxu0 0
      %2581 = vmatpush1.bf16.msra.mxu0 %v2564
      %2582 = vmatprep.subr.bf16.mxu0 0
      %2583 = vmatpush1.bf16.msra.mxu0 %v2565
      %2584 = vmatprep.subr.bf16.mxu0 0
      %2585 = vmatpush1.bf16.msra.mxu0 %v2566
      %2586 = vmatprep.subr.bf16.mxu0 0
      %2587 = vmatpush1.bf16.msra.mxu0 %v2567
      %2588 = vmatprep.subr.bf16.mxu0 0
      %2589 = vmatpush1.bf16.msra.mxu0 %v2568
      %2590 = vmatprep.subr.bf16.mxu0 0
      %2591 = vmatpush1.bf16.msra.mxu0 %v2569
      %2592 = vmatprep.subr.bf16.mxu0 0
      %2593 = vmatpush1.bf16.msra.mxu0 %v2570
      %2594 = vmatprep.subr.bf16.mxu0 0
      %2595 = vmatpush1.bf16.msra.mxu0 %v2571
      %2596 = vmatprep.subr.bf16.mxu0 0
      %2597 = vmatpush1.bf16.msra.mxu0 0
      %2598 = vmatprep.subr.bf16.mxu0 0
      %2599 = vmatpush1.bf16.msra.mxu0 0
      %2600 = vmatprep.subr.bf16.mxu0 0
      %2601 = vmatpush1.bf16.msra.mxu0 0
      %2602 = vmatprep.subr.bf16.mxu0 0
      %2603 = vmatpush1.bf16.msra.mxu0 0
      %2604 = vmatprep.subr.bf16.mxu0 0
      %2605 = vmatpush1.bf16.msra.mxu0 0
      %2606 = vmatprep.subr.bf16.mxu0 0
      %2607 = vmatpush1.bf16.msra.mxu0 0
      %2608 = vmatprep.subr.bf16.mxu0 0
      %2609 = vmatpush1.bf16.msra.mxu0 0
      %2610 = vmatprep.subr.bf16.mxu0 0
      %2611 = vmatpush1.bf16.msra.mxu0 0
      %2612 = vmatprep.mubr.bf16.mxu0 0
      %2613 = vmatmul.mubr.bf16.gmra.mrb[0].mxu0 %v2477
      %v2614 = vpop.f32.mrb[0].mxu0
      %v2615 = vadd.f32 %v2530, %v2614
      %v2616 = vpop.f32.mrb[0].mxu0
      %v2617 = vpop.f32.mrb[0].mxu0
      %v2618 = vadd.f32 %v2530, %v2617
      %v2619 = vpop.f32.mrb[0].mxu0
      %2620 = vmatprep.mubr.bf16.mxu0 0
      %2621 = vmatmul.mubr.bf16.gmra.mrb[0].mxu0 %v2478
      %v2622 = vpop.f32.mrb[0].mxu0
      %v2623 = vadd.f32 %v2530, %v2622
      %v2624 = vpop.f32.mrb[0].mxu0
      %v2625 = vpop.f32.mrb[0].mxu0
      %v2626 = vadd.f32 %v2530, %v2625
      %v2627 = vpop.f32.mrb[0].mxu0
      %2628 = vmatprep.mubr.bf16.mxu0 0
      %2629 = vmatmul.mubr.bf16.gmra.mrb[0].mxu0 %v2479
      %v2630 = vpop.f32.mrb[0].mxu0
      %v2631 = vadd.f32 %v2530, %v2630
      %v2632 = vpop.f32.mrb[0].mxu0
      %v2633 = vpop.f32.mrb[0].mxu0
      %v2634 = vadd.f32 %v2530, %v2633
      %v2635 = vpop.f32.mrb[0].mxu0
      %2636 = vmatprep.mubr.bf16.mxu0 0
      %2637 = vmatmul.mubr.bf16.gmra.mrb[0].mxu0 %v2480
      %v2638 = vpop.f32.mrb[0].mxu0
      %v2639 = vadd.f32 %v2530, %v2638
      %v2640 = vpop.f32.mrb[0].mxu0
      %v2641 = vpop.f32.mrb[0].mxu0
      %v2642 = vadd.f32 %v2530, %v2641
      %v2643 = vpop.f32.mrb[0].mxu0
      %2644 = vmatprep.mubr.bf16.mxu0 0
      %2645 = vmatmul.mubr.bf16.gmra.mrb[0].mxu0 %v2481
      %v2646 = vpop.f32.mrb[0].mxu0
      %v2647 = vadd.f32 %v2530, %v2646
      %v2648 = vpop.f32.mrb[0].mxu0
      %v2649 = vpop.f32.mrb[0].mxu0
      %v2650 = vadd.f32 %v2530, %v2649
      %v2651 = vpop.f32.mrb[0].mxu0
      %2652 = vmatprep.mubr.bf16.mxu0 0
      %2653 = vmatmul.mubr.bf16.gmra.mrb[0].mxu0 %v2482
      %v2654 = vpop.f32.mrb[0].mxu0
      %v2655 = vadd.f32 %v2530, %v2654
      %v2656 = vpop.f32.mrb[0].mxu0
      %v2657 = vpop.f32.mrb[0].mxu0
      %v2658 = vadd.f32 %v2530, %v2657
      %v2659 = vpop.f32.mrb[0].mxu0
      %2660 = vmatprep.mubr.bf16.mxu0 0
      %2661 = vmatmul.mubr.bf16.gmra.mrb[0].mxu0 %v2483
      %v2662 = vpop.f32.mrb[0].mxu0
      %v2663 = vadd.f32 %v2530, %v2662
      %v2664 = vpop.f32.mrb[0].mxu0
      %v2665 = vpop.f32.mrb[0].mxu0
      %v2666 = vadd.f32 %v2530, %v2665
      %v2667 = vpop.f32.mrb[0].mxu0
      %2668 = vmatprep.mubr.bf16.mxu0 0
      %2669 = vmatmul.mubr.bf16.gmra.mrb[0].mxu0 %v2484
      %v2670 = vpop.f32.mrb[0].mxu0
      %v2671 = vadd.f32 %v2530, %v2670
      %v2672 = vpop.f32.mrb[0].mxu0
      %v2673 = vpop.f32.mrb[0].mxu0
      %v2674 = vadd.f32 %v2530, %v2673
      %v2675 = vpop.f32.mrb[0].mxu0
      %2676 = vmatprep.mubr.bf16.mxu0 0
      %2677 = vmatmul.mubr.bf16.gmra.mrb[0].mxu0 %v2485
      %v2678 = vpop.f32.mrb[0].mxu0
      %v2679 = vadd.f32 %v2530, %v2678
      %v2680 = vpop.f32.mrb[0].mxu0
      %v2681 = vpop.f32.mrb[0].mxu0
      %v2682 = vadd.f32 %v2530, %v2681
      %v2683 = vpop.f32.mrb[0].mxu0
      %2684 = vmatprep.mubr.bf16.mxu0 0
      %2685 = vmatmul.mubr.bf16.gmra.mrb[0].mxu0 %v2486
      %v2686 = vpop.f32.mrb[0].mxu0
      %v2687 = vadd.f32 %v2530, %v2686
      %v2688 = vpop.f32.mrb[0].mxu0
      %v2689 = vpop.f32.mrb[0].mxu0
      %v2690 = vadd.f32 %v2530, %v2689
      %v2691 = vpop.f32.mrb[0].mxu0
      %2692 = vmatprep.mubr.bf16.mxu0 0
      %2693 = vmatmul.mubr.bf16.gmra.mrb[0].mxu0 %v2487
      %v2694 = vpop.f32.mrb[0].mxu0
      %v2695 = vadd.f32 %v2530, %v2694
      %v2696 = vpop.f32.mrb[0].mxu0
      %v2697 = vpop.f32.mrb[0].mxu0
      %v2698 = vadd.f32 %v2530, %v2697
      %v2699 = vpop.f32.mrb[0].mxu0
      %2700 = vmatprep.mubr.bf16.mxu0 0
      %2701 = vmatmul.mubr.bf16.gmra.mrb[0].mxu0 %v2488
      %v2702 = vpop.f32.mrb[0].mxu0
      %v2703 = vadd.f32 %v2530, %v2702
      %v2704 = vpop.f32.mrb[0].mxu0
      %v2705 = vpop.f32.mrb[0].mxu0
      %v2706 = vadd.f32 %v2530, %v2705
      %v2707 = vpop.f32.mrb[0].mxu0
      %2708 = vmatprep.mubr.bf16.mxu0 0
      %2709 = vmatmul.mubr.bf16.gmra.mrb[0].mxu0 %v2489
      %v2710 = vpop.f32.mrb[0].mxu0
      %v2711 = vadd.f32 %v2530, %v2710
      %v2712 = vpop.f32.mrb[0].mxu0
      %v2713 = vpop.f32.mrb[0].mxu0
      %v2714 = vadd.f32 %v2530, %v2713
      %v2715 = vpop.f32.mrb[0].mxu0
      %2716 = vmatprep.mubr.bf16.mxu0 0
      %2717 = vmatmul.mubr.bf16.gmra.mrb[0].mxu0 %v2490
      %v2718 = vpop.f32.mrb[0].mxu0
      %v2719 = vadd.f32 %v2530, %v2718
      %v2720 = vpop.f32.mrb[0].mxu0
      %v2721 = vpop.f32.mrb[0].mxu0
      %v2722 = vadd.f32 %v2530, %v2721
      %v2723 = vpop.f32.mrb[0].mxu0
      %2724 = vmatprep.mubr.bf16.mxu0 0
      %2725 = vmatmul.mubr.bf16.gmra.mrb[0].mxu0 %v2491
      %v2726 = vpop.f32.mrb[0].mxu0
      %v2727 = vadd.f32 %v2530, %v2726
      %v2728 = vpop.f32.mrb[0].mxu0
      %v2729 = vpop.f32.mrb[0].mxu0
      %v2730 = vadd.f32 %v2530, %v2729
      %v2731 = vpop.f32.mrb[0].mxu0
      %2732 = vmatprep.mubr.bf16.mxu0 0
      %2733 = vmatmul.mubr.bf16.gmra.mrb[0].mxu0 %v2492
      %v2734 = vpop.f32.mrb[0].mxu0
      %v2735 = vadd.f32 %v2530, %v2734
      %v2736 = vpop.f32.mrb[0].mxu0
      %v2737 = vpop.f32.mrb[0].mxu0
      %v2738 = vadd.f32 %v2530, %v2737
      %v2739 = vpop.f32.mrb[0].mxu0
      %2740 = vmatprep.mubr.bf16.mxu0 0
      %2741 = vmatmul.mubr.bf16.gmra.mrb[0].mxu0 %v2493
      %v2742 = vpop.f32.mrb[0].mxu0
      %v2743 = vadd.f32 %v2530, %v2742
      %v2744 = vpop.f32.mrb[0].mxu0
      %v2745 = vpop.f32.mrb[0].mxu0
      %v2746 = vadd.f32 %v2530, %v2745
      %v2747 = vpop.f32.mrb[0].mxu0
      %2748 = vmatprep.mubr.bf16.mxu0 0
      %2749 = vmatmul.mubr.bf16.gmra.mrb[0].mxu0 %v2494
      %v2750 = vpop.f32.mrb[0].mxu0
      %v2751 = vadd.f32 %v2530, %v2750
      %v2752 = vpop.f32.mrb[0].mxu0
      %v2753 = vpop.f32.mrb[0].mxu0
      %v2754 = vadd.f32 %v2530, %v2753
      %v2755 = vpop.f32.mrb[0].mxu0
      %2756 = vmatprep.mubr.bf16.mxu0 0
      %2757 = vmatmul.mubr.bf16.gmra.mrb[0].mxu0 %v2495
      %v2758 = vpop.f32.mrb[0].mxu0
      %v2759 = vadd.f32 %v2530, %v2758
      %v2760 = vpop.f32.mrb[0].mxu0
      %v2761 = vpop.f32.mrb[0].mxu0
      %v2762 = vadd.f32 %v2530, %v2761
      %v2763 = vpop.f32.mrb[0].mxu0
      %2764 = vmatprep.mubr.bf16.mxu0 0
      %2765 = vmatmul.mubr.bf16.gmra.mrb[0].mxu0 %v2496
      %v2766 = vpop.f32.mrb[0].mxu0
      %v2767 = vadd.f32 %v2530, %v2766
      %v2768 = vpop.f32.mrb[0].mxu0
      %v2769 = vpop.f32.mrb[0].mxu0
      %v2770 = vadd.f32 %v2530, %v2769
      %v2771 = vpop.f32.mrb[0].mxu0
      %2772 = vmatprep.mubr.bf16.mxu0 0
      %2773 = vmatmul.mubr.bf16.gmra.mrb[0].mxu0 %v2497
      %v2774 = vpop.f32.mrb[0].mxu0
      %v2775 = vadd.f32 %v2530, %v2774
      %v2776 = vpop.f32.mrb[0].mxu0
      %v2777 = vpop.f32.mrb[0].mxu0
      %v2778 = vadd.f32 %v2530, %v2777
      %v2779 = vpop.f32.mrb[0].mxu0
      %2780 = vmatprep.mubr.bf16.mxu0 0
      %2781 = vmatmul.mubr.bf16.gmra.mrb[0].mxu0 %v2498
      %v2782 = vpop.f32.mrb[0].mxu0
      %v2783 = vadd.f32 %v2530, %v2782
      %v2784 = vpop.f32.mrb[0].mxu0
      %v2785 = vpop.f32.mrb[0].mxu0
      %v2786 = vadd.f32 %v2530, %v2785
      %v2787 = vpop.f32.mrb[0].mxu0
      %2788 = vmatprep.mubr.bf16.mxu0 0
      %2789 = vmatmul.mubr.bf16.gmra.mrb[0].mxu0 %v2499
      %v2790 = vpop.f32.mrb[0].mxu0
      %v2791 = vadd.f32 %v2530, %v2790
      %v2792 = vpop.f32.mrb[0].mxu0
      %v2793 = vpop.f32.mrb[0].mxu0
      %v2794 = vadd.f32 %v2530, %v2793
      %v2795 = vpop.f32.mrb[0].mxu0
      %2796 = vmatprep.mubr.bf16.mxu0 0
      %2797 = vmatmul.mubr.bf16.gmra.mrb[0].mxu0 %v2500
      %v2798 = vpop.f32.mrb[0].mxu0
      %v2799 = vadd.f32 %v2530, %v2798
      %v2800 = vpop.f32.mrb[0].mxu0
      %v2801 = vpop.f32.mrb[0].mxu0
      %v2802 = vadd.f32 %v2530, %v2801
      %v2803 = vpop.f32.mrb[0].mxu0
      %2804 = vmatprep.mubr.bf16.mxu0 0
      %2805 = vmatmul.mubr.bf16.gmra.mrb[0].mxu0 %v2501
      %v2806 = vpop.f32.mrb[0].mxu0
      %v2807 = vadd.f32 %v2530, %v2806
      %v2808 = vpop.f32.mrb[0].mxu0
      %v2809 = vpop.f32.mrb[0].mxu0
      %v2810 = vadd.f32 %v2530, %v2809
      %v2811 = vpop.f32.mrb[0].mxu0
      %2812 = vmatprep.mubr.bf16.mxu0 0
      %2813 = vmatmul.mubr.bf16.gmra.mrb[0].mxu0 %v2502
      %v2814 = vpop.f32.mrb[0].mxu0
      %v2815 = vadd.f32 %v2530, %v2814
      %v2816 = vpop.f32.mrb[0].mxu0
      %v2817 = vpop.f32.mrb[0].mxu0
      %v2818 = vadd.f32 %v2530, %v2817
      %v2819 = vpop.f32.mrb[0].mxu0
      %2820 = vmatprep.mubr.bf16.mxu0 0
      %2821 = vmatmul.mubr.bf16.gmra.mrb[0].mxu0 %v2503
      %v2822 = vpop.f32.mrb[0].mxu0
      %v2823 = vadd.f32 %v2530, %v2822
      %v2824 = vpop.f32.mrb[0].mxu0
      %v2825 = vpop.f32.mrb[0].mxu0
      %v2826 = vadd.f32 %v2530, %v2825
      %v2827 = vpop.f32.mrb[0].mxu0
      %2828 = vmatprep.mubr.bf16.mxu0 0
      %2829 = vmatmul.mubr.bf16.gmra.mrb[0].mxu0 %v2504
      %v2830 = vpop.f32.mrb[0].mxu0
      %v2831 = vadd.f32 %v2530, %v2830
      %v2832 = vpop.f32.mrb[0].mxu0
      %v2833 = vpop.f32.mrb[0].mxu0
      %v2834 = vadd.f32 %v2530, %v2833
      %v2835 = vpop.f32.mrb[0].mxu0
      %2836 = vmatprep.mubr.bf16.mxu0 0
      %2837 = vmatmul.mubr.bf16.gmra.mrb[0].mxu0 %v2505
      %v2838 = vpop.f32.mrb[0].mxu0
      %v2839 = vadd.f32 %v2530, %v2838
      %v2840 = vpop.f32.mrb[0].mxu0
      %v2841 = vpop.f32.mrb[0].mxu0
      %v2842 = vadd.f32 %v2530, %v2841
      %v2843 = vpop.f32.mrb[0].mxu0
      %2844 = vmatprep.mubr.bf16.mxu0 0
      %2845 = vmatmul.mubr.bf16.gmra.mrb[0].mxu0 %v2506
      %v2846 = vpop.f32.mrb[0].mxu0
      %v2847 = vadd.f32 %v2530, %v2846
      %v2848 = vpop.f32.mrb[0].mxu0
      %v2849 = vpop.f32.mrb[0].mxu0
      %v2850 = vadd.f32 %v2530, %v2849
      %v2851 = vpop.f32.mrb[0].mxu0
      %2852 = vmatprep.mubr.bf16.mxu0 0
      %2853 = vmatmul.mubr.bf16.gmra.mrb[0].mxu0 %v2507
      %v2854 = vpop.f32.mrb[0].mxu0
      %v2855 = vadd.f32 %v2530, %v2854
      %v2856 = vpop.f32.mrb[0].mxu0
      %v2857 = vpop.f32.mrb[0].mxu0
      %v2858 = vadd.f32 %v2530, %v2857
      %v2859 = vpop.f32.mrb[0].mxu0
      %2860 = vmatprep.mubr.bf16.mxu0 0
      %2861 = vmatmul.mubr.bf16.gmra.mrb[0].mxu0 %v2508
      %v2862 = vpop.f32.mrb[0].mxu0
      %v2863 = vadd.f32 %v2530, %v2862
      %v2864 = vpop.f32.mrb[0].mxu0
      %v2865 = vpop.f32.mrb[0].mxu0
      %v2866 = vadd.f32 %v2530, %v2865
      %v2867 = vpop.f32.mrb[0].mxu0
      %2868 = vdwg.mxu0
      %v2869 = vmax.f32 %v2615, 0.0
      %v2870 = vmax.f32 %v2618, 0.0
      %v2871 = vmax.f32 %v2623, 0.0
      %v2872 = vmax.f32 %v2626, 0.0
      %v2873 = vmax.f32 %v2631, 0.0
      %v2874 = vmax.f32 %v2634, 0.0
      %v2875 = vmax.f32 %v2639, 0.0
      %v2876 = vmax.f32 %v2642, 0.0
      %v2877 = vmax.f32 %v2647, 0.0
      %v2878 = vmax.f32 %v2650, 0.0
      %v2879 = vmax.f32 %v2655, 0.0
      %v2880 = vmax.f32 %v2658, 0.0
      %v2881 = vmax.f32 %v2663, 0.0
      %v2882 = vmax.f32 %v2666, 0.0
      %v2883 = vmax.f32 %v2671, 0.0
      %v2884 = vmax.f32 %v2674, 0.0
      %v2885 = vmax.f32 %v2679, 0.0
      %v2886 = vmax.f32 %v2682, 0.0
      %v2887 = vmax.f32 %v2687, 0.0
      %v2888 = vmax.f32 %v2690, 0.0
      %v2889 = vmax.f32 %v2695, 0.0
      %v2890 = vmax.f32 %v2698, 0.0
      %v2891 = vmax.f32 %v2703, 0.0
      %v2892 = vmax.f32 %v2706, 0.0
      %v2893 = vmax.f32 %v2711, 0.0
      %v2894 = vmax.f32 %v2714, 0.0
      %v2895 = vmax.f32 %v2719, 0.0
      %v2896 = vmax.f32 %v2722, 0.0
      %v2897 = vmax.f32 %v2727, 0.0
      %v2898 = vmax.f32 %v2730, 0.0
      %v2899 = vmax.f32 %v2735, 0.0
      %v2900 = vmax.f32 %v2738, 0.0
      %v2901 = vmax.f32 %v2743, 0.0
      %v2902 = vmax.f32 %v2746, 0.0
      %v2903 = vmax.f32 %v2751, 0.0
      %v2904 = vmax.f32 %v2754, 0.0
      %v2905 = vmax.f32 %v2759, 0.0
      %v2906 = vmax.f32 %v2762, 0.0
      %v2907 = vmax.f32 %v2767, 0.0
      %v2908 = vmax.f32 %v2770, 0.0
      %v2909 = vmax.f32 %v2775, 0.0
      %v2910 = vmax.f32 %v2778, 0.0
      %v2911 = vmax.f32 %v2783, 0.0
      %v2912 = vmax.f32 %v2786, 0.0
      %v2913 = vmax.f32 %v2791, 0.0
      %v2914 = vmax.f32 %v2794, 0.0
      %v2915 = vmax.f32 %v2799, 0.0
      %v2916 = vmax.f32 %v2802, 0.0
      %v2917 = vmax.f32 %v2807, 0.0
      %v2918 = vmax.f32 %v2810, 0.0
      %v2919 = vmax.f32 %v2815, 0.0
      %v2920 = vmax.f32 %v2818, 0.0
      %v2921 = vmax.f32 %v2823, 0.0
      %v2922 = vmax.f32 %v2826, 0.0
      %v2923 = vmax.f32 %v2831, 0.0
      %v2924 = vmax.f32 %v2834, 0.0
      %v2925 = vmax.f32 %v2839, 0.0
      %v2926 = vmax.f32 %v2842, 0.0
      %v2927 = vmax.f32 %v2847, 0.0
      %v2928 = vmax.f32 %v2850, 0.0
      %v2929 = vmax.f32 %v2855, 0.0
      %v2930 = vmax.f32 %v2858, 0.0
      %v2931 = vmax.f32 %v2863, 0.0
      %v2932 = vmax.f32 %v2866, 0.0
      %v2933 = vpack.c.bf16 %v2870, %v2869
      %v2934 = vpack.c.bf16 %v2872, %v2871
      %v2935 = vpack.c.bf16 %v2874, %v2873
      %v2936 = vpack.c.bf16 %v2876, %v2875
      %v2937 = vpack.c.bf16 %v2878, %v2877
      %v2938 = vpack.c.bf16 %v2880, %v2879
      %v2939 = vpack.c.bf16 %v2882, %v2881
      %v2940 = vpack.c.bf16 %v2884, %v2883
      %v2941 = vpack.c.bf16 %v2886, %v2885
      %v2942 = vpack.c.bf16 %v2888, %v2887
      %v2943 = vpack.c.bf16 %v2890, %v2889
      %v2944 = vpack.c.bf16 %v2892, %v2891
      %v2945 = vpack.c.bf16 %v2894, %v2893
      %v2946 = vpack.c.bf16 %v2896, %v2895
      %v2947 = vpack.c.bf16 %v2898, %v2897
      %v2948 = vpack.c.bf16 %v2900, %v2899
      %v2949 = vpack.c.bf16 %v2902, %v2901
      %v2950 = vpack.c.bf16 %v2904, %v2903
      %v2951 = vpack.c.bf16 %v2906, %v2905
      %v2952 = vpack.c.bf16 %v2908, %v2907
      %v2953 = vpack.c.bf16 %v2910, %v2909
      %v2954 = vpack.c.bf16 %v2912, %v2911
      %v2955 = vpack.c.bf16 %v2914, %v2913
      %v2956 = vpack.c.bf16 %v2916, %v2915
      %v2957 = vpack.c.bf16 %v2918, %v2917
      %v2958 = vpack.c.bf16 %v2920, %v2919
      %v2959 = vpack.c.bf16 %v2922, %v2921
      %v2960 = vpack.c.bf16 %v2924, %v2923
      %v2961 = vpack.c.bf16 %v2926, %v2925
      %v2962 = vpack.c.bf16 %v2928, %v2927
      %v2963 = vpack.c.bf16 %v2930, %v2929
      %v2964 = vpack.c.bf16 %v2932, %v2931
      %v2965 = vld [vmem:[%s5] sm:$0xf]
      %v2966 = vld [vmem:[%s5 + $0x4] sm:$0xf]
      %v2967 = vld [vmem:[%s5 + $0x8] sm:$0xf]
      %v2968 = vld [vmem:[%s5 + $0xc] sm:$0xf]
      %v2969 = vld [vmem:[%s5 + $0x10] sm:$0xf]
      %v2970 = vld [vmem:[%s5 + $0x14] sm:$0xf]
      %v2971 = vld [vmem:[%s5 + $0x18] sm:$0xf]
      %v2972 = vld [vmem:[%s5 + $0x1c] sm:$0xf]
      %v2973 = vld [vmem:[%s5 + $0x20] sm:$0xf]
      %v2974 = vld [vmem:[%s5 + $0x24] sm:$0xf]
      %v2975 = vld [vmem:[%s5 + $0x28] sm:$0xf]
      %v2976 = vld [vmem:[%s5 + $0x2c] sm:$0xf]
      %v2977 = vld [vmem:[%s5 + $0x30] sm:$0xf]
      %v2978 = vld [vmem:[%s5 + $0x34] sm:$0xf]
      %v2979 = vld [vmem:[%s5 + $0x38] sm:$0xf]
      %v2980 = vld [vmem:[%s5 + $0x3c] sm:$0xf]
      %v2981 = vld [vmem:[%s6] sm:$0x1]
      %v2983 = vlaneseq
      %v2984 = vshrl.u32 %v2983, 7
      %v2985 = vsub.s32 0, %v2984
      %v2986 = vrot.slane %v2981, %v2985
      %v3004 = vunpack.c.l.b16 %v2965
      %v3005 = vunpack.c.l.b16 %v2966
      %v3006 = vunpack.c.l.b16 %v2967
      %v3007 = vunpack.c.l.b16 %v2968
      %v3008 = vunpack.c.l.b16 %v2969
      %v3009 = vunpack.c.l.b16 %v2970
      %v3010 = vunpack.c.l.b16 %v2971
      %v3011 = vunpack.c.l.b16 %v2972
      %v3012 = vunpack.c.l.b16 %v2973
      %v3013 = vunpack.c.l.b16 %v2974
      %v3014 = vunpack.c.l.b16 %v2975
      %v3015 = vunpack.c.l.b16 %v2976
      %v3016 = vunpack.c.l.b16 %v2977
      %v3017 = vunpack.c.l.b16 %v2978
      %v3018 = vunpack.c.l.b16 %v2979
      %v3019 = vunpack.c.l.b16 %v2980
      %v3020 = vpack.c.b16 %v3005, %v3004
      %v3021 = vpack.c.b16 %v3007, %v3006
      %v3022 = vpack.c.b16 %v3009, %v3008
      %v3023 = vpack.c.b16 %v3011, %v3010
      %v3024 = vpack.c.b16 %v3013, %v3012
      %v3025 = vpack.c.b16 %v3015, %v3014
      %v3026 = vpack.c.b16 %v3017, %v3016
      %v3027 = vpack.c.b16 %v3019, %v3018
      %3036 = vmatprep.subr.bf16.mxu0 0
      %3037 = vmatpush1.bf16.msra.mxu0 %v3020
      %3038 = vmatprep.subr.bf16.mxu0 0
      %3039 = vmatpush1.bf16.msra.mxu0 %v3021
      %3040 = vmatprep.subr.bf16.mxu0 0
      %3041 = vmatpush1.bf16.msra.mxu0 %v3022
      %3042 = vmatprep.subr.bf16.mxu0 0
      %3043 = vmatpush1.bf16.msra.mxu0 %v3023
      %3044 = vmatprep.subr.bf16.mxu0 0
      %3045 = vmatpush1.bf16.msra.mxu0 %v3024
      %3046 = vmatprep.subr.bf16.mxu0 0
      %3047 = vmatpush1.bf16.msra.mxu0 %v3025
      %3048 = vmatprep.subr.bf16.mxu0 0
      %3049 = vmatpush1.bf16.msra.mxu0 %v3026
      %3050 = vmatprep.subr.bf16.mxu0 0
      %3051 = vmatpush1.bf16.msra.mxu0 %v3027
      %3052 = vmatprep.subr.bf16.mxu0 0
      %3053 = vmatpush1.bf16.msra.mxu0 0
      %3054 = vmatprep.subr.bf16.mxu0 0
      %3055 = vmatpush1.bf16.msra.mxu0 0
      %3056 = vmatprep.subr.bf16.mxu0 0
      %3057 = vmatpush1.bf16.msra.mxu0 0
      %3058 = vmatprep.subr.bf16.mxu0 0
      %3059 = vmatpush1.bf16.msra.mxu0 0
      %3060 = vmatprep.subr.bf16.mxu0 0
      %3061 = vmatpush1.bf16.msra.mxu0 0
      %3062 = vmatprep.subr.bf16.mxu0 0
      %3063 = vmatpush1.bf16.msra.mxu0 0
      %3064 = vmatprep.subr.bf16.mxu0 0
      %3065 = vmatpush1.bf16.msra.mxu0 0
      %3066 = vmatprep.subr.bf16.mxu0 0
      %3067 = vmatpush1.bf16.msra.mxu0 0
      %3068 = vmatprep.mubr.bf16.mxu0 0
      %3069 = vmatmul.mubr.bf16.gmra.mrb[0].mxu0 %v2933
      %v3070 = vpop.f32.mrb[0].mxu0
      %v3071 = vadd.f32 %v2986, %v3070
      %v3072 = vpop.f32.mrb[0].mxu0
      %v3073 = vpop.f32.mrb[0].mxu0
      %v3074 = vadd.f32 %v2986, %v3073
      %v3075 = vpop.f32.mrb[0].mxu0
      %3076 = vmatprep.mubr.bf16.mxu0 0
      %3077 = vmatmul.mubr.bf16.gmra.mrb[0].mxu0 %v2934
      %v3078 = vpop.f32.mrb[0].mxu0
      %v3079 = vadd.f32 %v2986, %v3078
      %v3080 = vpop.f32.mrb[0].mxu0
      %v3081 = vpop.f32.mrb[0].mxu0
      %v3082 = vadd.f32 %v2986, %v3081
      %v3083 = vpop.f32.mrb[0].mxu0
      %3084 = vmatprep.mubr.bf16.mxu0 0
      %3085 = vmatmul.mubr.bf16.gmra.mrb[0].mxu0 %v2935
      %v3086 = vpop.f32.mrb[0].mxu0
      %v3087 = vadd.f32 %v2986, %v3086
      %v3088 = vpop.f32.mrb[0].mxu0
      %v3089 = vpop.f32.mrb[0].mxu0
      %v3090 = vadd.f32 %v2986, %v3089
      %v3091 = vpop.f32.mrb[0].mxu0
      %3092 = vmatprep.mubr.bf16.mxu0 0
      %3093 = vmatmul.mubr.bf16.gmra.mrb[0].mxu0 %v2936
      %v3094 = vpop.f32.mrb[0].mxu0
      %v3095 = vadd.f32 %v2986, %v3094
      %v3096 = vpop.f32.mrb[0].mxu0
      %v3097 = vpop.f32.mrb[0].mxu0
      %v3098 = vadd.f32 %v2986, %v3097
      %v3099 = vpop.f32.mrb[0].mxu0
      %3100 = vmatprep.mubr.bf16.mxu0 0
      %3101 = vmatmul.mubr.bf16.gmra.mrb[0].mxu0 %v2937
      %v3102 = vpop.f32.mrb[0].mxu0
      %v3103 = vadd.f32 %v2986, %v3102
      %v3104 = vpop.f32.mrb[0].mxu0
      %v3105 = vpop.f32.mrb[0].mxu0
      %v3106 = vadd.f32 %v2986, %v3105
      %v3107 = vpop.f32.mrb[0].mxu0
      %3108 = vmatprep.mubr.bf16.mxu0 0
      %3109 = vmatmul.mubr.bf16.gmra.mrb[0].mxu0 %v2938
      %v3110 = vpop.f32.mrb[0].mxu0
      %v3111 = vadd.f32 %v2986, %v3110
      %v3112 = vpop.f32.mrb[0].mxu0
      %v3113 = vpop.f32.mrb[0].mxu0
      %v3114 = vadd.f32 %v2986, %v3113
      %v3115 = vpop.f32.mrb[0].mxu0
      %3116 = vmatprep.mubr.bf16.mxu0 0
      %3117 = vmatmul.mubr.bf16.gmra.mrb[0].mxu0 %v2939
      %v3118 = vpop.f32.mrb[0].mxu0
      %v3119 = vadd.f32 %v2986, %v3118
      %v3120 = vpop.f32.mrb[0].mxu0
      %v3121 = vpop.f32.mrb[0].mxu0
      %v3122 = vadd.f32 %v2986, %v3121
      %v3123 = vpop.f32.mrb[0].mxu0
      %3124 = vmatprep.mubr.bf16.mxu0 0
      %3125 = vmatmul.mubr.bf16.gmra.mrb[0].mxu0 %v2940
      %v3126 = vpop.f32.mrb[0].mxu0
      %v3127 = vadd.f32 %v2986, %v3126
      %v3128 = vpop.f32.mrb[0].mxu0
      %v3129 = vpop.f32.mrb[0].mxu0
      %v3130 = vadd.f32 %v2986, %v3129
      %v3131 = vpop.f32.mrb[0].mxu0
      %3132 = vmatprep.mubr.bf16.mxu0 0
      %3133 = vmatmul.mubr.bf16.gmra.mrb[0].mxu0 %v2941
      %v3134 = vpop.f32.mrb[0].mxu0
      %v3135 = vadd.f32 %v2986, %v3134
      %v3136 = vpop.f32.mrb[0].mxu0
      %v3137 = vpop.f32.mrb[0].mxu0
      %v3138 = vadd.f32 %v2986, %v3137
      %v3139 = vpop.f32.mrb[0].mxu0
      %3140 = vmatprep.mubr.bf16.mxu0 0
      %3141 = vmatmul.mubr.bf16.gmra.mrb[0].mxu0 %v2942
      %v3142 = vpop.f32.mrb[0].mxu0
      %v3143 = vadd.f32 %v2986, %v3142
      %v3144 = vpop.f32.mrb[0].mxu0
      %v3145 = vpop.f32.mrb[0].mxu0
      %v3146 = vadd.f32 %v2986, %v3145
      %v3147 = vpop.f32.mrb[0].mxu0
      %3148 = vmatprep.mubr.bf16.mxu0 0
      %3149 = vmatmul.mubr.bf16.gmra.mrb[0].mxu0 %v2943
      %v3150 = vpop.f32.mrb[0].mxu0
      %v3151 = vadd.f32 %v2986, %v3150
      %v3152 = vpop.f32.mrb[0].mxu0
      %v3153 = vpop.f32.mrb[0].mxu0
      %v3154 = vadd.f32 %v2986, %v3153
      %v3155 = vpop.f32.mrb[0].mxu0
      %3156 = vmatprep.mubr.bf16.mxu0 0
      %3157 = vmatmul.mubr.bf16.gmra.mrb[0].mxu0 %v2944
      %v3158 = vpop.f32.mrb[0].mxu0
      %v3159 = vadd.f32 %v2986, %v3158
      %v3160 = vpop.f32.mrb[0].mxu0
      %v3161 = vpop.f32.mrb[0].mxu0
      %v3162 = vadd.f32 %v2986, %v3161
      %v3163 = vpop.f32.mrb[0].mxu0
      %3164 = vmatprep.mubr.bf16.mxu0 0
      %3165 = vmatmul.mubr.bf16.gmra.mrb[0].mxu0 %v2945
      %v3166 = vpop.f32.mrb[0].mxu0
      %v3167 = vadd.f32 %v2986, %v3166
      %v3168 = vpop.f32.mrb[0].mxu0
      %v3169 = vpop.f32.mrb[0].mxu0
      %v3170 = vadd.f32 %v2986, %v3169
      %v3171 = vpop.f32.mrb[0].mxu0
      %3172 = vmatprep.mubr.bf16.mxu0 0
      %3173 = vmatmul.mubr.bf16.gmra.mrb[0].mxu0 %v2946
      %v3174 = vpop.f32.mrb[0].mxu0
      %v3175 = vadd.f32 %v2986, %v3174
      %v3176 = vpop.f32.mrb[0].mxu0
      %v3177 = vpop.f32.mrb[0].mxu0
      %v3178 = vadd.f32 %v2986, %v3177
      %v3179 = vpop.f32.mrb[0].mxu0
      %3180 = vmatprep.mubr.bf16.mxu0 0
      %3181 = vmatmul.mubr.bf16.gmra.mrb[0].mxu0 %v2947
      %v3182 = vpop.f32.mrb[0].mxu0
      %v3183 = vadd.f32 %v2986, %v3182
      %v3184 = vpop.f32.mrb[0].mxu0
      %v3185 = vpop.f32.mrb[0].mxu0
      %v3186 = vadd.f32 %v2986, %v3185
      %v3187 = vpop.f32.mrb[0].mxu0
      %3188 = vmatprep.mubr.bf16.mxu0 0
      %3189 = vmatmul.mubr.bf16.gmra.mrb[0].mxu0 %v2948
      %v3190 = vpop.f32.mrb[0].mxu0
      %v3191 = vadd.f32 %v2986, %v3190
      %v3192 = vpop.f32.mrb[0].mxu0
      %v3193 = vpop.f32.mrb[0].mxu0
      %v3194 = vadd.f32 %v2986, %v3193
      %v3195 = vpop.f32.mrb[0].mxu0
      %3196 = vmatprep.mubr.bf16.mxu0 0
      %3197 = vmatmul.mubr.bf16.gmra.mrb[0].mxu0 %v2949
      %v3198 = vpop.f32.mrb[0].mxu0
      %v3199 = vadd.f32 %v2986, %v3198
      %v3200 = vpop.f32.mrb[0].mxu0
      %v3201 = vpop.f32.mrb[0].mxu0
      %v3202 = vadd.f32 %v2986, %v3201
      %v3203 = vpop.f32.mrb[0].mxu0
      %3204 = vmatprep.mubr.bf16.mxu0 0
      %3205 = vmatmul.mubr.bf16.gmra.mrb[0].mxu0 %v2950
      %v3206 = vpop.f32.mrb[0].mxu0
      %v3207 = vadd.f32 %v2986, %v3206
      %v3208 = vpop.f32.mrb[0].mxu0
      %v3209 = vpop.f32.mrb[0].mxu0
      %v3210 = vadd.f32 %v2986, %v3209
      %v3211 = vpop.f32.mrb[0].mxu0
      %3212 = vmatprep.mubr.bf16.mxu0 0
      %3213 = vmatmul.mubr.bf16.gmra.mrb[0].mxu0 %v2951
      %v3214 = vpop.f32.mrb[0].mxu0
      %v3215 = vadd.f32 %v2986, %v3214
      %v3216 = vpop.f32.mrb[0].mxu0
      %v3217 = vpop.f32.mrb[0].mxu0
      %v3218 = vadd.f32 %v2986, %v3217
      %v3219 = vpop.f32.mrb[0].mxu0
      %3220 = vmatprep.mubr.bf16.mxu0 0
      %3221 = vmatmul.mubr.bf16.gmra.mrb[0].mxu0 %v2952
      %v3222 = vpop.f32.mrb[0].mxu0
      %v3223 = vadd.f32 %v2986, %v3222
      %v3224 = vpop.f32.mrb[0].mxu0
      %v3225 = vpop.f32.mrb[0].mxu0
      %v3226 = vadd.f32 %v2986, %v3225
      %v3227 = vpop.f32.mrb[0].mxu0
      %3228 = vmatprep.mubr.bf16.mxu0 0
      %3229 = vmatmul.mubr.bf16.gmra.mrb[0].mxu0 %v2953
      %v3230 = vpop.f32.mrb[0].mxu0
      %v3231 = vadd.f32 %v2986, %v3230
      %v3232 = vpop.f32.mrb[0].mxu0
      %v3233 = vpop.f32.mrb[0].mxu0
      %v3234 = vadd.f32 %v2986, %v3233
      %v3235 = vpop.f32.mrb[0].mxu0
      %3236 = vmatprep.mubr.bf16.mxu0 0
      %3237 = vmatmul.mubr.bf16.gmra.mrb[0].mxu0 %v2954
      %v3238 = vpop.f32.mrb[0].mxu0
      %v3239 = vadd.f32 %v2986, %v3238
      %v3240 = vpop.f32.mrb[0].mxu0
      %v3241 = vpop.f32.mrb[0].mxu0
      %v3242 = vadd.f32 %v2986, %v3241
      %v3243 = vpop.f32.mrb[0].mxu0
      %3244 = vmatprep.mubr.bf16.mxu0 0
      %3245 = vmatmul.mubr.bf16.gmra.mrb[0].mxu0 %v2955
      %v3246 = vpop.f32.mrb[0].mxu0
      %v3247 = vadd.f32 %v2986, %v3246
      %v3248 = vpop.f32.mrb[0].mxu0
      %v3249 = vpop.f32.mrb[0].mxu0
      %v3250 = vadd.f32 %v2986, %v3249
      %v3251 = vpop.f32.mrb[0].mxu0
      %3252 = vmatprep.mubr.bf16.mxu0 0
      %3253 = vmatmul.mubr.bf16.gmra.mrb[0].mxu0 %v2956
      %v3254 = vpop.f32.mrb[0].mxu0
      %v3255 = vadd.f32 %v2986, %v3254
      %v3256 = vpop.f32.mrb[0].mxu0
      %v3257 = vpop.f32.mrb[0].mxu0
      %v3258 = vadd.f32 %v2986, %v3257
      %v3259 = vpop.f32.mrb[0].mxu0
      %3260 = vmatprep.mubr.bf16.mxu0 0
      %3261 = vmatmul.mubr.bf16.gmra.mrb[0].mxu0 %v2957
      %v3262 = vpop.f32.mrb[0].mxu0
      %v3263 = vadd.f32 %v2986, %v3262
      %v3264 = vpop.f32.mrb[0].mxu0
      %v3265 = vpop.f32.mrb[0].mxu0
      %v3266 = vadd.f32 %v2986, %v3265
      %v3267 = vpop.f32.mrb[0].mxu0
      %3268 = vmatprep.mubr.bf16.mxu0 0
      %3269 = vmatmul.mubr.bf16.gmra.mrb[0].mxu0 %v2958
      %v3270 = vpop.f32.mrb[0].mxu0
      %v3271 = vadd.f32 %v2986, %v3270
      %v3272 = vpop.f32.mrb[0].mxu0
      %v3273 = vpop.f32.mrb[0].mxu0
      %v3274 = vadd.f32 %v2986, %v3273
      %v3275 = vpop.f32.mrb[0].mxu0
      %3276 = vmatprep.mubr.bf16.mxu0 0
      %3277 = vmatmul.mubr.bf16.gmra.mrb[0].mxu0 %v2959
      %v3278 = vpop.f32.mrb[0].mxu0
      %v3279 = vadd.f32 %v2986, %v3278
      %v3280 = vpop.f32.mrb[0].mxu0
      %v3281 = vpop.f32.mrb[0].mxu0
      %v3282 = vadd.f32 %v2986, %v3281
      %v3283 = vpop.f32.mrb[0].mxu0
      %3284 = vmatprep.mubr.bf16.mxu0 0
      %3285 = vmatmul.mubr.bf16.gmra.mrb[0].mxu0 %v2960
      %v3286 = vpop.f32.mrb[0].mxu0
      %v3287 = vadd.f32 %v2986, %v3286
      %v3288 = vpop.f32.mrb[0].mxu0
      %v3289 = vpop.f32.mrb[0].mxu0
      %v3290 = vadd.f32 %v2986, %v3289
      %v3291 = vpop.f32.mrb[0].mxu0
      %3292 = vmatprep.mubr.bf16.mxu0 0
      %3293 = vmatmul.mubr.bf16.gmra.mrb[0].mxu0 %v2961
      %v3294 = vpop.f32.mrb[0].mxu0
      %v3295 = vadd.f32 %v2986, %v3294
      %v3296 = vpop.f32.mrb[0].mxu0
      %v3297 = vpop.f32.mrb[0].mxu0
      %v3298 = vadd.f32 %v2986, %v3297
      %v3299 = vpop.f32.mrb[0].mxu0
      %3300 = vmatprep.mubr.bf16.mxu0 0
      %3301 = vmatmul.mubr.bf16.gmra.mrb[0].mxu0 %v2962
      %v3302 = vpop.f32.mrb[0].mxu0
      %v3303 = vadd.f32 %v2986, %v3302
      %v3304 = vpop.f32.mrb[0].mxu0
      %v3305 = vpop.f32.mrb[0].mxu0
      %v3306 = vadd.f32 %v2986, %v3305
      %v3307 = vpop.f32.mrb[0].mxu0
      %3308 = vmatprep.mubr.bf16.mxu0 0
      %3309 = vmatmul.mubr.bf16.gmra.mrb[0].mxu0 %v2963
      %v3310 = vpop.f32.mrb[0].mxu0
      %v3311 = vadd.f32 %v2986, %v3310
      %v3312 = vpop.f32.mrb[0].mxu0
      %v3313 = vpop.f32.mrb[0].mxu0
      %v3314 = vadd.f32 %v2986, %v3313
      %v3315 = vpop.f32.mrb[0].mxu0
      %3316 = vmatprep.mubr.bf16.mxu0 0
      %3317 = vmatmul.mubr.bf16.gmra.mrb[0].mxu0 %v2964
      %v3318 = vpop.f32.mrb[0].mxu0
      %v3319 = vadd.f32 %v2986, %v3318
      %v3320 = vpop.f32.mrb[0].mxu0
      %v3321 = vpop.f32.mrb[0].mxu0
      %v3322 = vadd.f32 %v2986, %v3321
      %v3323 = vpop.f32.mrb[0].mxu0
      %3324 = vdwg.mxu0
      %v3325 = vmax.f32 %v3071, 0.0
      %v3326 = vmax.f32 %v3074, 0.0
      %v3327 = vmax.f32 %v3079, 0.0
      %v3328 = vmax.f32 %v3082, 0.0
      %v3329 = vmax.f32 %v3087, 0.0
      %v3330 = vmax.f32 %v3090, 0.0
      %v3331 = vmax.f32 %v3095, 0.0
      %v3332 = vmax.f32 %v3098, 0.0
      %v3333 = vmax.f32 %v3103, 0.0
      %v3334 = vmax.f32 %v3106, 0.0
      %v3335 = vmax.f32 %v3111, 0.0
      %v3336 = vmax.f32 %v3114, 0.0
      %v3337 = vmax.f32 %v3119, 0.0
      %v3338 = vmax.f32 %v3122, 0.0
      %v3339 = vmax.f32 %v3127, 0.0
      %v3340 = vmax.f32 %v3130, 0.0
      %v3341 = vmax.f32 %v3135, 0.0
      %v3342 = vmax.f32 %v3138, 0.0
      %v3343 = vmax.f32 %v3143, 0.0
      %v3344 = vmax.f32 %v3146, 0.0
      %v3345 = vmax.f32 %v3151, 0.0
      %v3346 = vmax.f32 %v3154, 0.0
      %v3347 = vmax.f32 %v3159, 0.0
      %v3348 = vmax.f32 %v3162, 0.0
      %v3349 = vmax.f32 %v3167, 0.0
      %v3350 = vmax.f32 %v3170, 0.0
      %v3351 = vmax.f32 %v3175, 0.0
      %v3352 = vmax.f32 %v3178, 0.0
      %v3353 = vmax.f32 %v3183, 0.0
      %v3354 = vmax.f32 %v3186, 0.0
      %v3355 = vmax.f32 %v3191, 0.0
      %v3356 = vmax.f32 %v3194, 0.0
      %v3357 = vmax.f32 %v3199, 0.0
      %v3358 = vmax.f32 %v3202, 0.0
      %v3359 = vmax.f32 %v3207, 0.0
      %v3360 = vmax.f32 %v3210, 0.0
      %v3361 = vmax.f32 %v3215, 0.0
      %v3362 = vmax.f32 %v3218, 0.0
      %v3363 = vmax.f32 %v3223, 0.0
      %v3364 = vmax.f32 %v3226, 0.0
      %v3365 = vmax.f32 %v3231, 0.0
      %v3366 = vmax.f32 %v3234, 0.0
      %v3367 = vmax.f32 %v3239, 0.0
      %v3368 = vmax.f32 %v3242, 0.0
      %v3369 = vmax.f32 %v3247, 0.0
      %v3370 = vmax.f32 %v3250, 0.0
      %v3371 = vmax.f32 %v3255, 0.0
      %v3372 = vmax.f32 %v3258, 0.0
      %v3373 = vmax.f32 %v3263, 0.0
      %v3374 = vmax.f32 %v3266, 0.0
      %v3375 = vmax.f32 %v3271, 0.0
      %v3376 = vmax.f32 %v3274, 0.0
      %v3377 = vmax.f32 %v3279, 0.0
      %v3378 = vmax.f32 %v3282, 0.0
      %v3379 = vmax.f32 %v3287, 0.0
      %v3380 = vmax.f32 %v3290, 0.0
      %v3381 = vmax.f32 %v3295, 0.0
      %v3382 = vmax.f32 %v3298, 0.0
      %v3383 = vmax.f32 %v3303, 0.0
      %v3384 = vmax.f32 %v3306, 0.0
      %v3385 = vmax.f32 %v3311, 0.0
      %v3386 = vmax.f32 %v3314, 0.0
      %v3387 = vmax.f32 %v3319, 0.0
      %v3388 = vmax.f32 %v3322, 0.0
      %v3389 = vpack.c.bf16 %v3326, %v3325
      %v3390 = vpack.c.bf16 %v3328, %v3327
      %v3391 = vpack.c.bf16 %v3330, %v3329
      %v3392 = vpack.c.bf16 %v3332, %v3331
      %v3393 = vpack.c.bf16 %v3334, %v3333
      %v3394 = vpack.c.bf16 %v3336, %v3335
      %v3395 = vpack.c.bf16 %v3338, %v3337
      %v3396 = vpack.c.bf16 %v3340, %v3339
      %v3397 = vpack.c.bf16 %v3342, %v3341
      %v3398 = vpack.c.bf16 %v3344, %v3343
      %v3399 = vpack.c.bf16 %v3346, %v3345
      %v3400 = vpack.c.bf16 %v3348, %v3347
      %v3401 = vpack.c.bf16 %v3350, %v3349
      %v3402 = vpack.c.bf16 %v3352, %v3351
      %v3403 = vpack.c.bf16 %v3354, %v3353
      %v3404 = vpack.c.bf16 %v3356, %v3355
      %v3405 = vpack.c.bf16 %v3358, %v3357
      %v3406 = vpack.c.bf16 %v3360, %v3359
      %v3407 = vpack.c.bf16 %v3362, %v3361
      %v3408 = vpack.c.bf16 %v3364, %v3363
      %v3409 = vpack.c.bf16 %v3366, %v3365
      %v3410 = vpack.c.bf16 %v3368, %v3367
      %v3411 = vpack.c.bf16 %v3370, %v3369
      %v3412 = vpack.c.bf16 %v3372, %v3371
      %v3413 = vpack.c.bf16 %v3374, %v3373
      %v3414 = vpack.c.bf16 %v3376, %v3375
      %v3415 = vpack.c.bf16 %v3378, %v3377
      %v3416 = vpack.c.bf16 %v3380, %v3379
      %v3417 = vpack.c.bf16 %v3382, %v3381
      %v3418 = vpack.c.bf16 %v3384, %v3383
      %v3419 = vpack.c.bf16 %v3386, %v3385
      %v3420 = vpack.c.bf16 %v3388, %v3387
      %v3421 = vld [vmem:[%s7] sm:$0xf]
      %v3422 = vld [vmem:[%s7 + $0x4] sm:$0xf]
      %v3423 = vld [vmem:[%s7 + $0x8] sm:$0xf]
      %v3424 = vld [vmem:[%s7 + $0xc] sm:$0xf]
      %v3425 = vld [vmem:[%s7 + $0x10] sm:$0xf]
      %v3426 = vld [vmem:[%s7 + $0x14] sm:$0xf]
      %v3427 = vld [vmem:[%s7 + $0x18] sm:$0xf]
      %v3428 = vld [vmem:[%s7 + $0x1c] sm:$0xf]
      %v3429 = vld [vmem:[%s7 + $0x20] sm:$0xf]
      %v3430 = vld [vmem:[%s7 + $0x24] sm:$0xf]
      %v3431 = vld [vmem:[%s7 + $0x28] sm:$0xf]
      %v3432 = vld [vmem:[%s7 + $0x2c] sm:$0xf]
      %v3433 = vld [vmem:[%s7 + $0x30] sm:$0xf]
      %v3434 = vld [vmem:[%s7 + $0x34] sm:$0xf]
      %v3435 = vld [vmem:[%s7 + $0x38] sm:$0xf]
      %v3436 = vld [vmem:[%s7 + $0x3c] sm:$0xf]
      %v3437 = vld [vmem:[%s8] sm:$0x1]
      %v3439 = vlaneseq
      %v3440 = vshrl.u32 %v3439, 7
      %v3441 = vsub.s32 0, %v3440
      %v3442 = vrot.slane %v3437, %v3441
      %v3460 = vunpack.c.l.b16 %v3421
      %v3461 = vunpack.c.l.b16 %v3422
      %v3462 = vunpack.c.l.b16 %v3423
      %v3463 = vunpack.c.l.b16 %v3424
      %v3464 = vunpack.c.l.b16 %v3425
      %v3465 = vunpack.c.l.b16 %v3426
      %v3466 = vunpack.c.l.b16 %v3427
      %v3467 = vunpack.c.l.b16 %v3428
      %v3468 = vunpack.c.l.b16 %v3429
      %v3469 = vunpack.c.l.b16 %v3430
      %v3470 = vunpack.c.l.b16 %v3431
      %v3471 = vunpack.c.l.b16 %v3432
      %v3472 = vunpack.c.l.b16 %v3433
      %v3473 = vunpack.c.l.b16 %v3434
      %v3474 = vunpack.c.l.b16 %v3435
      %v3475 = vunpack.c.l.b16 %v3436
      %v3476 = vpack.c.b16 %v3461, %v3460
      %v3477 = vpack.c.b16 %v3463, %v3462
      %v3478 = vpack.c.b16 %v3465, %v3464
      %v3479 = vpack.c.b16 %v3467, %v3466
      %v3480 = vpack.c.b16 %v3469, %v3468
      %v3481 = vpack.c.b16 %v3471, %v3470
      %v3482 = vpack.c.b16 %v3473, %v3472
      %v3483 = vpack.c.b16 %v3475, %v3474
      %3492 = vmatprep.subr.bf16.mxu0 0
      %3493 = vmatpush1.bf16.msra.mxu0 %v3476
      %3494 = vmatprep.subr.bf16.mxu0 0
      %3495 = vmatpush1.bf16.msra.mxu0 %v3477
      %3496 = vmatprep.subr.bf16.mxu0 0
      %3497 = vmatpush1.bf16.msra.mxu0 %v3478
      %3498 = vmatprep.subr.bf16.mxu0 0
      %3499 = vmatpush1.bf16.msra.mxu0 %v3479
      %3500 = vmatprep.subr.bf16.mxu0 0
      %3501 = vmatpush1.bf16.msra.mxu0 %v3480
      %3502 = vmatprep.subr.bf16.mxu0 0
      %3503 = vmatpush1.bf16.msra.mxu0 %v3481
      %3504 = vmatprep.subr.bf16.mxu0 0
      %3505 = vmatpush1.bf16.msra.mxu0 %v3482
      %3506 = vmatprep.subr.bf16.mxu0 0
      %3507 = vmatpush1.bf16.msra.mxu0 %v3483
      %3508 = vmatprep.subr.bf16.mxu0 0
      %3509 = vmatpush1.bf16.msra.mxu0 0
      %3510 = vmatprep.subr.bf16.mxu0 0
      %3511 = vmatpush1.bf16.msra.mxu0 0
      %3512 = vmatprep.subr.bf16.mxu0 0
      %3513 = vmatpush1.bf16.msra.mxu0 0
      %3514 = vmatprep.subr.bf16.mxu0 0
      %3515 = vmatpush1.bf16.msra.mxu0 0
      %3516 = vmatprep.subr.bf16.mxu0 0
      %3517 = vmatpush1.bf16.msra.mxu0 0
      %3518 = vmatprep.subr.bf16.mxu0 0
      %3519 = vmatpush1.bf16.msra.mxu0 0
      %3520 = vmatprep.subr.bf16.mxu0 0
      %3521 = vmatpush1.bf16.msra.mxu0 0
      %3522 = vmatprep.subr.bf16.mxu0 0
      %3523 = vmatpush1.bf16.msra.mxu0 0
      %3524 = vmatprep.mubr.bf16.mxu0 0
      %3525 = vmatmul.mubr.bf16.gmra.mrb[0].mxu0 %v3389
      %v3526 = vpop.f32.mrb[0].mxu0
      %v3527 = vadd.f32 %v3442, %v3526
      %v3528 = vpop.f32.mrb[0].mxu0
      %v3529 = vpop.f32.mrb[0].mxu0
      %v3530 = vadd.f32 %v3442, %v3529
      %v3531 = vpop.f32.mrb[0].mxu0
      %3532 = vmatprep.mubr.bf16.mxu0 0
      %3533 = vmatmul.mubr.bf16.gmra.mrb[0].mxu0 %v3390
      %v3534 = vpop.f32.mrb[0].mxu0
      %v3535 = vadd.f32 %v3442, %v3534
      %v3536 = vpop.f32.mrb[0].mxu0
      %v3537 = vpop.f32.mrb[0].mxu0
      %v3538 = vadd.f32 %v3442, %v3537
      %v3539 = vpop.f32.mrb[0].mxu0
      %3540 = vmatprep.mubr.bf16.mxu0 0
      %3541 = vmatmul.mubr.bf16.gmra.mrb[0].mxu0 %v3391
      %v3542 = vpop.f32.mrb[0].mxu0
      %v3543 = vadd.f32 %v3442, %v3542
      %v3544 = vpop.f32.mrb[0].mxu0
      %v3545 = vpop.f32.mrb[0].mxu0
      %v3546 = vadd.f32 %v3442, %v3545
      %v3547 = vpop.f32.mrb[0].mxu0
      %3548 = vmatprep.mubr.bf16.mxu0 0
      %3549 = vmatmul.mubr.bf16.gmra.mrb[0].mxu0 %v3392
      %v3550 = vpop.f32.mrb[0].mxu0
      %v3551 = vadd.f32 %v3442, %v3550
      %v3552 = vpop.f32.mrb[0].mxu0
      %v3553 = vpop.f32.mrb[0].mxu0
      %v3554 = vadd.f32 %v3442, %v3553
      %v3555 = vpop.f32.mrb[0].mxu0
      %3556 = vmatprep.mubr.bf16.mxu0 0
      %3557 = vmatmul.mubr.bf16.gmra.mrb[0].mxu0 %v3393
      %v3558 = vpop.f32.mrb[0].mxu0
      %v3559 = vadd.f32 %v3442, %v3558
      %v3560 = vpop.f32.mrb[0].mxu0
      %v3561 = vpop.f32.mrb[0].mxu0
      %v3562 = vadd.f32 %v3442, %v3561
      %v3563 = vpop.f32.mrb[0].mxu0
      %3564 = vmatprep.mubr.bf16.mxu0 0
      %3565 = vmatmul.mubr.bf16.gmra.mrb[0].mxu0 %v3394
      %v3566 = vpop.f32.mrb[0].mxu0
      %v3567 = vadd.f32 %v3442, %v3566
      %v3568 = vpop.f32.mrb[0].mxu0
      %v3569 = vpop.f32.mrb[0].mxu0
      %v3570 = vadd.f32 %v3442, %v3569
      %v3571 = vpop.f32.mrb[0].mxu0
      %3572 = vmatprep.mubr.bf16.mxu0 0
      %3573 = vmatmul.mubr.bf16.gmra.mrb[0].mxu0 %v3395
      %v3574 = vpop.f32.mrb[0].mxu0
      %v3575 = vadd.f32 %v3442, %v3574
      %v3576 = vpop.f32.mrb[0].mxu0
      %v3577 = vpop.f32.mrb[0].mxu0
      %v3578 = vadd.f32 %v3442, %v3577
      %v3579 = vpop.f32.mrb[0].mxu0
      %3580 = vmatprep.mubr.bf16.mxu0 0
      %3581 = vmatmul.mubr.bf16.gmra.mrb[0].mxu0 %v3396
      %v3582 = vpop.f32.mrb[0].mxu0
      %v3583 = vadd.f32 %v3442, %v3582
      %v3584 = vpop.f32.mrb[0].mxu0
      %v3585 = vpop.f32.mrb[0].mxu0
      %v3586 = vadd.f32 %v3442, %v3585
      %v3587 = vpop.f32.mrb[0].mxu0
      %3588 = vmatprep.mubr.bf16.mxu0 0
      %3589 = vmatmul.mubr.bf16.gmra.mrb[0].mxu0 %v3397
      %v3590 = vpop.f32.mrb[0].mxu0
      %v3591 = vadd.f32 %v3442, %v3590
      %v3592 = vpop.f32.mrb[0].mxu0
      %v3593 = vpop.f32.mrb[0].mxu0
      %v3594 = vadd.f32 %v3442, %v3593
      %v3595 = vpop.f32.mrb[0].mxu0
      %3596 = vmatprep.mubr.bf16.mxu0 0
      %3597 = vmatmul.mubr.bf16.gmra.mrb[0].mxu0 %v3398
      %v3598 = vpop.f32.mrb[0].mxu0
      %v3599 = vadd.f32 %v3442, %v3598
      %v3600 = vpop.f32.mrb[0].mxu0
      %v3601 = vpop.f32.mrb[0].mxu0
      %v3602 = vadd.f32 %v3442, %v3601
      %v3603 = vpop.f32.mrb[0].mxu0
      %3604 = vmatprep.mubr.bf16.mxu0 0
      %3605 = vmatmul.mubr.bf16.gmra.mrb[0].mxu0 %v3399
      %v3606 = vpop.f32.mrb[0].mxu0
      %v3607 = vadd.f32 %v3442, %v3606
      %v3608 = vpop.f32.mrb[0].mxu0
      %v3609 = vpop.f32.mrb[0].mxu0
      %v3610 = vadd.f32 %v3442, %v3609
      %v3611 = vpop.f32.mrb[0].mxu0
      %3612 = vmatprep.mubr.bf16.mxu0 0
      %3613 = vmatmul.mubr.bf16.gmra.mrb[0].mxu0 %v3400
      %v3614 = vpop.f32.mrb[0].mxu0
      %v3615 = vadd.f32 %v3442, %v3614
      %v3616 = vpop.f32.mrb[0].mxu0
      %v3617 = vpop.f32.mrb[0].mxu0
      %v3618 = vadd.f32 %v3442, %v3617
      %v3619 = vpop.f32.mrb[0].mxu0
      %3620 = vmatprep.mubr.bf16.mxu0 0
      %3621 = vmatmul.mubr.bf16.gmra.mrb[0].mxu0 %v3401
      %v3622 = vpop.f32.mrb[0].mxu0
      %v3623 = vadd.f32 %v3442, %v3622
      %v3624 = vpop.f32.mrb[0].mxu0
      %v3625 = vpop.f32.mrb[0].mxu0
      %v3626 = vadd.f32 %v3442, %v3625
      %v3627 = vpop.f32.mrb[0].mxu0
      %3628 = vmatprep.mubr.bf16.mxu0 0
      %3629 = vmatmul.mubr.bf16.gmra.mrb[0].mxu0 %v3402
      %v3630 = vpop.f32.mrb[0].mxu0
      %v3631 = vadd.f32 %v3442, %v3630
      %v3632 = vpop.f32.mrb[0].mxu0
      %v3633 = vpop.f32.mrb[0].mxu0
      %v3634 = vadd.f32 %v3442, %v3633
      %v3635 = vpop.f32.mrb[0].mxu0
      %3636 = vmatprep.mubr.bf16.mxu0 0
      %3637 = vmatmul.mubr.bf16.gmra.mrb[0].mxu0 %v3403
      %v3638 = vpop.f32.mrb[0].mxu0
      %v3639 = vadd.f32 %v3442, %v3638
      %v3640 = vpop.f32.mrb[0].mxu0
      %v3641 = vpop.f32.mrb[0].mxu0
      %v3642 = vadd.f32 %v3442, %v3641
      %v3643 = vpop.f32.mrb[0].mxu0
      %3644 = vmatprep.mubr.bf16.mxu0 0
      %3645 = vmatmul.mubr.bf16.gmra.mrb[0].mxu0 %v3404
      %v3646 = vpop.f32.mrb[0].mxu0
      %v3647 = vadd.f32 %v3442, %v3646
      %v3648 = vpop.f32.mrb[0].mxu0
      %v3649 = vpop.f32.mrb[0].mxu0
      %v3650 = vadd.f32 %v3442, %v3649
      %v3651 = vpop.f32.mrb[0].mxu0
      %3652 = vmatprep.mubr.bf16.mxu0 0
      %3653 = vmatmul.mubr.bf16.gmra.mrb[0].mxu0 %v3405
      %v3654 = vpop.f32.mrb[0].mxu0
      %v3655 = vadd.f32 %v3442, %v3654
      %v3656 = vpop.f32.mrb[0].mxu0
      %v3657 = vpop.f32.mrb[0].mxu0
      %v3658 = vadd.f32 %v3442, %v3657
      %v3659 = vpop.f32.mrb[0].mxu0
      %3660 = vmatprep.mubr.bf16.mxu0 0
      %3661 = vmatmul.mubr.bf16.gmra.mrb[0].mxu0 %v3406
      %v3662 = vpop.f32.mrb[0].mxu0
      %v3663 = vadd.f32 %v3442, %v3662
      %v3664 = vpop.f32.mrb[0].mxu0
      %v3665 = vpop.f32.mrb[0].mxu0
      %v3666 = vadd.f32 %v3442, %v3665
      %v3667 = vpop.f32.mrb[0].mxu0
      %3668 = vmatprep.mubr.bf16.mxu0 0
      %3669 = vmatmul.mubr.bf16.gmra.mrb[0].mxu0 %v3407
      %v3670 = vpop.f32.mrb[0].mxu0
      %v3671 = vadd.f32 %v3442, %v3670
      %v3672 = vpop.f32.mrb[0].mxu0
      %v3673 = vpop.f32.mrb[0].mxu0
      %v3674 = vadd.f32 %v3442, %v3673
      %v3675 = vpop.f32.mrb[0].mxu0
      %3676 = vmatprep.mubr.bf16.mxu0 0
      %3677 = vmatmul.mubr.bf16.gmra.mrb[0].mxu0 %v3408
      %v3678 = vpop.f32.mrb[0].mxu0
      %v3679 = vadd.f32 %v3442, %v3678
      %v3680 = vpop.f32.mrb[0].mxu0
      %v3681 = vpop.f32.mrb[0].mxu0
      %v3682 = vadd.f32 %v3442, %v3681
      %v3683 = vpop.f32.mrb[0].mxu0
      %3684 = vmatprep.mubr.bf16.mxu0 0
      %3685 = vmatmul.mubr.bf16.gmra.mrb[0].mxu0 %v3409
      %v3686 = vpop.f32.mrb[0].mxu0
      %v3687 = vadd.f32 %v3442, %v3686
      %v3688 = vpop.f32.mrb[0].mxu0
      %v3689 = vpop.f32.mrb[0].mxu0
      %v3690 = vadd.f32 %v3442, %v3689
      %v3691 = vpop.f32.mrb[0].mxu0
      %3692 = vmatprep.mubr.bf16.mxu0 0
      %3693 = vmatmul.mubr.bf16.gmra.mrb[0].mxu0 %v3410
      %v3694 = vpop.f32.mrb[0].mxu0
      %v3695 = vadd.f32 %v3442, %v3694
      %v3696 = vpop.f32.mrb[0].mxu0
      %v3697 = vpop.f32.mrb[0].mxu0
      %v3698 = vadd.f32 %v3442, %v3697
      %v3699 = vpop.f32.mrb[0].mxu0
      %3700 = vmatprep.mubr.bf16.mxu0 0
      %3701 = vmatmul.mubr.bf16.gmra.mrb[0].mxu0 %v3411
      %v3702 = vpop.f32.mrb[0].mxu0
      %v3703 = vadd.f32 %v3442, %v3702
      %v3704 = vpop.f32.mrb[0].mxu0
      %v3705 = vpop.f32.mrb[0].mxu0
      %v3706 = vadd.f32 %v3442, %v3705
      %v3707 = vpop.f32.mrb[0].mxu0
      %3708 = vmatprep.mubr.bf16.mxu0 0
      %3709 = vmatmul.mubr.bf16.gmra.mrb[0].mxu0 %v3412
      %v3710 = vpop.f32.mrb[0].mxu0
      %v3711 = vadd.f32 %v3442, %v3710
      %v3712 = vpop.f32.mrb[0].mxu0
      %v3713 = vpop.f32.mrb[0].mxu0
      %v3714 = vadd.f32 %v3442, %v3713
      %v3715 = vpop.f32.mrb[0].mxu0
      %3716 = vmatprep.mubr.bf16.mxu0 0
      %3717 = vmatmul.mubr.bf16.gmra.mrb[0].mxu0 %v3413
      %v3718 = vpop.f32.mrb[0].mxu0
      %v3719 = vadd.f32 %v3442, %v3718
      %v3720 = vpop.f32.mrb[0].mxu0
      %v3721 = vpop.f32.mrb[0].mxu0
      %v3722 = vadd.f32 %v3442, %v3721
      %v3723 = vpop.f32.mrb[0].mxu0
      %3724 = vmatprep.mubr.bf16.mxu0 0
      %3725 = vmatmul.mubr.bf16.gmra.mrb[0].mxu0 %v3414
      %v3726 = vpop.f32.mrb[0].mxu0
      %v3727 = vadd.f32 %v3442, %v3726
      %v3728 = vpop.f32.mrb[0].mxu0
      %v3729 = vpop.f32.mrb[0].mxu0
      %v3730 = vadd.f32 %v3442, %v3729
      %v3731 = vpop.f32.mrb[0].mxu0
      %3732 = vmatprep.mubr.bf16.mxu0 0
      %3733 = vmatmul.mubr.bf16.gmra.mrb[0].mxu0 %v3415
      %v3734 = vpop.f32.mrb[0].mxu0
      %v3735 = vadd.f32 %v3442, %v3734
      %v3736 = vpop.f32.mrb[0].mxu0
      %v3737 = vpop.f32.mrb[0].mxu0
      %v3738 = vadd.f32 %v3442, %v3737
      %v3739 = vpop.f32.mrb[0].mxu0
      %3740 = vmatprep.mubr.bf16.mxu0 0
      %3741 = vmatmul.mubr.bf16.gmra.mrb[0].mxu0 %v3416
      %v3742 = vpop.f32.mrb[0].mxu0
      %v3743 = vadd.f32 %v3442, %v3742
      %v3744 = vpop.f32.mrb[0].mxu0
      %v3745 = vpop.f32.mrb[0].mxu0
      %v3746 = vadd.f32 %v3442, %v3745
      %v3747 = vpop.f32.mrb[0].mxu0
      %3748 = vmatprep.mubr.bf16.mxu0 0
      %3749 = vmatmul.mubr.bf16.gmra.mrb[0].mxu0 %v3417
      %v3750 = vpop.f32.mrb[0].mxu0
      %v3751 = vadd.f32 %v3442, %v3750
      %v3752 = vpop.f32.mrb[0].mxu0
      %v3753 = vpop.f32.mrb[0].mxu0
      %v3754 = vadd.f32 %v3442, %v3753
      %v3755 = vpop.f32.mrb[0].mxu0
      %3756 = vmatprep.mubr.bf16.mxu0 0
      %3757 = vmatmul.mubr.bf16.gmra.mrb[0].mxu0 %v3418
      %v3758 = vpop.f32.mrb[0].mxu0
      %v3759 = vadd.f32 %v3442, %v3758
      %v3760 = vpop.f32.mrb[0].mxu0
      %v3761 = vpop.f32.mrb[0].mxu0
      %v3762 = vadd.f32 %v3442, %v3761
      %v3763 = vpop.f32.mrb[0].mxu0
      %3764 = vmatprep.mubr.bf16.mxu0 0
      %3765 = vmatmul.mubr.bf16.gmra.mrb[0].mxu0 %v3419
      %v3766 = vpop.f32.mrb[0].mxu0
      %v3767 = vadd.f32 %v3442, %v3766
      %v3768 = vpop.f32.mrb[0].mxu0
      %v3769 = vpop.f32.mrb[0].mxu0
      %v3770 = vadd.f32 %v3442, %v3769
      %v3771 = vpop.f32.mrb[0].mxu0
      %3772 = vmatprep.mubr.bf16.mxu0 0
      %3773 = vmatmul.mubr.bf16.gmra.mrb[0].mxu0 %v3420
      %v3774 = vpop.f32.mrb[0].mxu0
      %v3775 = vadd.f32 %v3442, %v3774
      %v3776 = vpop.f32.mrb[0].mxu0
      %v3777 = vpop.f32.mrb[0].mxu0
      %v3778 = vadd.f32 %v3442, %v3777
      %v3779 = vpop.f32.mrb[0].mxu0
      %3780 = vdwg.mxu0
      %v3781 = vsub.f32 0.0, %v3527
      %v3782 = vsub.f32 0.0, %v3530
      %v3783 = vsub.f32 0.0, %v3535
      %v3784 = vsub.f32 0.0, %v3538
      %v3785 = vsub.f32 0.0, %v3543
      %v3786 = vsub.f32 0.0, %v3546
      %v3787 = vsub.f32 0.0, %v3551
      %v3788 = vsub.f32 0.0, %v3554
      %v3789 = vsub.f32 0.0, %v3559
      %v3790 = vsub.f32 0.0, %v3562
      %v3791 = vsub.f32 0.0, %v3567
      %v3792 = vsub.f32 0.0, %v3570
      %v3793 = vsub.f32 0.0, %v3575
      %v3794 = vsub.f32 0.0, %v3578
      %v3795 = vsub.f32 0.0, %v3583
      %v3796 = vsub.f32 0.0, %v3586
      %v3797 = vsub.f32 0.0, %v3591
      %v3798 = vsub.f32 0.0, %v3594
      %v3799 = vsub.f32 0.0, %v3599
      %v3800 = vsub.f32 0.0, %v3602
      %v3801 = vsub.f32 0.0, %v3607
      %v3802 = vsub.f32 0.0, %v3610
      %v3803 = vsub.f32 0.0, %v3615
      %v3804 = vsub.f32 0.0, %v3618
      %v3805 = vsub.f32 0.0, %v3623
      %v3806 = vsub.f32 0.0, %v3626
      %v3807 = vsub.f32 0.0, %v3631
      %v3808 = vsub.f32 0.0, %v3634
      %v3809 = vsub.f32 0.0, %v3639
      %v3810 = vsub.f32 0.0, %v3642
      %v3811 = vsub.f32 0.0, %v3647
      %v3812 = vsub.f32 0.0, %v3650
      %v3813 = vsub.f32 0.0, %v3655
      %v3814 = vsub.f32 0.0, %v3658
      %v3815 = vsub.f32 0.0, %v3663
      %v3816 = vsub.f32 0.0, %v3666
      %v3817 = vsub.f32 0.0, %v3671
      %v3818 = vsub.f32 0.0, %v3674
      %v3819 = vsub.f32 0.0, %v3679
      %v3820 = vsub.f32 0.0, %v3682
      %v3821 = vsub.f32 0.0, %v3687
      %v3822 = vsub.f32 0.0, %v3690
      %v3823 = vsub.f32 0.0, %v3695
      %v3824 = vsub.f32 0.0, %v3698
      %v3825 = vsub.f32 0.0, %v3703
      %v3826 = vsub.f32 0.0, %v3706
      %v3827 = vsub.f32 0.0, %v3711
      %v3828 = vsub.f32 0.0, %v3714
      %v3829 = vsub.f32 0.0, %v3719
      %v3830 = vsub.f32 0.0, %v3722
      %v3831 = vsub.f32 0.0, %v3727
      %v3832 = vsub.f32 0.0, %v3730
      %v3833 = vsub.f32 0.0, %v3735
      %v3834 = vsub.f32 0.0, %v3738
      %v3835 = vsub.f32 0.0, %v3743
      %v3836 = vsub.f32 0.0, %v3746
      %v3837 = vsub.f32 0.0, %v3751
      %v3838 = vsub.f32 0.0, %v3754
      %v3839 = vsub.f32 0.0, %v3759
      %v3840 = vsub.f32 0.0, %v3762
      %v3841 = vsub.f32 0.0, %v3767
      %v3842 = vsub.f32 0.0, %v3770
      %v3843 = vsub.f32 0.0, %v3775
      %v3844 = vsub.f32 0.0, %v3778
      %v3845 = vmul.f32 %v3781, 1.442695
      %v3846 = vpow.pop %v3845
      %v3847 = vmul.f32 %v3782, 1.442695
      %v3848 = vpow.pop %v3847
      %v3849 = vmul.f32 %v3783, 1.442695
      %v3850 = vpow.pop %v3849
      %v3851 = vmul.f32 %v3784, 1.442695
      %v3852 = vpow.pop %v3851
      %v3853 = vmul.f32 %v3785, 1.442695
      %v3854 = vpow.pop %v3853
      %v3855 = vmul.f32 %v3786, 1.442695
      %v3856 = vpow.pop %v3855
      %v3857 = vmul.f32 %v3787, 1.442695
      %v3858 = vpow.pop %v3857
      %v3859 = vmul.f32 %v3788, 1.442695
      %v3860 = vpow.pop %v3859
      %v3861 = vmul.f32 %v3789, 1.442695
      %v3862 = vpow.pop %v3861
      %v3863 = vmul.f32 %v3790, 1.442695
      %v3864 = vpow.pop %v3863
      %v3865 = vmul.f32 %v3791, 1.442695
      %v3866 = vpow.pop %v3865
      %v3867 = vmul.f32 %v3792, 1.442695
      %v3868 = vpow.pop %v3867
      %v3869 = vmul.f32 %v3793, 1.442695
      %v3870 = vpow.pop %v3869
      %v3871 = vmul.f32 %v3794, 1.442695
      %v3872 = vpow.pop %v3871
      %v3873 = vmul.f32 %v3795, 1.442695
      %v3874 = vpow.pop %v3873
      %v3875 = vmul.f32 %v3796, 1.442695
      %v3876 = vpow.pop %v3875
      %v3877 = vmul.f32 %v3797, 1.442695
      %v3878 = vpow.pop %v3877
      %v3879 = vmul.f32 %v3798, 1.442695
      %v3880 = vpow.pop %v3879
      %v3881 = vmul.f32 %v3799, 1.442695
      %v3882 = vpow.pop %v3881
      %v3883 = vmul.f32 %v3800, 1.442695
      %v3884 = vpow.pop %v3883
      %v3885 = vmul.f32 %v3801, 1.442695
      %v3886 = vpow.pop %v3885
      %v3887 = vmul.f32 %v3802, 1.442695
      %v3888 = vpow.pop %v3887
      %v3889 = vmul.f32 %v3803, 1.442695
      %v3890 = vpow.pop %v3889
      %v3891 = vmul.f32 %v3804, 1.442695
      %v3892 = vpow.pop %v3891
      %v3893 = vmul.f32 %v3805, 1.442695
      %v3894 = vpow.pop %v3893
      %v3895 = vmul.f32 %v3806, 1.442695
      %v3896 = vpow.pop %v3895
      %v3897 = vmul.f32 %v3807, 1.442695
      %v3898 = vpow.pop %v3897
      %v3899 = vmul.f32 %v3808, 1.442695
      %v3900 = vpow.pop %v3899
      %v3901 = vmul.f32 %v3809, 1.442695
      %v3902 = vpow.pop %v3901
      %v3903 = vmul.f32 %v3810, 1.442695
      %v3904 = vpow.pop %v3903
      %v3905 = vmul.f32 %v3811, 1.442695
      %v3906 = vpow.pop %v3905
      %v3907 = vmul.f32 %v3812, 1.442695
      %v3908 = vpow.pop %v3907
      %v3909 = vmul.f32 %v3813, 1.442695
      %v3910 = vpow.pop %v3909
      %v3911 = vmul.f32 %v3814, 1.442695
      %v3912 = vpow.pop %v3911
      %v3913 = vmul.f32 %v3815, 1.442695
      %v3914 = vpow.pop %v3913
      %v3915 = vmul.f32 %v3816, 1.442695
      %v3916 = vpow.pop %v3915
      %v3917 = vmul.f32 %v3817, 1.442695
      %v3918 = vpow.pop %v3917
      %v3919 = vmul.f32 %v3818, 1.442695
      %v3920 = vpow.pop %v3919
      %v3921 = vmul.f32 %v3819, 1.442695
      %v3922 = vpow.pop %v3921
      %v3923 = vmul.f32 %v3820, 1.442695
      %v3924 = vpow.pop %v3923
      %v3925 = vmul.f32 %v3821, 1.442695
      %v3926 = vpow.pop %v3925
      %v3927 = vmul.f32 %v3822, 1.442695
      %v3928 = vpow.pop %v3927
      %v3929 = vmul.f32 %v3823, 1.442695
      %v3930 = vpow.pop %v3929
      %v3931 = vmul.f32 %v3824, 1.442695
      %v3932 = vpow.pop %v3931
      %v3933 = vmul.f32 %v3825, 1.442695
      %v3934 = vpow.pop %v3933
      %v3935 = vmul.f32 %v3826, 1.442695
      %v3936 = vpow.pop %v3935
      %v3937 = vmul.f32 %v3827, 1.442695
      %v3938 = vpow.pop %v3937
      %v3939 = vmul.f32 %v3828, 1.442695
      %v3940 = vpow.pop %v3939
      %v3941 = vmul.f32 %v3829, 1.442695
      %v3942 = vpow.pop %v3941
      %v3943 = vmul.f32 %v3830, 1.442695
      %v3944 = vpow.pop %v3943
      %v3945 = vmul.f32 %v3831, 1.442695
      %v3946 = vpow.pop %v3945
      %v3947 = vmul.f32 %v3832, 1.442695
      %v3948 = vpow.pop %v3947
      %v3949 = vmul.f32 %v3833, 1.442695
      %v3950 = vpow.pop %v3949
      %v3951 = vmul.f32 %v3834, 1.442695
      %v3952 = vpow.pop %v3951
      %v3953 = vmul.f32 %v3835, 1.442695
      %v3954 = vpow.pop %v3953
      %v3955 = vmul.f32 %v3836, 1.442695
      %v3956 = vpow.pop %v3955
      %v3957 = vmul.f32 %v3837, 1.442695
      %v3958 = vpow.pop %v3957
      %v3959 = vmul.f32 %v3838, 1.442695
      %v3960 = vpow.pop %v3959
      %v3961 = vmul.f32 %v3839, 1.442695
      %v3962 = vpow.pop %v3961
      %v3963 = vmul.f32 %v3840, 1.442695
      %v3964 = vpow.pop %v3963
      %v3965 = vmul.f32 %v3841, 1.442695
      %v3966 = vpow.pop %v3965
      %v3967 = vmul.f32 %v3842, 1.442695
      %v3968 = vpow.pop %v3967
      %v3969 = vmul.f32 %v3843, 1.442695
      %v3970 = vpow.pop %v3969
      %v3971 = vmul.f32 %v3844, 1.442695
      %v3972 = vpow.pop %v3971
      %v3973 = vadd.f32 %v3846, 1.0
      %v3974 = vadd.f32 %v3848, 1.0
      %v3975 = vadd.f32 %v3850, 1.0
      %v3976 = vadd.f32 %v3852, 1.0
      %v3977 = vadd.f32 %v3854, 1.0
      %v3978 = vadd.f32 %v3856, 1.0
      %v3979 = vadd.f32 %v3858, 1.0
      %v3980 = vadd.f32 %v3860, 1.0
      %v3981 = vadd.f32 %v3862, 1.0
      %v3982 = vadd.f32 %v3864, 1.0
      %v3983 = vadd.f32 %v3866, 1.0
      %v3984 = vadd.f32 %v3868, 1.0
      %v3985 = vadd.f32 %v3870, 1.0
      %v3986 = vadd.f32 %v3872, 1.0
      %v3987 = vadd.f32 %v3874, 1.0
      %v3988 = vadd.f32 %v3876, 1.0
      %v3989 = vadd.f32 %v3878, 1.0
      %v3990 = vadd.f32 %v3880, 1.0
      %v3991 = vadd.f32 %v3882, 1.0
      %v3992 = vadd.f32 %v3884, 1.0
      %v3993 = vadd.f32 %v3886, 1.0
      %v3994 = vadd.f32 %v3888, 1.0
      %v3995 = vadd.f32 %v3890, 1.0
      %v3996 = vadd.f32 %v3892, 1.0
      %v3997 = vadd.f32 %v3894, 1.0
      %v3998 = vadd.f32 %v3896, 1.0
      %v3999 = vadd.f32 %v3898, 1.0
      %v4000 = vadd.f32 %v3900, 1.0
      %v4001 = vadd.f32 %v3902, 1.0
      %v4002 = vadd.f32 %v3904, 1.0
      %v4003 = vadd.f32 %v3906, 1.0
      %v4004 = vadd.f32 %v3908, 1.0
      %v4005 = vadd.f32 %v3910, 1.0
      %v4006 = vadd.f32 %v3912, 1.0
      %v4007 = vadd.f32 %v3914, 1.0
      %v4008 = vadd.f32 %v3916, 1.0
      %v4009 = vadd.f32 %v3918, 1.0
      %v4010 = vadd.f32 %v3920, 1.0
      %v4011 = vadd.f32 %v3922, 1.0
      %v4012 = vadd.f32 %v3924, 1.0
      %v4013 = vadd.f32 %v3926, 1.0
      %v4014 = vadd.f32 %v3928, 1.0
      %v4015 = vadd.f32 %v3930, 1.0
      %v4016 = vadd.f32 %v3932, 1.0
      %v4017 = vadd.f32 %v3934, 1.0
      %v4018 = vadd.f32 %v3936, 1.0
      %v4019 = vadd.f32 %v3938, 1.0
      %v4020 = vadd.f32 %v3940, 1.0
      %v4021 = vadd.f32 %v3942, 1.0
      %v4022 = vadd.f32 %v3944, 1.0
      %v4023 = vadd.f32 %v3946, 1.0
      %v4024 = vadd.f32 %v3948, 1.0
      %v4025 = vadd.f32 %v3950, 1.0
      %v4026 = vadd.f32 %v3952, 1.0
      %v4027 = vadd.f32 %v3954, 1.0
      %v4028 = vadd.f32 %v3956, 1.0
      %v4029 = vadd.f32 %v3958, 1.0
      %v4030 = vadd.f32 %v3960, 1.0
      %v4031 = vadd.f32 %v3962, 1.0
      %v4032 = vadd.f32 %v3964, 1.0
      %v4033 = vadd.f32 %v3966, 1.0
      %v4034 = vadd.f32 %v3968, 1.0
      %v4035 = vadd.f32 %v3970, 1.0
      %v4036 = vadd.f32 %v3972, 1.0
      %v4037 = vrcp.pop %v3973
      %v4038 = vmul.f32 1.0, %v4037
      %v4039 = vrcp.pop %v3974
      %v4040 = vmul.f32 1.0, %v4039
      %v4041 = vrcp.pop %v3975
      %v4042 = vmul.f32 1.0, %v4041
      %v4043 = vrcp.pop %v3976
      %v4044 = vmul.f32 1.0, %v4043
      %v4045 = vrcp.pop %v3977
      %v4046 = vmul.f32 1.0, %v4045
      %v4047 = vrcp.pop %v3978
      %v4048 = vmul.f32 1.0, %v4047
      %v4049 = vrcp.pop %v3979
      %v4050 = vmul.f32 1.0, %v4049
      %v4051 = vrcp.pop %v3980
      %v4052 = vmul.f32 1.0, %v4051
      %v4053 = vrcp.pop %v3981
      %v4054 = vmul.f32 1.0, %v4053
      %v4055 = vrcp.pop %v3982
      %v4056 = vmul.f32 1.0, %v4055
      %v4057 = vrcp.pop %v3983
      %v4058 = vmul.f32 1.0, %v4057
      %v4059 = vrcp.pop %v3984
      %v4060 = vmul.f32 1.0, %v4059
      %v4061 = vrcp.pop %v3985
      %v4062 = vmul.f32 1.0, %v4061
      %v4063 = vrcp.pop %v3986
      %v4064 = vmul.f32 1.0, %v4063
      %v4065 = vrcp.pop %v3987
      %v4066 = vmul.f32 1.0, %v4065
      %v4067 = vrcp.pop %v3988
      %v4068 = vmul.f32 1.0, %v4067
      %v4069 = vrcp.pop %v3989
      %v4070 = vmul.f32 1.0, %v4069
      %v4071 = vrcp.pop %v3990
      %v4072 = vmul.f32 1.0, %v4071
      %v4073 = vrcp.pop %v3991
      %v4074 = vmul.f32 1.0, %v4073
      %v4075 = vrcp.pop %v3992
      %v4076 = vmul.f32 1.0, %v4075
      %v4077 = vrcp.pop %v3993
      %v4078 = vmul.f32 1.0, %v4077
      %v4079 = vrcp.pop %v3994
      %v4080 = vmul.f32 1.0, %v4079
      %v4081 = vrcp.pop %v3995
      %v4082 = vmul.f32 1.0, %v4081
      %v4083 = vrcp.pop %v3996
      %v4084 = vmul.f32 1.0, %v4083
      %v4085 = vrcp.pop %v3997
      %v4086 = vmul.f32 1.0, %v4085
      %v4087 = vrcp.pop %v3998
      %v4088 = vmul.f32 1.0, %v4087
      %v4089 = vrcp.pop %v3999
      %v4090 = vmul.f32 1.0, %v4089
      %v4091 = vrcp.pop %v4000
      %v4092 = vmul.f32 1.0, %v4091
      %v4093 = vrcp.pop %v4001
      %v4094 = vmul.f32 1.0, %v4093
      %v4095 = vrcp.pop %v4002
      %v4096 = vmul.f32 1.0, %v4095
      %v4097 = vrcp.pop %v4003
      %v4098 = vmul.f32 1.0, %v4097
      %v4099 = vrcp.pop %v4004
      %v4100 = vmul.f32 1.0, %v4099
      %v4101 = vrcp.pop %v4005
      %v4102 = vmul.f32 1.0, %v4101
      %v4103 = vrcp.pop %v4006
      %v4104 = vmul.f32 1.0, %v4103
      %v4105 = vrcp.pop %v4007
      %v4106 = vmul.f32 1.0, %v4105
      %v4107 = vrcp.pop %v4008
      %v4108 = vmul.f32 1.0, %v4107
      %v4109 = vrcp.pop %v4009
      %v4110 = vmul.f32 1.0, %v4109
      %v4111 = vrcp.pop %v4010
      %v4112 = vmul.f32 1.0, %v4111
      %v4113 = vrcp.pop %v4011
      %v4114 = vmul.f32 1.0, %v4113
      %v4115 = vrcp.pop %v4012
      %v4116 = vmul.f32 1.0, %v4115
      %v4117 = vrcp.pop %v4013
      %v4118 = vmul.f32 1.0, %v4117
      %v4119 = vrcp.pop %v4014
      %v4120 = vmul.f32 1.0, %v4119
      %v4121 = vrcp.pop %v4015
      %v4122 = vmul.f32 1.0, %v4121
      %v4123 = vrcp.pop %v4016
      %v4124 = vmul.f32 1.0, %v4123
      %v4125 = vrcp.pop %v4017
      %v4126 = vmul.f32 1.0, %v4125
      %v4127 = vrcp.pop %v4018
      %v4128 = vmul.f32 1.0, %v4127
      %v4129 = vrcp.pop %v4019
      %v4130 = vmul.f32 1.0, %v4129
      %v4131 = vrcp.pop %v4020
      %v4132 = vmul.f32 1.0, %v4131
      %v4133 = vrcp.pop %v4021
      %v4134 = vmul.f32 1.0, %v4133
      %v4135 = vrcp.pop %v4022
      %v4136 = vmul.f32 1.0, %v4135
      %v4137 = vrcp.pop %v4023
      %v4138 = vmul.f32 1.0, %v4137
      %v4139 = vrcp.pop %v4024
      %v4140 = vmul.f32 1.0, %v4139
      %v4141 = vrcp.pop %v4025
      %v4142 = vmul.f32 1.0, %v4141
      %v4143 = vrcp.pop %v4026
      %v4144 = vmul.f32 1.0, %v4143
      %v4145 = vrcp.pop %v4027
      %v4146 = vmul.f32 1.0, %v4145
      %v4147 = vrcp.pop %v4028
      %v4148 = vmul.f32 1.0, %v4147
      %v4149 = vrcp.pop %v4029
      %v4150 = vmul.f32 1.0, %v4149
      %v4151 = vrcp.pop %v4030
      %v4152 = vmul.f32 1.0, %v4151
      %v4153 = vrcp.pop %v4031
      %v4154 = vmul.f32 1.0, %v4153
      %v4155 = vrcp.pop %v4032
      %v4156 = vmul.f32 1.0, %v4155
      %v4157 = vrcp.pop %v4033
      %v4158 = vmul.f32 1.0, %v4157
      %v4159 = vrcp.pop %v4034
      %v4160 = vmul.f32 1.0, %v4159
      %v4161 = vrcp.pop %v4035
      %v4162 = vmul.f32 1.0, %v4161
      %v4163 = vrcp.pop %v4036
      %v4164 = vmul.f32 1.0, %v4163
      %vm4165 = vcmask 15360
      %4166 = vst.msk [vmem:[%s334] sm:$0xff] %vm4165, %v4038
      %4167 = vst.msk [vmem:[%s334 + $0x8] sm:$0xff] %vm4165, %v4040
      %4168 = vst.msk [vmem:[%s334 + $0x10] sm:$0xff] %vm4165, %v4042
      %4169 = vst.msk [vmem:[%s334 + $0x18] sm:$0xff] %vm4165, %v4044
      %4170 = vst.msk [vmem:[%s334 + $0x20] sm:$0xff] %vm4165, %v4046
      %4171 = vst.msk [vmem:[%s334 + $0x28] sm:$0xff] %vm4165, %v4048
      %4172 = vst.msk [vmem:[%s334 + $0x30] sm:$0xff] %vm4165, %v4050
      %4173 = vst.msk [vmem:[%s334 + $0x38] sm:$0xff] %vm4165, %v4052
      %4174 = vst.msk [vmem:[%s334 + $0x40] sm:$0xff] %vm4165, %v4054
      %4175 = vst.msk [vmem:[%s334 + $0x48] sm:$0xff] %vm4165, %v4056
      %4176 = vst.msk [vmem:[%s334 + $0x50] sm:$0xff] %vm4165, %v4058
      %4177 = vst.msk [vmem:[%s334 + $0x58] sm:$0xff] %vm4165, %v4060
      %4178 = vst.msk [vmem:[%s334 + $0x60] sm:$0xff] %vm4165, %v4062
      %4179 = vst.msk [vmem:[%s334 + $0x68] sm:$0xff] %vm4165, %v4064
      %4180 = vst.msk [vmem:[%s334 + $0x70] sm:$0xff] %vm4165, %v4066
      %4181 = vst.msk [vmem:[%s334 + $0x78] sm:$0xff] %vm4165, %v4068
      %4182 = vst.msk [vmem:[%s334 + $0x80] sm:$0xff] %vm4165, %v4070
      %4183 = vst.msk [vmem:[%s334 + $0x88] sm:$0xff] %vm4165, %v4072
      %4184 = vst.msk [vmem:[%s334 + $0x90] sm:$0xff] %vm4165, %v4074
      %4185 = vst.msk [vmem:[%s334 + $0x98] sm:$0xff] %vm4165, %v4076
      %4186 = vst.msk [vmem:[%s334 + $0xa0] sm:$0xff] %vm4165, %v4078
      %4187 = vst.msk [vmem:[%s334 + $0xa8] sm:$0xff] %vm4165, %v4080
      %4188 = vst.msk [vmem:[%s334 + $0xb0] sm:$0xff] %vm4165, %v4082
      %4189 = vst.msk [vmem:[%s334 + $0xb8] sm:$0xff] %vm4165, %v4084
      %4190 = vst.msk [vmem:[%s334 + $0xc0] sm:$0xff] %vm4165, %v4086
      %4191 = vst.msk [vmem:[%s334 + $0xc8] sm:$0xff] %vm4165, %v4088
      %4192 = vst.msk [vmem:[%s334 + $0xd0] sm:$0xff] %vm4165, %v4090
      %4193 = vst.msk [vmem:[%s334 + $0xd8] sm:$0xff] %vm4165, %v4092
      %4194 = vst.msk [vmem:[%s334 + $0xe0] sm:$0xff] %vm4165, %v4094
      %4195 = vst.msk [vmem:[%s334 + $0xe8] sm:$0xff] %vm4165, %v4096
      %4196 = vst.msk [vmem:[%s334 + $0xf0] sm:$0xff] %vm4165, %v4098
      %4197 = vst.msk [vmem:[%s334 + $0xf8] sm:$0xff] %vm4165, %v4100
      %4198 = vst.msk [vmem:[%s334 + $0x100] sm:$0xff] %vm4165, %v4102
      %4199 = vst.msk [vmem:[%s334 + $0x108] sm:$0xff] %vm4165, %v4104
      %4200 = vst.msk [vmem:[%s334 + $0x110] sm:$0xff] %vm4165, %v4106
      %4201 = vst.msk [vmem:[%s334 + $0x118] sm:$0xff] %vm4165, %v4108
      %4202 = vst.msk [vmem:[%s334 + $0x120] sm:$0xff] %vm4165, %v4110
      %4203 = vst.msk [vmem:[%s334 + $0x128] sm:$0xff] %vm4165, %v4112
      %4204 = vst.msk [vmem:[%s334 + $0x130] sm:$0xff] %vm4165, %v4114
      %4205 = vst.msk [vmem:[%s334 + $0x138] sm:$0xff] %vm4165, %v4116
      %4206 = vst.msk [vmem:[%s334 + $0x140] sm:$0xff] %vm4165, %v4118
      %4207 = vst.msk [vmem:[%s334 + $0x148] sm:$0xff] %vm4165, %v4120
      %4208 = vst.msk [vmem:[%s334 + $0x150] sm:$0xff] %vm4165, %v4122
      %4209 = vst.msk [vmem:[%s334 + $0x158] sm:$0xff] %vm4165, %v4124
      %4210 = vst.msk [vmem:[%s334 + $0x160] sm:$0xff] %vm4165, %v4126
      %4211 = vst.msk [vmem:[%s334 + $0x168] sm:$0xff] %vm4165, %v4128
      %4212 = vst.msk [vmem:[%s334 + $0x170] sm:$0xff] %vm4165, %v4130
      %4213 = vst.msk [vmem:[%s334 + $0x178] sm:$0xff] %vm4165, %v4132
      %4214 = vst.msk [vmem:[%s334 + $0x180] sm:$0xff] %vm4165, %v4134
      %4215 = vst.msk [vmem:[%s334 + $0x188] sm:$0xff] %vm4165, %v4136
      %4216 = vst.msk [vmem:[%s334 + $0x190] sm:$0xff] %vm4165, %v4138
      %4217 = vst.msk [vmem:[%s334 + $0x198] sm:$0xff] %vm4165, %v4140
      %4218 = vst.msk [vmem:[%s334 + $0x1a0] sm:$0xff] %vm4165, %v4142
      %4219 = vst.msk [vmem:[%s334 + $0x1a8] sm:$0xff] %vm4165, %v4144
      %4220 = vst.msk [vmem:[%s334 + $0x1b0] sm:$0xff] %vm4165, %v4146
      %4221 = vst.msk [vmem:[%s334 + $0x1b8] sm:$0xff] %vm4165, %v4148
      %4222 = vst.msk [vmem:[%s334 + $0x1c0] sm:$0xff] %vm4165, %v4150
      %4223 = vst.msk [vmem:[%s334 + $0x1c8] sm:$0xff] %vm4165, %v4152
      %4224 = vst.msk [vmem:[%s334 + $0x1d0] sm:$0xff] %vm4165, %v4154
      %4225 = vst.msk [vmem:[%s334 + $0x1d8] sm:$0xff] %vm4165, %v4156
      %4226 = vst.msk [vmem:[%s334 + $0x1e0] sm:$0xff] %vm4165, %v4158
      %4227 = vst.msk [vmem:[%s334 + $0x1e8] sm:$0xff] %vm4165, %v4160
      %4228 = vst.msk [vmem:[%s334 + $0x1f0] sm:$0xff] %vm4165, %v4162
      %4229 = vst.msk [vmem:[%s334 + $0x1f8] sm:$0xff] %vm4165, %v4164
      %s4230 = smul.u32 64, %s20
      %p4231 = scmp.lt.s32.totalorder %s4230, 127
      %s4232 = scalar_select %p4231, %s4230, 127
      %s4233 = smul.addr %s4232, 8
      %s4234 = scalar_lea.vmem %s9, %s4233
      // Predicated region
      $region57: #{stock_network_forward.1} parent=55 // pred_check
        %p4235 = pneg %p232
      $region58: #{stock_network_forward.1} parent=55 // pred_check_branch
        %4237 = sbr.rel (%p4235) target = $region60
      $region59: #{stock_network_forward.1} parent=55 // pred_region
        %s4238 = smul.u32 64, %s20
      $region60: #{stock_network_forward.1} parent=55 // pred_fallthru
        _
    $region56: #{stock_network_forward.1} parent=5 // pred_fallthru
      _
    %p4239 = scmp.le.s32.totalorder 2, %s15
    // Predicated region
    $region61: #{stock_network_forward.1} parent=5 // pred_check
      %p4240 = pneg %p4239
    $region62: #{stock_network_forward.1} parent=5 // pred_check_branch
      %4242 = sbr.rel (%p4240) target = $region64
    $region63: #{stock_network_forward.1} parent=5 // pred_region
      %s4243 = ssub.s32 %s15, 2
      // Predicated region
      $region65: #{stock_network_forward.1} parent=63 // pred_check
        %p4244 = pneg %p238
      $region66: #{stock_network_forward.1} parent=63 // pred_check_branch
        %4246 = sbr.rel (%p4244) target = $region68
      $region67: #{stock_network_forward.1} parent=63 // pred_region
        %s4247 = smul.u32 64, %s21
        %p4248 = scmp.lt.s32.totalorder %s4247, 127
        %s4249 = scalar_select %p4248, %s4247, 127
        %s4250 = smul.addr %s4249, 8
        %s4251 = scalar_lea.vmem %s9, %s4250
      $region68: #{stock_network_forward.1} parent=63 // pred_fallthru
        _
    $region64: #{stock_network_forward.1} parent=5 // pred_fallthru
      _
  $region6: #{stock_network_forward.1} parent=0 // loop_footer
    %s19 = sadd.s32 1, %s15
  $region7: #{stock_network_forward.1} parent=0 // loop_footer_branch
    %14 = sbr.rel target = $region3
  $region8: #{stock_network_forward.1} parent=0 // loop_exit
    _

</llo_original>
